<compile_context>
chip_gen: v5e
topology: v5e:2x2
jax: 0.10.0
libtpu: 0.0.40
codegen_flags: <defaults>
</compile_context>

<pallas_src>
import numpy as np

import jax
import jax.numpy as jnp
from jax.experimental import pallas as pl
from jax.experimental.pallas import tpu as pltpu

LANE = 128
C1_STRIDE = 8    # conv1-output lane encoding: lane = w_pooled * 8 + c   (c < 6)
C2_STRIDE = 16   # conv2-output lane encoding: lane = w_pooled * 16 + c  (c < 12)

B_TILE = 8                        # images processed per grid step
IMG_ROWS = 40                     # per-image row slab in the input tile (28 + pad)
R_IN = B_TILE * IMG_ROWS          # 320 input rows per tile
R1 = (B_TILE - 1) * IMG_ROWS + 32 # 312 conv1 output rows computed per tile
P1_SLAB = 24                      # per-image row slab after pool1
R1P = B_TILE * P1_SLAB            # 192 pooled rows per tile
R2 = (B_TILE - 1) * P1_SLAB + 16  # 184 conv2 output rows computed per tile


# ----------------------- host-side weight repacking ------------------------ #

def _conv_lane_mats(w, in_stride, in_w_extent, out_wp_extent, out_stride):
    """Banded lane-space conv matrices.

    Returns A of shape (2, 5, 128, 128) such that, for an activation tile
    `x[row = h, lane = w_in*in_stride + ci]`,
        sum_i x[r+i, :] @ A[p, i]
    has, at lane `wp*out_stride + co`, the conv output at (h=r, w=2*wp+p, co).
    I.e. the W-shift, Cin->Cout contraction and the even/odd (p) column of the
    following 2x2 max-pool are all folded into the matrices.
    """
    co_n, ci_n, K, _ = w.shape
    A = np.zeros((2, K, LANE, LANE), np.float32)
    p, i, j, wp, ci, co = np.meshgrid(
        np.arange(2), np.arange(K), np.arange(K), np.arange(out_wp_extent),
        np.arange(ci_n), np.arange(co_n), indexing="ij")
    w_in = 2 * wp + p + j
    ok = w_in < in_w_extent
    A[p[ok], i[ok], (w_in * in_stride + ci)[ok], (wp * out_stride + co)[ok]] = \
        w[co[ok], ci[ok], i[ok], j[ok]]
    return A


def _bias_lanes(b, wp_extent, stride):
    v = np.zeros((2, 1, LANE), np.float32)
    for wp in range(wp_extent):
        v[:, 0, wp * stride: wp * stride + b.shape[0]] = b
    return v


def _hpool_block_mats(b_tile, hp_valid, in_slab, out_slab, rows_in):
    """Block-diagonal 0/1 row-selection matrices for the H-direction of the
    2x2 max-pool, covering all `b_tile` images in one matmul."""
    S = np.zeros((2, b_tile * out_slab, rows_in), np.float32)
    for dy in range(2):
        for b in range(b_tile):
            for hp in range(hp_valid):
                S[dy, b * out_slab + hp, b * in_slab + 2 * hp + dy] = 1.0
    return S


def _hpool_gather_mats(b_tile, h_valid, in_slab, rows_in):
    """Row-selection matrices that both H-pool and gather one pooled H row per
    image into an (b_tile, rows_in)-shaped selector (one matrix per h)."""
    S = np.zeros((2, h_valid, b_tile, rows_in), np.float32)
    for dy in range(2):
        for h in range(h_valid):
            for b in range(b_tile):
                S[dy, h, b, b * in_slab + 2 * h + dy] = 1.0
    return S


def _fc1_mats(fc1_w):
    """fc1 weight with the PyTorch NCHW flatten permutation folded in."""
    W = np.zeros((4, LANE, LANE), np.float32)
    h, w2p, c2, o = np.meshgrid(np.arange(4), np.arange(4), np.arange(12),
                                np.arange(120), indexing="ij")
    W[h, w2p * C2_STRIDE + c2, o] = fc1_w[o, c2 * 16 + h * 4 + w2p]
    return W


def _fc_mat(w):
    o, i = w.shape
    M = np.zeros((LANE, LANE), np.float32)
    M[:i, :o] = w.T
    return M


def _fc_bias(b):
    v = np.zeros((1, LANE), np.float32)
    v[0, :b.shape[0]] = b
    return v


def prepare_constants(p):
    """One-time repacking of the PyTorch parameters into lane-dense tiles."""
    w1 = np.asarray(p['conv1_w'], np.float32)     # (6, 1, 5, 5)
    w2 = np.asarray(p['conv2_w'], np.float32)     # (12, 6, 5, 5)
    consts = dict(
        a1=_conv_lane_mats(w1, in_stride=1, in_w_extent=28,
                           out_wp_extent=12, out_stride=C1_STRIDE),
        b1=_bias_lanes(np.asarray(p['conv1_b'], np.float32), 12, C1_STRIDE),
        sh1=_hpool_block_mats(B_TILE, 12, IMG_ROWS, P1_SLAB, R1),
        a2=_conv_lane_mats(w2, in_stride=C1_STRIDE, in_w_extent=12,
                           out_wp_extent=4, out_stride=C2_STRIDE),
        b2=_bias_lanes(np.asarray(p['conv2_b'], np.float32), 4, C2_STRIDE),
        sh2=_hpool_gather_mats(B_TILE, 4, P1_SLAB, R2),
        w1f=_fc1_mats(np.asarray(p['fc1_w'], np.float32)),
        b1f=_fc_bias(np.asarray(p['fc1_b'], np.float32)),
        w2f=_fc_mat(np.asarray(p['fc2_w'], np.float32)),
        b2f=_fc_bias(np.asarray(p['fc2_b'], np.float32)),
        w3f=_fc_mat(np.asarray(p['out_w'], np.float32)),
        b3f=_fc_bias(np.asarray(p['out_b'], np.float32)),
    )
    return {k: jnp.asarray(v) for k, v in consts.items()}


# ------------------------------ fused kernel ------------------------------- #

def _cnn_kernel(x_ref, a1_ref, b1_ref, sh1_ref, a2_ref, b2_ref, sh2_ref,
                w1f_ref, b1f_ref, w2f_ref, b2f_ref, w3f_ref, b3f_ref, out_ref):
    f32 = jnp.float32

    def conv_block(x, a_ref, b_ref, rows_out):
        # x: (rows_in, 128) covering B_TILE image slabs.  Returns the relu'd,
        # W-pooled conv output for every row (junk rows inside the per-image
        # padding are computed but never selected downstream).
        pooled = None
        for par in range(2):                      # even / odd output column
            acc = jnp.zeros((rows_out, LANE), f32)
            for i in range(5):                    # vertical conv tap
                acc = acc + jnp.dot(x[i:i + rows_out, :], a_ref[par, i],
                                    preferred_element_type=f32)
            acc = jnp.maximum(acc + b_ref[par], 0.0)
            pooled = acc if pooled is None else jnp.maximum(pooled, acc)
        return pooled

    x0 = x_ref[0]                                   # (320, 128): 8 images
    z1 = conv_block(x0, a1_ref, b1_ref, R1)         # conv1 + relu + W-pool (312,128)
    p1 = jnp.maximum(                               # H-pool, block-diagonal select
        jnp.dot(sh1_ref[0], z1, preferred_element_type=f32),
        jnp.dot(sh1_ref[1], z1, preferred_element_type=f32))   # (192, 128)
    z2 = conv_block(p1, a2_ref, b2_ref, R2)         # conv2 + relu + W-pool (184,128)

    # fc1 with the NCHW flatten folded into w1f: the h-th selector both H-pools
    # and gathers pooled row h of every image into an (8, 128) tile
    # (one image per sublane), which then hits the MXU against w1f[h].
    acc = jnp.zeros((B_TILE, LANE), f32)
    for h in range(4):
        p2h = jnp.maximum(
            jnp.dot(sh2_ref[0, h], z2, preferred_element_type=f32),
            jnp.dot(sh2_ref[1, h], z2, preferred_element_type=f32))  # (8, 128)
        acc = acc + jnp.dot(p2h, w1f_ref[h], preferred_element_type=f32)
    h1 = jnp.maximum(acc + b1f_ref[...], 0.0)
    h2 = jnp.maximum(jnp.dot(h1, w2f_ref[...], preferred_element_type=f32)
                     + b2f_ref[...], 0.0)
    logits = jnp.dot(h2, w3f_ref[...], preferred_element_type=f32) + b3f_ref[...]
    out_ref[0] = logits.astype(out_ref.dtype)       # row b = logits of image b


def _prep_input(x, n_tiles):
    """(N,1,28,28) NCHW -> (tiles, 320, 128): 8 images per tile, 40-row slab
    per image (rows = H padded), lanes = W padded to 128."""
    n = x.shape[0]
    xi = x.reshape(n, 28, 28).astype(jnp.float32)
    xi = jnp.pad(xi, ((0, n_tiles * B_TILE - n),
                      (0, IMG_ROWS - 28), (0, LANE - 28)))
    return xi.reshape(n_tiles, R_IN, LANE)


def cnn_forward(x, consts):
    n = x.shape[0]
    n_tiles = (n + B_TILE - 1) // B_TILE
    xi = _prep_input(x, n_tiles)

    def full_block(shape):
        rank = len(shape)
        return pl.BlockSpec(shape, lambda i, _r=rank: (0,) * _r)

    c = consts
    grid_spec = pltpu.PrefetchScalarGridSpec(
        num_scalar_prefetch=0,
        grid=(n_tiles,),
        in_specs=[
            pl.BlockSpec((1, R_IN, LANE), lambda i: (i, 0, 0)),
            full_block(c['a1'].shape), full_block(c['b1'].shape),
            full_block(c['sh1'].shape),
            full_block(c['a2'].shape), full_block(c['b2'].shape),
            full_block(c['sh2'].shape),
            full_block(c['w1f'].shape), full_block(c['b1f'].shape),
            full_block(c['w2f'].shape), full_block(c['b2f'].shape),
            full_block(c['w3f'].shape), full_block(c['b3f'].shape),
        ],
        out_specs=pl.BlockSpec((1, B_TILE, LANE), lambda i: (i, 0, 0)),
    )
    out = pl.pallas_call(
        _cnn_kernel,
        out_shape=jax.ShapeDtypeStruct((n_tiles, B_TILE, LANE), jnp.float32),
        grid_spec=grid_spec,
        compiler_params=pltpu.CompilerParams(
            dimension_semantics=("parallel",)),
    )(xi, c['a1'], c['b1'], c['sh1'], c['a2'], c['b2'], c['sh2'],
      c['w1f'], c['b1f'], c['w2f'], c['b2f'], c['w3f'], c['b3f'])
    return out.reshape(n_tiles * B_TILE, LANE)[:n, :10]


# --------------------------- params & reference ----------------------------- #

def init_params(key):
    ks = jax.random.split(key, 10)

    def u(k, shape, fan_in):
        bound = 1.0 / jnp.sqrt(jnp.float32(fan_in))
        return jax.random.uniform(k, shape, jnp.float32, -bound, bound)

    return {
        'conv1_w': u(ks[0], (6, 1, 5, 5), 25), 'conv1_b': u(ks[1], (6,), 25),
        'conv2_w': u(ks[2], (12, 6, 5, 5), 150), 'conv2_b': u(ks[3], (12,), 150),
        'fc1_w': u(ks[4], (120, 192), 192), 'fc1_b': u(ks[5], (120,), 192),
        'fc2_w': u(ks[6], (60, 120), 120), 'fc2_b': u(ks[7], (60,), 120),
        'out_w': u(ks[8], (10, 60), 60), 'out_b': u(ks[9], (10,), 60),
    }


def cnn_reference(x, p):
    """Pure-JAX (XLA) reference mirroring the PyTorch forward, for validation."""
    def conv(x, w, b):
        y = jax.lax.conv_general_dilated(
            x, w, (1, 1), 'VALID', dimension_numbers=('NCHW', 'OIHW', 'NCHW'))
        return y + b[None, :, None, None]

    def pool(x):
        n, c, h, w = x.shape
        return x.reshape(n, c, h // 2, 2, w // 2, 2).max(axis=(3, 5))

    y = pool(jax.nn.relu(conv(x, p['conv1_w'], p['conv1_b'])))
    y = pool(jax.nn.relu(conv(y, p['conv2_w'], p['conv2_b'])))
    y = y.reshape(x.shape[0], 12 * 4 * 4)
    y = jax.nn.relu(y @ p['fc1_w'].T + p['fc1_b'])
    y = jax.nn.relu(y @ p['fc2_w'].T + p['fc2_b'])
    return y @ p['out_w'].T + p['out_b']


# TODO(synk): the PyTorch save()/load() checkpoint I/O has no kernel equivalent
# (parameters are generated deterministically in-script instead).

if __name__ == "__main__":
    key = jax.random.PRNGKey(0)
    kx, kp = jax.random.split(key)
    x = jax.random.normal(kx, (2, 1, 28, 28), jnp.float32)   # MNIST-shaped input
    params = init_params(kp)

    consts = prepare_constants(params)                        # one-time repack
    out = cnn_forward(x, consts)
    out = jax.block_until_ready(out)

    ref = cnn_reference(x, params)
    assert out.shape == (2, 10), out.shape
    assert jnp.allclose(out, ref, atol=1e-2, rtol=1e-2), float(
        jnp.max(jnp.abs(out - ref)))

    print("KERNEL_OK")
</pallas_src>

<mosaic_0001>
module attributes {stable_mosaic.version = 11 : i64} {
  func.func @_cnn_kernel(%arg0: i32, %arg1: memref<1x320x128xf32, #tpu.memory_space<vmem>>, %arg2: memref<2x5x128x128xf32, #tpu.memory_space<vmem>>, %arg3: memref<2x1x128xf32, #tpu.memory_space<vmem>>, %arg4: memref<2x192x312xf32, #tpu.memory_space<vmem>>, %arg5: memref<2x5x128x128xf32, #tpu.memory_space<vmem>>, %arg6: memref<2x1x128xf32, #tpu.memory_space<vmem>>, %arg7: memref<2x4x8x184xf32, #tpu.memory_space<vmem>>, %arg8: memref<4x128x128xf32, #tpu.memory_space<vmem>>, %arg9: memref<1x128xf32, #tpu.memory_space<vmem>>, %arg10: memref<128x128xf32, #tpu.memory_space<vmem>>, %arg11: memref<1x128xf32, #tpu.memory_space<vmem>>, %arg12: memref<128x128xf32, #tpu.memory_space<vmem>>, %arg13: memref<1x128xf32, #tpu.memory_space<vmem>>, %arg14: memref<1x8x128xf32, #tpu.memory_space<vmem>>) attributes {dimension_semantics = [#tpu.dimension_semantics<parallel>], iteration_bounds = array<i64: 1>, scalar_prefetch = 0 : i64, scratch_operands = 0 : i64, tpu.core_type = #tpu.core_type<tc>, window_params = [{transform_indices = @transform_0, window_bounds = array<i64: 1, 320, 128>}, {pipeline_mode = #tpu.pipeline_mode<synchronous>, transform_indices = @transform_1, window_bounds = array<i64: 2, 5, 128, 128>}, {pipeline_mode = #tpu.pipeline_mode<synchronous>, transform_indices = @transform_2, window_bounds = array<i64: 2, 1, 128>}, {pipeline_mode = #tpu.pipeline_mode<synchronous>, transform_indices = @transform_3, window_bounds = array<i64: 2, 192, 312>}, {pipeline_mode = #tpu.pipeline_mode<synchronous>, transform_indices = @transform_4, window_bounds = array<i64: 2, 5, 128, 128>}, {pipeline_mode = #tpu.pipeline_mode<synchronous>, transform_indices = @transform_5, window_bounds = array<i64: 2, 1, 128>}, {pipeline_mode = #tpu.pipeline_mode<synchronous>, transform_indices = @transform_6, window_bounds = array<i64: 2, 4, 8, 184>}, {pipeline_mode = #tpu.pipeline_mode<synchronous>, transform_indices = @transform_7, window_bounds = array<i64: 4, 128, 128>}, {pipeline_mode = #tpu.pipeline_mode<synchronous>, transform_indices = @transform_8, window_bounds = array<i64: 1, 128>}, {pipeline_mode = #tpu.pipeline_mode<synchronous>, transform_indices = @transform_9, window_bounds = array<i64: 128, 128>}, {pipeline_mode = #tpu.pipeline_mode<synchronous>, transform_indices = @transform_10, window_bounds = array<i64: 1, 128>}, {pipeline_mode = #tpu.pipeline_mode<synchronous>, transform_indices = @transform_11, window_bounds = array<i64: 128, 128>}, {pipeline_mode = #tpu.pipeline_mode<synchronous>, transform_indices = @transform_12, window_bounds = array<i64: 1, 128>}, {transform_indices = @transform_13, window_bounds = array<i64: 1, 8, 128>}]} {
    %c0 = arith.constant 0 : index
    %c0_0 = arith.constant 0 : index
    %c0_1 = arith.constant 0 : index
    %0 = vector.load %arg1[%c0, %c0_0, %c0_1] : memref<1x320x128xf32, #tpu.memory_space<vmem>>, vector<1x320x128xf32>
    %1 = vector.shape_cast %0 : vector<1x320x128xf32> to vector<320x128xf32>
    %cst = arith.constant 0.000000e+00 : f32
    %2 = vector.broadcast %cst : f32 to vector<312x128xf32>
    %3 = vector.extract_strided_slice %1 {offsets = [0, 0], sizes = [312, 128], strides = [1, 1]} : vector<320x128xf32> to vector<312x128xf32>
    %c0_2 = arith.constant 0 : index
    %c0_3 = arith.constant 0 : index
    %c0_4 = arith.constant 0 : index
    %c0_5 = arith.constant 0 : index
    %4 = vector.load %arg2[%c0_2, %c0_3, %c0_4, %c0_5] : memref<2x5x128x128xf32, #tpu.memory_space<vmem>>, vector<1x1x128x128xf32>
    %5 = vector.shape_cast %4 : vector<1x1x128x128xf32> to vector<128x128xf32>
    %cst_6 = arith.constant dense<0.000000e+00> : vector<312x128xf32>
    %6 = tpu.matmul %3, %5, %cst_6 {dimension_numbers = #tpu.dot_dimension_numbers<[1], [0], [0], [1], [0, 0, 1, 1], [], []>} : vector<312x128xf32>, vector<128x128xf32>, vector<312x128xf32> -> vector<312x128xf32>
    %7 = arith.addf %2, %6 : vector<312x128xf32>
    %8 = vector.extract_strided_slice %1 {offsets = [1, 0], sizes = [312, 128], strides = [1, 1]} : vector<320x128xf32> to vector<312x128xf32>
    %c0_7 = arith.constant 0 : index
    %c1 = arith.constant 1 : index
    %c0_8 = arith.constant 0 : index
    %c0_9 = arith.constant 0 : index
    %9 = vector.load %arg2[%c0_7, %c1, %c0_8, %c0_9] : memref<2x5x128x128xf32, #tpu.memory_space<vmem>>, vector<1x1x128x128xf32>
    %10 = vector.shape_cast %9 : vector<1x1x128x128xf32> to vector<128x128xf32>
    %cst_10 = arith.constant dense<0.000000e+00> : vector<312x128xf32>
    %11 = tpu.matmul %8, %10, %cst_10 {dimension_numbers = #tpu.dot_dimension_numbers<[1], [0], [0], [1], [0, 0, 1, 1], [], []>} : vector<312x128xf32>, vector<128x128xf32>, vector<312x128xf32> -> vector<312x128xf32>
    %12 = arith.addf %7, %11 : vector<312x128xf32>
    %13 = vector.extract_strided_slice %1 {offsets = [2, 0], sizes = [312, 128], strides = [1, 1]} : vector<320x128xf32> to vector<312x128xf32>
    %c0_11 = arith.constant 0 : index
    %c2 = arith.constant 2 : index
    %c0_12 = arith.constant 0 : index
    %c0_13 = arith.constant 0 : index
    %14 = vector.load %arg2[%c0_11, %c2, %c0_12, %c0_13] : memref<2x5x128x128xf32, #tpu.memory_space<vmem>>, vector<1x1x128x128xf32>
    %15 = vector.shape_cast %14 : vector<1x1x128x128xf32> to vector<128x128xf32>
    %cst_14 = arith.constant dense<0.000000e+00> : vector<312x128xf32>
    %16 = tpu.matmul %13, %15, %cst_14 {dimension_numbers = #tpu.dot_dimension_numbers<[1], [0], [0], [1], [0, 0, 1, 1], [], []>} : vector<312x128xf32>, vector<128x128xf32>, vector<312x128xf32> -> vector<312x128xf32>
    %17 = arith.addf %12, %16 : vector<312x128xf32>
    %18 = vector.extract_strided_slice %1 {offsets = [3, 0], sizes = [312, 128], strides = [1, 1]} : vector<320x128xf32> to vector<312x128xf32>
    %c0_15 = arith.constant 0 : index
    %c3 = arith.constant 3 : index
    %c0_16 = arith.constant 0 : index
    %c0_17 = arith.constant 0 : index
    %19 = vector.load %arg2[%c0_15, %c3, %c0_16, %c0_17] : memref<2x5x128x128xf32, #tpu.memory_space<vmem>>, vector<1x1x128x128xf32>
    %20 = vector.shape_cast %19 : vector<1x1x128x128xf32> to vector<128x128xf32>
    %cst_18 = arith.constant dense<0.000000e+00> : vector<312x128xf32>
    %21 = tpu.matmul %18, %20, %cst_18 {dimension_numbers = #tpu.dot_dimension_numbers<[1], [0], [0], [1], [0, 0, 1, 1], [], []>} : vector<312x128xf32>, vector<128x128xf32>, vector<312x128xf32> -> vector<312x128xf32>
    %22 = arith.addf %17, %21 : vector<312x128xf32>
    %23 = vector.extract_strided_slice %1 {offsets = [4, 0], sizes = [312, 128], strides = [1, 1]} : vector<320x128xf32> to vector<312x128xf32>
    %c0_19 = arith.constant 0 : index
    %c4 = arith.constant 4 : index
    %c0_20 = arith.constant 0 : index
    %c0_21 = arith.constant 0 : index
    %24 = vector.load %arg2[%c0_19, %c4, %c0_20, %c0_21] : memref<2x5x128x128xf32, #tpu.memory_space<vmem>>, vector<1x1x128x128xf32>
    %25 = vector.shape_cast %24 : vector<1x1x128x128xf32> to vector<128x128xf32>
    %cst_22 = arith.constant dense<0.000000e+00> : vector<312x128xf32>
    %26 = tpu.matmul %23, %25, %cst_22 {dimension_numbers = #tpu.dot_dimension_numbers<[1], [0], [0], [1], [0, 0, 1, 1], [], []>} : vector<312x128xf32>, vector<128x128xf32>, vector<312x128xf32> -> vector<312x128xf32>
    %27 = arith.addf %22, %26 : vector<312x128xf32>
    %c0_23 = arith.constant 0 : index
    %c0_24 = arith.constant 0 : index
    %c0_25 = arith.constant 0 : index
    %28 = vector.load %arg3[%c0_23, %c0_24, %c0_25] : memref<2x1x128xf32, #tpu.memory_space<vmem>>, vector<1x1x128xf32>
    %29 = vector.shape_cast %28 : vector<1x1x128xf32> to vector<1x128xf32>
    %30 = vector.broadcast %29 : vector<1x128xf32> to vector<312x128xf32>
    %31 = arith.addf %27, %30 : vector<312x128xf32>
    %cst_26 = arith.constant 0.000000e+00 : f32
    %32 = vector.broadcast %cst_26 : f32 to vector<312x128xf32>
    %33 = arith.maximumf %31, %32 : vector<312x128xf32>
    %cst_27 = arith.constant 0.000000e+00 : f32
    %34 = vector.broadcast %cst_27 : f32 to vector<312x128xf32>
    %35 = vector.extract_strided_slice %1 {offsets = [0, 0], sizes = [312, 128], strides = [1, 1]} : vector<320x128xf32> to vector<312x128xf32>
    %c1_28 = arith.constant 1 : index
    %c0_29 = arith.constant 0 : index
    %c0_30 = arith.constant 0 : index
    %c0_31 = arith.constant 0 : index
    %36 = vector.load %arg2[%c1_28, %c0_29, %c0_30, %c0_31] : memref<2x5x128x128xf32, #tpu.memory_space<vmem>>, vector<1x1x128x128xf32>
    %37 = vector.shape_cast %36 : vector<1x1x128x128xf32> to vector<128x128xf32>
    %cst_32 = arith.constant dense<0.000000e+00> : vector<312x128xf32>
    %38 = tpu.matmul %35, %37, %cst_32 {dimension_numbers = #tpu.dot_dimension_numbers<[1], [0], [0], [1], [0, 0, 1, 1], [], []>} : vector<312x128xf32>, vector<128x128xf32>, vector<312x128xf32> -> vector<312x128xf32>
    %39 = arith.addf %34, %38 : vector<312x128xf32>
    %40 = vector.extract_strided_slice %1 {offsets = [1, 0], sizes = [312, 128], strides = [1, 1]} : vector<320x128xf32> to vector<312x128xf32>
    %c1_33 = arith.constant 1 : index
    %c1_34 = arith.constant 1 : index
    %c0_35 = arith.constant 0 : index
    %c0_36 = arith.constant 0 : index
    %41 = vector.load %arg2[%c1_33, %c1_34, %c0_35, %c0_36] : memref<2x5x128x128xf32, #tpu.memory_space<vmem>>, vector<1x1x128x128xf32>
    %42 = vector.shape_cast %41 : vector<1x1x128x128xf32> to vector<128x128xf32>
    %cst_37 = arith.constant dense<0.000000e+00> : vector<312x128xf32>
    %43 = tpu.matmul %40, %42, %cst_37 {dimension_numbers = #tpu.dot_dimension_numbers<[1], [0], [0], [1], [0, 0, 1, 1], [], []>} : vector<312x128xf32>, vector<128x128xf32>, vector<312x128xf32> -> vector<312x128xf32>
    %44 = arith.addf %39, %43 : vector<312x128xf32>
    %45 = vector.extract_strided_slice %1 {offsets = [2, 0], sizes = [312, 128], strides = [1, 1]} : vector<320x128xf32> to vector<312x128xf32>
    %c1_38 = arith.constant 1 : index
    %c2_39 = arith.constant 2 : index
    %c0_40 = arith.constant 0 : index
    %c0_41 = arith.constant 0 : index
    %46 = vector.load %arg2[%c1_38, %c2_39, %c0_40, %c0_41] : memref<2x5x128x128xf32, #tpu.memory_space<vmem>>, vector<1x1x128x128xf32>
    %47 = vector.shape_cast %46 : vector<1x1x128x128xf32> to vector<128x128xf32>
    %cst_42 = arith.constant dense<0.000000e+00> : vector<312x128xf32>
    %48 = tpu.matmul %45, %47, %cst_42 {dimension_numbers = #tpu.dot_dimension_numbers<[1], [0], [0], [1], [0, 0, 1, 1], [], []>} : vector<312x128xf32>, vector<128x128xf32>, vector<312x128xf32> -> vector<312x128xf32>
    %49 = arith.addf %44, %48 : vector<312x128xf32>
    %50 = vector.extract_strided_slice %1 {offsets = [3, 0], sizes = [312, 128], strides = [1, 1]} : vector<320x128xf32> to vector<312x128xf32>
    %c1_43 = arith.constant 1 : index
    %c3_44 = arith.constant 3 : index
    %c0_45 = arith.constant 0 : index
    %c0_46 = arith.constant 0 : index
    %51 = vector.load %arg2[%c1_43, %c3_44, %c0_45, %c0_46] : memref<2x5x128x128xf32, #tpu.memory_space<vmem>>, vector<1x1x128x128xf32>
    %52 = vector.shape_cast %51 : vector<1x1x128x128xf32> to vector<128x128xf32>
    %cst_47 = arith.constant dense<0.000000e+00> : vector<312x128xf32>
    %53 = tpu.matmul %50, %52, %cst_47 {dimension_numbers = #tpu.dot_dimension_numbers<[1], [0], [0], [1], [0, 0, 1, 1], [], []>} : vector<312x128xf32>, vector<128x128xf32>, vector<312x128xf32> -> vector<312x128xf32>
    %54 = arith.addf %49, %53 : vector<312x128xf32>
    %55 = vector.extract_strided_slice %1 {offsets = [4, 0], sizes = [312, 128], strides = [1, 1]} : vector<320x128xf32> to vector<312x128xf32>
    %c1_48 = arith.constant 1 : index
    %c4_49 = arith.constant 4 : index
    %c0_50 = arith.constant 0 : index
    %c0_51 = arith.constant 0 : index
    %56 = vector.load %arg2[%c1_48, %c4_49, %c0_50, %c0_51] : memref<2x5x128x128xf32, #tpu.memory_space<vmem>>, vector<1x1x128x128xf32>
    %57 = vector.shape_cast %56 : vector<1x1x128x128xf32> to vector<128x128xf32>
    %cst_52 = arith.constant dense<0.000000e+00> : vector<312x128xf32>
    %58 = tpu.matmul %55, %57, %cst_52 {dimension_numbers = #tpu.dot_dimension_numbers<[1], [0], [0], [1], [0, 0, 1, 1], [], []>} : vector<312x128xf32>, vector<128x128xf32>, vector<312x128xf32> -> vector<312x128xf32>
    %59 = arith.addf %54, %58 : vector<312x128xf32>
    %c1_53 = arith.constant 1 : index
    %c0_54 = arith.constant 0 : index
    %c0_55 = arith.constant 0 : index
    %60 = vector.load %arg3[%c1_53, %c0_54, %c0_55] : memref<2x1x128xf32, #tpu.memory_space<vmem>>, vector<1x1x128xf32>
    %61 = vector.shape_cast %60 : vector<1x1x128xf32> to vector<1x128xf32>
    %62 = vector.broadcast %61 : vector<1x128xf32> to vector<312x128xf32>
    %63 = arith.addf %59, %62 : vector<312x128xf32>
    %cst_56 = arith.constant 0.000000e+00 : f32
    %64 = vector.broadcast %cst_56 : f32 to vector<312x128xf32>
    %65 = arith.maximumf %63, %64 : vector<312x128xf32>
    %66 = arith.maximumf %33, %65 : vector<312x128xf32>
    %c0_57 = arith.constant 0 : index
    %c0_58 = arith.constant 0 : index
    %c0_59 = arith.constant 0 : index
    %67 = vector.load %arg4[%c0_57, %c0_58, %c0_59] : memref<2x192x312xf32, #tpu.memory_space<vmem>>, vector<1x192x312xf32>
    %68 = vector.shape_cast %67 : vector<1x192x312xf32> to vector<192x312xf32>
    %cst_60 = arith.constant dense<0.000000e+00> : vector<192x128xf32>
    %69 = tpu.matmul %68, %66, %cst_60 {dimension_numbers = #tpu.dot_dimension_numbers<[1], [0], [0], [1], [0, 0, 1, 1], [], []>} : vector<192x312xf32>, vector<312x128xf32>, vector<192x128xf32> -> vector<192x128xf32>
    %c1_61 = arith.constant 1 : index
    %c0_62 = arith.constant 0 : index
    %c0_63 = arith.constant 0 : index
    %70 = vector.load %arg4[%c1_61, %c0_62, %c0_63] : memref<2x192x312xf32, #tpu.memory_space<vmem>>, vector<1x192x312xf32>
    %71 = vector.shape_cast %70 : vector<1x192x312xf32> to vector<192x312xf32>
    %cst_64 = arith.constant dense<0.000000e+00> : vector<192x128xf32>
    %72 = tpu.matmul %71, %66, %cst_64 {dimension_numbers = #tpu.dot_dimension_numbers<[1], [0], [0], [1], [0, 0, 1, 1], [], []>} : vector<192x312xf32>, vector<312x128xf32>, vector<192x128xf32> -> vector<192x128xf32>
    %73 = arith.maximumf %69, %72 : vector<192x128xf32>
    %cst_65 = arith.constant 0.000000e+00 : f32
    %74 = vector.broadcast %cst_65 : f32 to vector<184x128xf32>
    %75 = vector.extract_strided_slice %73 {offsets = [0, 0], sizes = [184, 128], strides = [1, 1]} : vector<192x128xf32> to vector<184x128xf32>
    %c0_66 = arith.constant 0 : index
    %c0_67 = arith.constant 0 : index
    %c0_68 = arith.constant 0 : index
    %c0_69 = arith.constant 0 : index
    %76 = vector.load %arg5[%c0_66, %c0_67, %c0_68, %c0_69] : memref<2x5x128x128xf32, #tpu.memory_space<vmem>>, vector<1x1x128x128xf32>
    %77 = vector.shape_cast %76 : vector<1x1x128x128xf32> to vector<128x128xf32>
    %cst_70 = arith.constant dense<0.000000e+00> : vector<184x128xf32>
    %78 = tpu.matmul %75, %77, %cst_70 {dimension_numbers = #tpu.dot_dimension_numbers<[1], [0], [0], [1], [0, 0, 1, 1], [], []>} : vector<184x128xf32>, vector<128x128xf32>, vector<184x128xf32> -> vector<184x128xf32>
    %79 = arith.addf %74, %78 : vector<184x128xf32>
    %80 = vector.extract_strided_slice %73 {offsets = [1, 0], sizes = [184, 128], strides = [1, 1]} : vector<192x128xf32> to vector<184x128xf32>
    %c0_71 = arith.constant 0 : index
    %c1_72 = arith.constant 1 : index
    %c0_73 = arith.constant 0 : index
    %c0_74 = arith.constant 0 : index
    %81 = vector.load %arg5[%c0_71, %c1_72, %c0_73, %c0_74] : memref<2x5x128x128xf32, #tpu.memory_space<vmem>>, vector<1x1x128x128xf32>
    %82 = vector.shape_cast %81 : vector<1x1x128x128xf32> to vector<128x128xf32>
    %cst_75 = arith.constant dense<0.000000e+00> : vector<184x128xf32>
    %83 = tpu.matmul %80, %82, %cst_75 {dimension_numbers = #tpu.dot_dimension_numbers<[1], [0], [0], [1], [0, 0, 1, 1], [], []>} : vector<184x128xf32>, vector<128x128xf32>, vector<184x128xf32> -> vector<184x128xf32>
    %84 = arith.addf %79, %83 : vector<184x128xf32>
    %85 = vector.extract_strided_slice %73 {offsets = [2, 0], sizes = [184, 128], strides = [1, 1]} : vector<192x128xf32> to vector<184x128xf32>
    %c0_76 = arith.constant 0 : index
    %c2_77 = arith.constant 2 : index
    %c0_78 = arith.constant 0 : index
    %c0_79 = arith.constant 0 : index
    %86 = vector.load %arg5[%c0_76, %c2_77, %c0_78, %c0_79] : memref<2x5x128x128xf32, #tpu.memory_space<vmem>>, vector<1x1x128x128xf32>
    %87 = vector.shape_cast %86 : vector<1x1x128x128xf32> to vector<128x128xf32>
    %cst_80 = arith.constant dense<0.000000e+00> : vector<184x128xf32>
    %88 = tpu.matmul %85, %87, %cst_80 {dimension_numbers = #tpu.dot_dimension_numbers<[1], [0], [0], [1], [0, 0, 1, 1], [], []>} : vector<184x128xf32>, vector<128x128xf32>, vector<184x128xf32> -> vector<184x128xf32>
    %89 = arith.addf %84, %88 : vector<184x128xf32>
    %90 = vector.extract_strided_slice %73 {offsets = [3, 0], sizes = [184, 128], strides = [1, 1]} : vector<192x128xf32> to vector<184x128xf32>
    %c0_81 = arith.constant 0 : index
    %c3_82 = arith.constant 3 : index
    %c0_83 = arith.constant 0 : index
    %c0_84 = arith.constant 0 : index
    %91 = vector.load %arg5[%c0_81, %c3_82, %c0_83, %c0_84] : memref<2x5x128x128xf32, #tpu.memory_space<vmem>>, vector<1x1x128x128xf32>
    %92 = vector.shape_cast %91 : vector<1x1x128x128xf32> to vector<128x128xf32>
    %cst_85 = arith.constant dense<0.000000e+00> : vector<184x128xf32>
    %93 = tpu.matmul %90, %92, %cst_85 {dimension_numbers = #tpu.dot_dimension_numbers<[1], [0], [0], [1], [0, 0, 1, 1], [], []>} : vector<184x128xf32>, vector<128x128xf32>, vector<184x128xf32> -> vector<184x128xf32>
    %94 = arith.addf %89, %93 : vector<184x128xf32>
    %95 = vector.extract_strided_slice %73 {offsets = [4, 0], sizes = [184, 128], strides = [1, 1]} : vector<192x128xf32> to vector<184x128xf32>
    %c0_86 = arith.constant 0 : index
    %c4_87 = arith.constant 4 : index
    %c0_88 = arith.constant 0 : index
    %c0_89 = arith.constant 0 : index
    %96 = vector.load %arg5[%c0_86, %c4_87, %c0_88, %c0_89] : memref<2x5x128x128xf32, #tpu.memory_space<vmem>>, vector<1x1x128x128xf32>
    %97 = vector.shape_cast %96 : vector<1x1x128x128xf32> to vector<128x128xf32>
    %cst_90 = arith.constant dense<0.000000e+00> : vector<184x128xf32>
    %98 = tpu.matmul %95, %97, %cst_90 {dimension_numbers = #tpu.dot_dimension_numbers<[1], [0], [0], [1], [0, 0, 1, 1], [], []>} : vector<184x128xf32>, vector<128x128xf32>, vector<184x128xf32> -> vector<184x128xf32>
    %99 = arith.addf %94, %98 : vector<184x128xf32>
    %c0_91 = arith.constant 0 : index
    %c0_92 = arith.constant 0 : index
    %c0_93 = arith.constant 0 : index
    %100 = vector.load %arg6[%c0_91, %c0_92, %c0_93] : memref<2x1x128xf32, #tpu.memory_space<vmem>>, vector<1x1x128xf32>
    %101 = vector.shape_cast %100 : vector<1x1x128xf32> to vector<1x128xf32>
    %102 = vector.broadcast %101 : vector<1x128xf32> to vector<184x128xf32>
    %103 = arith.addf %99, %102 : vector<184x128xf32>
    %cst_94 = arith.constant 0.000000e+00 : f32
    %104 = vector.broadcast %cst_94 : f32 to vector<184x128xf32>
    %105 = arith.maximumf %103, %104 : vector<184x128xf32>
    %cst_95 = arith.constant 0.000000e+00 : f32
    %106 = vector.broadcast %cst_95 : f32 to vector<184x128xf32>
    %107 = vector.extract_strided_slice %73 {offsets = [0, 0], sizes = [184, 128], strides = [1, 1]} : vector<192x128xf32> to vector<184x128xf32>
    %c1_96 = arith.constant 1 : index
    %c0_97 = arith.constant 0 : index
    %c0_98 = arith.constant 0 : index
    %c0_99 = arith.constant 0 : index
    %108 = vector.load %arg5[%c1_96, %c0_97, %c0_98, %c0_99] : memref<2x5x128x128xf32, #tpu.memory_space<vmem>>, vector<1x1x128x128xf32>
    %109 = vector.shape_cast %108 : vector<1x1x128x128xf32> to vector<128x128xf32>
    %cst_100 = arith.constant dense<0.000000e+00> : vector<184x128xf32>
    %110 = tpu.matmul %107, %109, %cst_100 {dimension_numbers = #tpu.dot_dimension_numbers<[1], [0], [0], [1], [0, 0, 1, 1], [], []>} : vector<184x128xf32>, vector<128x128xf32>, vector<184x128xf32> -> vector<184x128xf32>
    %111 = arith.addf %106, %110 : vector<184x128xf32>
    %112 = vector.extract_strided_slice %73 {offsets = [1, 0], sizes = [184, 128], strides = [1, 1]} : vector<192x128xf32> to vector<184x128xf32>
    %c1_101 = arith.constant 1 : index
    %c1_102 = arith.constant 1 : index
    %c0_103 = arith.constant 0 : index
    %c0_104 = arith.constant 0 : index
    %113 = vector.load %arg5[%c1_101, %c1_102, %c0_103, %c0_104] : memref<2x5x128x128xf32, #tpu.memory_space<vmem>>, vector<1x1x128x128xf32>
    %114 = vector.shape_cast %113 : vector<1x1x128x128xf32> to vector<128x128xf32>
    %cst_105 = arith.constant dense<0.000000e+00> : vector<184x128xf32>
    %115 = tpu.matmul %112, %114, %cst_105 {dimension_numbers = #tpu.dot_dimension_numbers<[1], [0], [0], [1], [0, 0, 1, 1], [], []>} : vector<184x128xf32>, vector<128x128xf32>, vector<184x128xf32> -> vector<184x128xf32>
    %116 = arith.addf %111, %115 : vector<184x128xf32>
    %117 = vector.extract_strided_slice %73 {offsets = [2, 0], sizes = [184, 128], strides = [1, 1]} : vector<192x128xf32> to vector<184x128xf32>
    %c1_106 = arith.constant 1 : index
    %c2_107 = arith.constant 2 : index
    %c0_108 = arith.constant 0 : index
    %c0_109 = arith.constant 0 : index
    %118 = vector.load %arg5[%c1_106, %c2_107, %c0_108, %c0_109] : memref<2x5x128x128xf32, #tpu.memory_space<vmem>>, vector<1x1x128x128xf32>
    %119 = vector.shape_cast %118 : vector<1x1x128x128xf32> to vector<128x128xf32>
    %cst_110 = arith.constant dense<0.000000e+00> : vector<184x128xf32>
    %120 = tpu.matmul %117, %119, %cst_110 {dimension_numbers = #tpu.dot_dimension_numbers<[1], [0], [0], [1], [0, 0, 1, 1], [], []>} : vector<184x128xf32>, vector<128x128xf32>, vector<184x128xf32> -> vector<184x128xf32>
    %121 = arith.addf %116, %120 : vector<184x128xf32>
    %122 = vector.extract_strided_slice %73 {offsets = [3, 0], sizes = [184, 128], strides = [1, 1]} : vector<192x128xf32> to vector<184x128xf32>
    %c1_111 = arith.constant 1 : index
    %c3_112 = arith.constant 3 : index
    %c0_113 = arith.constant 0 : index
    %c0_114 = arith.constant 0 : index
    %123 = vector.load %arg5[%c1_111, %c3_112, %c0_113, %c0_114] : memref<2x5x128x128xf32, #tpu.memory_space<vmem>>, vector<1x1x128x128xf32>
    %124 = vector.shape_cast %123 : vector<1x1x128x128xf32> to vector<128x128xf32>
    %cst_115 = arith.constant dense<0.000000e+00> : vector<184x128xf32>
    %125 = tpu.matmul %122, %124, %cst_115 {dimension_numbers = #tpu.dot_dimension_numbers<[1], [0], [0], [1], [0, 0, 1, 1], [], []>} : vector<184x128xf32>, vector<128x128xf32>, vector<184x128xf32> -> vector<184x128xf32>
    %126 = arith.addf %121, %125 : vector<184x128xf32>
    %127 = vector.extract_strided_slice %73 {offsets = [4, 0], sizes = [184, 128], strides = [1, 1]} : vector<192x128xf32> to vector<184x128xf32>
    %c1_116 = arith.constant 1 : index
    %c4_117 = arith.constant 4 : index
    %c0_118 = arith.constant 0 : index
    %c0_119 = arith.constant 0 : index
    %128 = vector.load %arg5[%c1_116, %c4_117, %c0_118, %c0_119] : memref<2x5x128x128xf32, #tpu.memory_space<vmem>>, vector<1x1x128x128xf32>
    %129 = vector.shape_cast %128 : vector<1x1x128x128xf32> to vector<128x128xf32>
    %cst_120 = arith.constant dense<0.000000e+00> : vector<184x128xf32>
    %130 = tpu.matmul %127, %129, %cst_120 {dimension_numbers = #tpu.dot_dimension_numbers<[1], [0], [0], [1], [0, 0, 1, 1], [], []>} : vector<184x128xf32>, vector<128x128xf32>, vector<184x128xf32> -> vector<184x128xf32>
    %131 = arith.addf %126, %130 : vector<184x128xf32>
    %c1_121 = arith.constant 1 : index
    %c0_122 = arith.constant 0 : index
    %c0_123 = arith.constant 0 : index
    %132 = vector.load %arg6[%c1_121, %c0_122, %c0_123] : memref<2x1x128xf32, #tpu.memory_space<vmem>>, vector<1x1x128xf32>
    %133 = vector.shape_cast %132 : vector<1x1x128xf32> to vector<1x128xf32>
    %134 = vector.broadcast %133 : vector<1x128xf32> to vector<184x128xf32>
    %135 = arith.addf %131, %134 : vector<184x128xf32>
    %cst_124 = arith.constant 0.000000e+00 : f32
    %136 = vector.broadcast %cst_124 : f32 to vector<184x128xf32>
    %137 = arith.maximumf %135, %136 : vector<184x128xf32>
    %138 = arith.maximumf %105, %137 : vector<184x128xf32>
    %cst_125 = arith.constant 0.000000e+00 : f32
    %139 = vector.broadcast %cst_125 : f32 to vector<8x128xf32>
    %c0_126 = arith.constant 0 : index
    %c0_127 = arith.constant 0 : index
    %c0_128 = arith.constant 0 : index
    %c0_129 = arith.constant 0 : index
    %140 = vector.load %arg7[%c0_126, %c0_127, %c0_128, %c0_129] : memref<2x4x8x184xf32, #tpu.memory_space<vmem>>, vector<1x1x8x184xf32>
    %141 = vector.shape_cast %140 : vector<1x1x8x184xf32> to vector<8x184xf32>
    %cst_130 = arith.constant dense<0.000000e+00> : vector<8x128xf32>
    %142 = tpu.matmul %141, %138, %cst_130 {dimension_numbers = #tpu.dot_dimension_numbers<[1], [0], [0], [1], [0, 0, 1, 1], [], []>} : vector<8x184xf32>, vector<184x128xf32>, vector<8x128xf32> -> vector<8x128xf32>
    %c1_131 = arith.constant 1 : index
    %c0_132 = arith.constant 0 : index
    %c0_133 = arith.constant 0 : index
    %c0_134 = arith.constant 0 : index
    %143 = vector.load %arg7[%c1_131, %c0_132, %c0_133, %c0_134] : memref<2x4x8x184xf32, #tpu.memory_space<vmem>>, vector<1x1x8x184xf32>
    %144 = vector.shape_cast %143 : vector<1x1x8x184xf32> to vector<8x184xf32>
    %cst_135 = arith.constant dense<0.000000e+00> : vector<8x128xf32>
    %145 = tpu.matmul %144, %138, %cst_135 {dimension_numbers = #tpu.dot_dimension_numbers<[1], [0], [0], [1], [0, 0, 1, 1], [], []>} : vector<8x184xf32>, vector<184x128xf32>, vector<8x128xf32> -> vector<8x128xf32>
    %146 = arith.maximumf %142, %145 : vector<8x128xf32>
    %c0_136 = arith.constant 0 : index
    %c0_137 = arith.constant 0 : index
    %c0_138 = arith.constant 0 : index
    %147 = vector.load %arg8[%c0_136, %c0_137, %c0_138] : memref<4x128x128xf32, #tpu.memory_space<vmem>>, vector<1x128x128xf32>
    %148 = vector.shape_cast %147 : vector<1x128x128xf32> to vector<128x128xf32>
    %cst_139 = arith.constant dense<0.000000e+00> : vector<8x128xf32>
    %149 = tpu.matmul %146, %148, %cst_139 {dimension_numbers = #tpu.dot_dimension_numbers<[1], [0], [0], [1], [0, 0, 1, 1], [], []>} : vector<8x128xf32>, vector<128x128xf32>, vector<8x128xf32> -> vector<8x128xf32>
    %150 = arith.addf %139, %149 : vector<8x128xf32>
    %c0_140 = arith.constant 0 : index
    %c1_141 = arith.constant 1 : index
    %c0_142 = arith.constant 0 : index
    %c0_143 = arith.constant 0 : index
    %151 = vector.load %arg7[%c0_140, %c1_141, %c0_142, %c0_143] : memref<2x4x8x184xf32, #tpu.memory_space<vmem>>, vector<1x1x8x184xf32>
    %152 = vector.shape_cast %151 : vector<1x1x8x184xf32> to vector<8x184xf32>
    %cst_144 = arith.constant dense<0.000000e+00> : vector<8x128xf32>
    %153 = tpu.matmul %152, %138, %cst_144 {dimension_numbers = #tpu.dot_dimension_numbers<[1], [0], [0], [1], [0, 0, 1, 1], [], []>} : vector<8x184xf32>, vector<184x128xf32>, vector<8x128xf32> -> vector<8x128xf32>
    %c1_145 = arith.constant 1 : index
    %c1_146 = arith.constant 1 : index
    %c0_147 = arith.constant 0 : index
    %c0_148 = arith.constant 0 : index
    %154 = vector.load %arg7[%c1_145, %c1_146, %c0_147, %c0_148] : memref<2x4x8x184xf32, #tpu.memory_space<vmem>>, vector<1x1x8x184xf32>
    %155 = vector.shape_cast %154 : vector<1x1x8x184xf32> to vector<8x184xf32>
    %cst_149 = arith.constant dense<0.000000e+00> : vector<8x128xf32>
    %156 = tpu.matmul %155, %138, %cst_149 {dimension_numbers = #tpu.dot_dimension_numbers<[1], [0], [0], [1], [0, 0, 1, 1], [], []>} : vector<8x184xf32>, vector<184x128xf32>, vector<8x128xf32> -> vector<8x128xf32>
    %157 = arith.maximumf %153, %156 : vector<8x128xf32>
    %c1_150 = arith.constant 1 : index
    %c0_151 = arith.constant 0 : index
    %c0_152 = arith.constant 0 : index
    %158 = vector.load %arg8[%c1_150, %c0_151, %c0_152] : memref<4x128x128xf32, #tpu.memory_space<vmem>>, vector<1x128x128xf32>
    %159 = vector.shape_cast %158 : vector<1x128x128xf32> to vector<128x128xf32>
    %cst_153 = arith.constant dense<0.000000e+00> : vector<8x128xf32>
    %160 = tpu.matmul %157, %159, %cst_153 {dimension_numbers = #tpu.dot_dimension_numbers<[1], [0], [0], [1], [0, 0, 1, 1], [], []>} : vector<8x128xf32>, vector<128x128xf32>, vector<8x128xf32> -> vector<8x128xf32>
    %161 = arith.addf %150, %160 : vector<8x128xf32>
    %c0_154 = arith.constant 0 : index
    %c2_155 = arith.constant 2 : index
    %c0_156 = arith.constant 0 : index
    %c0_157 = arith.constant 0 : index
    %162 = vector.load %arg7[%c0_154, %c2_155, %c0_156, %c0_157] : memref<2x4x8x184xf32, #tpu.memory_space<vmem>>, vector<1x1x8x184xf32>
    %163 = vector.shape_cast %162 : vector<1x1x8x184xf32> to vector<8x184xf32>
    %cst_158 = arith.constant dense<0.000000e+00> : vector<8x128xf32>
    %164 = tpu.matmul %163, %138, %cst_158 {dimension_numbers = #tpu.dot_dimension_numbers<[1], [0], [0], [1], [0, 0, 1, 1], [], []>} : vector<8x184xf32>, vector<184x128xf32>, vector<8x128xf32> -> vector<8x128xf32>
    %c1_159 = arith.constant 1 : index
    %c2_160 = arith.constant 2 : index
    %c0_161 = arith.constant 0 : index
    %c0_162 = arith.constant 0 : index
    %165 = vector.load %arg7[%c1_159, %c2_160, %c0_161, %c0_162] : memref<2x4x8x184xf32, #tpu.memory_space<vmem>>, vector<1x1x8x184xf32>
    %166 = vector.shape_cast %165 : vector<1x1x8x184xf32> to vector<8x184xf32>
    %cst_163 = arith.constant dense<0.000000e+00> : vector<8x128xf32>
    %167 = tpu.matmul %166, %138, %cst_163 {dimension_numbers = #tpu.dot_dimension_numbers<[1], [0], [0], [1], [0, 0, 1, 1], [], []>} : vector<8x184xf32>, vector<184x128xf32>, vector<8x128xf32> -> vector<8x128xf32>
    %168 = arith.maximumf %164, %167 : vector<8x128xf32>
    %c2_164 = arith.constant 2 : index
    %c0_165 = arith.constant 0 : index
    %c0_166 = arith.constant 0 : index
    %169 = vector.load %arg8[%c2_164, %c0_165, %c0_166] : memref<4x128x128xf32, #tpu.memory_space<vmem>>, vector<1x128x128xf32>
    %170 = vector.shape_cast %169 : vector<1x128x128xf32> to vector<128x128xf32>
    %cst_167 = arith.constant dense<0.000000e+00> : vector<8x128xf32>
    %171 = tpu.matmul %168, %170, %cst_167 {dimension_numbers = #tpu.dot_dimension_numbers<[1], [0], [0], [1], [0, 0, 1, 1], [], []>} : vector<8x128xf32>, vector<128x128xf32>, vector<8x128xf32> -> vector<8x128xf32>
    %172 = arith.addf %161, %171 : vector<8x128xf32>
    %c0_168 = arith.constant 0 : index
    %c3_169 = arith.constant 3 : index
    %c0_170 = arith.constant 0 : index
    %c0_171 = arith.constant 0 : index
    %173 = vector.load %arg7[%c0_168, %c3_169, %c0_170, %c0_171] : memref<2x4x8x184xf32, #tpu.memory_space<vmem>>, vector<1x1x8x184xf32>
    %174 = vector.shape_cast %173 : vector<1x1x8x184xf32> to vector<8x184xf32>
    %cst_172 = arith.constant dense<0.000000e+00> : vector<8x128xf32>
    %175 = tpu.matmul %174, %138, %cst_172 {dimension_numbers = #tpu.dot_dimension_numbers<[1], [0], [0], [1], [0, 0, 1, 1], [], []>} : vector<8x184xf32>, vector<184x128xf32>, vector<8x128xf32> -> vector<8x128xf32>
    %c1_173 = arith.constant 1 : index
    %c3_174 = arith.constant 3 : index
    %c0_175 = arith.constant 0 : index
    %c0_176 = arith.constant 0 : index
    %176 = vector.load %arg7[%c1_173, %c3_174, %c0_175, %c0_176] : memref<2x4x8x184xf32, #tpu.memory_space<vmem>>, vector<1x1x8x184xf32>
    %177 = vector.shape_cast %176 : vector<1x1x8x184xf32> to vector<8x184xf32>
    %cst_177 = arith.constant dense<0.000000e+00> : vector<8x128xf32>
    %178 = tpu.matmul %177, %138, %cst_177 {dimension_numbers = #tpu.dot_dimension_numbers<[1], [0], [0], [1], [0, 0, 1, 1], [], []>} : vector<8x184xf32>, vector<184x128xf32>, vector<8x128xf32> -> vector<8x128xf32>
    %179 = arith.maximumf %175, %178 : vector<8x128xf32>
    %c3_178 = arith.constant 3 : index
    %c0_179 = arith.constant 0 : index
    %c0_180 = arith.constant 0 : index
    %180 = vector.load %arg8[%c3_178, %c0_179, %c0_180] : memref<4x128x128xf32, #tpu.memory_space<vmem>>, vector<1x128x128xf32>
    %181 = vector.shape_cast %180 : vector<1x128x128xf32> to vector<128x128xf32>
    %cst_181 = arith.constant dense<0.000000e+00> : vector<8x128xf32>
    %182 = tpu.matmul %179, %181, %cst_181 {dimension_numbers = #tpu.dot_dimension_numbers<[1], [0], [0], [1], [0, 0, 1, 1], [], []>} : vector<8x128xf32>, vector<128x128xf32>, vector<8x128xf32> -> vector<8x128xf32>
    %183 = arith.addf %172, %182 : vector<8x128xf32>
    %c0_182 = arith.constant 0 : index
    %c0_183 = arith.constant 0 : index
    %184 = vector.load %arg9[%c0_182, %c0_183] : memref<1x128xf32, #tpu.memory_space<vmem>>, vector<1x128xf32>
    %185 = vector.broadcast %184 : vector<1x128xf32> to vector<8x128xf32>
    %186 = arith.addf %183, %185 : vector<8x128xf32>
    %cst_184 = arith.constant 0.000000e+00 : f32
    %187 = vector.broadcast %cst_184 : f32 to vector<8x128xf32>
    %188 = arith.maximumf %186, %187 : vector<8x128xf32>
    %c0_185 = arith.constant 0 : index
    %c0_186 = arith.constant 0 : index
    %189 = vector.load %arg10[%c0_185, %c0_186] : memref<128x128xf32, #tpu.memory_space<vmem>>, vector<128x128xf32>
    %cst_187 = arith.constant dense<0.000000e+00> : vector<8x128xf32>
    %190 = tpu.matmul %188, %189, %cst_187 {dimension_numbers = #tpu.dot_dimension_numbers<[1], [0], [0], [1], [0, 0, 1, 1], [], []>} : vector<8x128xf32>, vector<128x128xf32>, vector<8x128xf32> -> vector<8x128xf32>
    %c0_188 = arith.constant 0 : index
    %c0_189 = arith.constant 0 : index
    %191 = vector.load %arg11[%c0_188, %c0_189] : memref<1x128xf32, #tpu.memory_space<vmem>>, vector<1x128xf32>
    %192 = vector.broadcast %191 : vector<1x128xf32> to vector<8x128xf32>
    %193 = arith.addf %190, %192 : vector<8x128xf32>
    %cst_190 = arith.constant 0.000000e+00 : f32
    %194 = vector.broadcast %cst_190 : f32 to vector<8x128xf32>
    %195 = arith.maximumf %193, %194 : vector<8x128xf32>
    %c0_191 = arith.constant 0 : index
    %c0_192 = arith.constant 0 : index
    %196 = vector.load %arg12[%c0_191, %c0_192] : memref<128x128xf32, #tpu.memory_space<vmem>>, vector<128x128xf32>
    %cst_193 = arith.constant dense<0.000000e+00> : vector<8x128xf32>
    %197 = tpu.matmul %195, %196, %cst_193 {dimension_numbers = #tpu.dot_dimension_numbers<[1], [0], [0], [1], [0, 0, 1, 1], [], []>} : vector<8x128xf32>, vector<128x128xf32>, vector<8x128xf32> -> vector<8x128xf32>
    %c0_194 = arith.constant 0 : index
    %c0_195 = arith.constant 0 : index
    %198 = vector.load %arg13[%c0_194, %c0_195] : memref<1x128xf32, #tpu.memory_space<vmem>>, vector<1x128xf32>
    %199 = vector.broadcast %198 : vector<1x128xf32> to vector<8x128xf32>
    %200 = arith.addf %197, %199 : vector<8x128xf32>
    %c0_196 = arith.constant 0 : index
    %c0_197 = arith.constant 0 : index
    %c0_198 = arith.constant 0 : index
    %201 = vector.load %arg14[%c0_196, %c0_197, %c0_198] : memref<1x8x128xf32, #tpu.memory_space<vmem>>, vector<1x8x128xf32>
    %202 = vector.shape_cast %201 : vector<1x8x128xf32> to vector<8x128xf32>
    %203 = vector.shape_cast %200 : vector<8x128xf32> to vector<1x8x128xf32>
    tpu.vector_store %arg14[%c0_196, %c0_197, %c0_198], %203 {strides = array<i32>} : memref<1x8x128xf32, #tpu.memory_space<vmem>>, vector<1x8x128xf32>,
    return
  }
  func.func @transform_0(%arg0: i32) -> (i32, i32, i32) {
    %c0_i32 = arith.constant 0 : i32
    %c0_i32_0 = arith.constant 0 : i32
    %c0_i32_1 = arith.constant 0 : i32
    return %arg0, %c0_i32, %c0_i32_0 : i32, i32, i32
  }
  func.func @transform_1(%arg0: i32) -> (i32, i32, i32, i32) {
    %c0_i32 = arith.constant 0 : i32
    %c0_i32_0 = arith.constant 0 : i32
    %c0_i32_1 = arith.constant 0 : i32
    %c0_i32_2 = arith.constant 0 : i32
    %c0_i32_3 = arith.constant 0 : i32
    return %c0_i32, %c0_i32_0, %c0_i32_1, %c0_i32_2 : i32, i32, i32, i32
  }
  func.func @transform_2(%arg0: i32) -> (i32, i32, i32) {
    %c0_i32 = arith.constant 0 : i32
    %c0_i32_0 = arith.constant 0 : i32
    %c0_i32_1 = arith.constant 0 : i32
    %c0_i32_2 = arith.constant 0 : i32
    return %c0_i32, %c0_i32_0, %c0_i32_1 : i32, i32, i32
  }
  func.func @transform_3(%arg0: i32) -> (i32, i32, i32) {
    %c0_i32 = arith.constant 0 : i32
    %c0_i32_0 = arith.constant 0 : i32
    %c0_i32_1 = arith.constant 0 : i32
    %c0_i32_2 = arith.constant 0 : i32
    return %c0_i32, %c0_i32_0, %c0_i32_1 : i32, i32, i32
  }
  func.func @transform_4(%arg0: i32) -> (i32, i32, i32, i32) {
    %c0_i32 = arith.constant 0 : i32
    %c0_i32_0 = arith.constant 0 : i32
    %c0_i32_1 = arith.constant 0 : i32
    %c0_i32_2 = arith.constant 0 : i32
    %c0_i32_3 = arith.constant 0 : i32
    return %c0_i32, %c0_i32_0, %c0_i32_1, %c0_i32_2 : i32, i32, i32, i32
  }
  func.func @transform_5(%arg0: i32) -> (i32, i32, i32) {
    %c0_i32 = arith.constant 0 : i32
    %c0_i32_0 = arith.constant 0 : i32
    %c0_i32_1 = arith.constant 0 : i32
    %c0_i32_2 = arith.constant 0 : i32
    return %c0_i32, %c0_i32_0, %c0_i32_1 : i32, i32, i32
  }
  func.func @transform_6(%arg0: i32) -> (i32, i32, i32, i32) {
    %c0_i32 = arith.constant 0 : i32
    %c0_i32_0 = arith.constant 0 : i32
    %c0_i32_1 = arith.constant 0 : i32
    %c0_i32_2 = arith.constant 0 : i32
    %c0_i32_3 = arith.constant 0 : i32
    return %c0_i32, %c0_i32_0, %c0_i32_1, %c0_i32_2 : i32, i32, i32, i32
  }
  func.func @transform_7(%arg0: i32) -> (i32, i32, i32) {
    %c0_i32 = arith.constant 0 : i32
    %c0_i32_0 = arith.constant 0 : i32
    %c0_i32_1 = arith.constant 0 : i32
    %c0_i32_2 = arith.constant 0 : i32
    return %c0_i32, %c0_i32_0, %c0_i32_1 : i32, i32, i32
  }
  func.func @transform_8(%arg0: i32) -> (i32, i32) {
    %c0_i32 = arith.constant 0 : i32
    %c0_i32_0 = arith.constant 0 : i32
    %c0_i32_1 = arith.constant 0 : i32
    return %c0_i32, %c0_i32_0 : i32, i32
  }
  func.func @transform_9(%arg0: i32) -> (i32, i32) {
    %c0_i32 = arith.constant 0 : i32
    %c0_i32_0 = arith.constant 0 : i32
    %c0_i32_1 = arith.constant 0 : i32
    return %c0_i32, %c0_i32_0 : i32, i32
  }
  func.func @transform_10(%arg0: i32) -> (i32, i32) {
    %c0_i32 = arith.constant 0 : i32
    %c0_i32_0 = arith.constant 0 : i32
    %c0_i32_1 = arith.constant 0 : i32
    return %c0_i32, %c0_i32_0 : i32, i32
  }
  func.func @transform_11(%arg0: i32) -> (i32, i32) {
    %c0_i32 = arith.constant 0 : i32
    %c0_i32_0 = arith.constant 0 : i32
    %c0_i32_1 = arith.constant 0 : i32
    return %c0_i32, %c0_i32_0 : i32, i32
  }
  func.func @transform_12(%arg0: i32) -> (i32, i32) {
    %c0_i32 = arith.constant 0 : i32
    %c0_i32_0 = arith.constant 0 : i32
    %c0_i32_1 = arith.constant 0 : i32
    return %c0_i32, %c0_i32_0 : i32, i32
  }
  func.func @transform_13(%arg0: i32) -> (i32, i32, i32) {
    %c0_i32 = arith.constant 0 : i32
    %c0_i32_0 = arith.constant 0 : i32
    %c0_i32_1 = arith.constant 0 : i32
    return %arg0, %c0_i32, %c0_i32_0 : i32, i32, i32
  }
}

</mosaic_0001>

<llo_original>
// kernel: tpu_custom_call.1
$region0: #{tpu_custom_call.1}
  #allocation0 [shape = 'u32[]', space=smem, size = 0x4, offset = 0x4, fixed_abs, tag = 'smem constant byte address 0x4 - core index']
  #allocation1 [shape = 'u32[72,128]{1,0:T(1,128)}', space=vmem, size = 0x9000, scoped, tag = 'internal scratch']
  %s0 = inlined_call_operand.hbm [shape: f32[1,320,128], index: 0, kind: input, shape index: {}]
  %s1 = inlined_call_operand.hbm [shape: f32[2,5,128,128], index: 1, kind: input, shape index: {}]
  %s2 = inlined_call_operand.hbm [shape: f32[2,1,128], index: 2, kind: input, shape index: {}]
  %s3 = inlined_call_operand.hbm [shape: f32[2,192,312], index: 3, kind: input, shape index: {}]
  %s4 = inlined_call_operand.hbm [shape: f32[2,5,128,128], index: 4, kind: input, shape index: {}]
  %s5 = inlined_call_operand.vmem [shape: f32[2,1,128], index: 5, kind: input, shape index: {}]
  %s6 = inlined_call_operand.hbm [shape: f32[2,4,8,184], index: 6, kind: input, shape index: {}]
  %s7 = inlined_call_operand.hbm [shape: f32[4,128,128], index: 7, kind: input, shape index: {}]
  %s8 = inlined_call_operand.vmem [shape: f32[1,128], index: 8, kind: input, shape index: {}]
  %s9 = inlined_call_operand.hbm [shape: f32[128,128], index: 9, kind: input, shape index: {}]
  %s10 = inlined_call_operand.vmem [shape: f32[1,128], index: 10, kind: input, shape index: {}]
  %s11 = inlined_call_operand.hbm [shape: f32[128,128], index: 11, kind: input, shape index: {}]
  %s12 = inlined_call_operand.vmem [shape: f32[1,128], index: 12, kind: input, shape index: {}]
  %s13 = inlined_call_operand.hbm [shape: f32[1,8,128], index: 13, kind: output, shape index: {}]
  %s14 = sld [smem:[#allocation0]]
  $region98: #{tpu_custom_call.1} parent=0
    _
  %s16 = ssub.s32 1, %s14
  %s17 = scalar_select 0, %s16, %s14
  $region1: #{tpu_custom_call.1} parent=0
    #allocation2 [shape = 'u8[163840]{0}', space=vmem, size = 0x28000, scoped, tag = 'input window, operand 0, single buffered']
    #allocation3 [shape = 's32[1]{0}', space=sflag, size = 0x4, scoped, tag = 'scoped memory for tpu_custom_call.1']
    #allocation4 [shape = 's32[1]{0}', space=sflag, size = 0x4, scoped, tag = 'scoped memory for tpu_custom_call.1']
    #allocation5 [shape = 'u8[655360]{0}', space=vmem, size = 0xa0000, scoped, tag = 'input window, operand 1, single buffered']
    #allocation6 [shape = 's32[1]{0}', space=sflag, size = 0x4, scoped, tag = 'scoped memory for tpu_custom_call.1']
    #allocation7 [shape = 'u8[1024]{0}', space=vmem, size = 0x400, scoped, tag = 'input window, operand 2, single buffered']
    #allocation8 [shape = 'u8[589824]{0}', space=vmem, size = 0x90000, scoped, tag = 'input window, operand 3, single buffered']
    #allocation9 [shape = 's32[1]{0}', space=sflag, size = 0x4, scoped, tag = 'scoped memory for tpu_custom_call.1']
    #allocation10 [shape = 'u8[655360]{0}', space=vmem, size = 0xa0000, scoped, tag = 'input window, operand 4, single buffered']
    #allocation11 [shape = 'u8[65536]{0}', space=vmem, size = 0x10000, scoped, tag = 'input window, operand 6, single buffered']
    #allocation12 [shape = 's32[1]{0}', space=sflag, size = 0x4, scoped, tag = 'scoped memory for tpu_custom_call.1']
    #allocation13 [shape = 'u8[262144]{0}', space=vmem, size = 0x40000, scoped, tag = 'input window, operand 7, single buffered']
    #allocation14 [shape = 'u8[65536]{0}', space=vmem, size = 0x10000, scoped, tag = 'input window, operand 9, single buffered']
    #allocation15 [shape = 's32[1]{0}', space=sflag, size = 0x4, scoped, tag = 'scoped memory for tpu_custom_call.1']
    #allocation16 [shape = 'u8[65536]{0}', space=vmem, size = 0x10000, scoped, tag = 'input window, operand 11, single buffered']
    #allocation17 [shape = 'u8[4096]{0}', space=vmem, size = 0x1000, scoped, tag = 'output window, operand 0, single buffered']
    %18 = vsyncpa [#allocation3], 0
    %19 = vsyncpa [#allocation6], 0
    %20 = vsyncpa [#allocation9], 0
    %21 = vsyncpa [#allocation12], 0
    %22 = vsyncpa [#allocation15], 0
    %23 = vsyncpa [#allocation4], 0
    // Predicated region
    $region2: #{tpu_custom_call.1} parent=1 // pred_check
      _
    $region3: #{tpu_custom_call.1} parent=1 // pred_check_branch
      %25 = sbr.rel (0) target = $region5
    $region4: #{tpu_custom_call.1} parent=1 // pred_region
      %27 = vsyncadd [#allocation3], 0
      %s28 = sshll.u32 %s0, 4
      %s29 = int_to_ptr.hbm [resolvable:$true] %s28
      %s30 = sshll.u32 [#allocation2], 4
      %s31 = int_to_ptr.vmem [resolvable:$true] %s30
      %36 = dma.hbm_to_vmem [thread:$0]  %s29, 5120, %s31, [#allocation3], 128, 128, 8
    $region5: #{tpu_custom_call.1} parent=1 // pred_fallthru
      _
    // Predicated region
    $region6: #{tpu_custom_call.1} parent=1 // pred_check
      _
    $region7: #{tpu_custom_call.1} parent=1 // pred_check_branch
      %38 = sbr.rel (0) target = $region9
    $region8: #{tpu_custom_call.1} parent=1 // pred_region
      %40 = vsyncadd [#allocation6], 0
      %s41 = sshll.u32 %s1, 4
      %s42 = int_to_ptr.hbm [resolvable:$true] %s41
      %s43 = sshll.u32 [#allocation5], 4
      %s44 = int_to_ptr.vmem [resolvable:$true] %s43
      %49 = dma.hbm_to_vmem [thread:$0]  %s42, 20480, %s44, [#allocation6], 128, 128, 8
    $region9: #{tpu_custom_call.1} parent=1 // pred_fallthru
      _
    // Predicated region
    $region10: #{tpu_custom_call.1} parent=1 // pred_check
      _
    $region11: #{tpu_custom_call.1} parent=1 // pred_check_branch
      %51 = sbr.rel (0) target = $region13
    $region12: #{tpu_custom_call.1} parent=1 // pred_region
      %53 = vsyncadd [#allocation6], 0
      %s54 = sshll.u32 %s2, 4
      %s55 = int_to_ptr.hbm [resolvable:$true] %s54
      %s56 = sshll.u32 [#allocation7], 4
      %s57 = int_to_ptr.vmem [resolvable:$true] %s56
      %62 = dma.hbm_to_vmem [thread:$0]  %s55, 32, %s57, [#allocation6], 16, 16, 1
    $region13: #{tpu_custom_call.1} parent=1 // pred_fallthru
      _
    // Predicated region
    $region14: #{tpu_custom_call.1} parent=1 // pred_check
      _
    $region15: #{tpu_custom_call.1} parent=1 // pred_check_branch
      %64 = sbr.rel (0) target = $region17
    $region16: #{tpu_custom_call.1} parent=1 // pred_region
      %66 = vsyncadd [#allocation9], 0
      %s67 = sshll.u32 %s3, 4
      %s68 = int_to_ptr.hbm [resolvable:$true] %s67
      %s69 = sshll.u32 [#allocation8], 4
      %s70 = int_to_ptr.vmem [resolvable:$true] %s69
      %75 = dma.hbm_to_vmem [thread:$0]  %s68, 18432, %s70, [#allocation9], 384, 384, 24
    $region17: #{tpu_custom_call.1} parent=1 // pred_fallthru
      _
    // Predicated region
    $region18: #{tpu_custom_call.1} parent=1 // pred_check
      _
    $region19: #{tpu_custom_call.1} parent=1 // pred_check_branch
      %77 = sbr.rel (0) target = $region21
    $region20: #{tpu_custom_call.1} parent=1 // pred_region
      %79 = vsyncadd [#allocation9], 0
      %s80 = sshll.u32 %s4, 4
      %s81 = int_to_ptr.hbm [resolvable:$true] %s80
      %s82 = sshll.u32 [#allocation10], 4
      %s83 = int_to_ptr.vmem [resolvable:$true] %s82
      %88 = dma.hbm_to_vmem [thread:$0]  %s81, 20480, %s83, [#allocation9], 128, 128, 8
    $region21: #{tpu_custom_call.1} parent=1 // pred_fallthru
      _
    // Predicated region
    $region22: #{tpu_custom_call.1} parent=1 // pred_check
      _
    $region23: #{tpu_custom_call.1} parent=1 // pred_check_branch
      %90 = sbr.rel (0) target = $region25
    $region24: #{tpu_custom_call.1} parent=1 // pred_region
      _
    $region25: #{tpu_custom_call.1} parent=1 // pred_fallthru
      _
    // Predicated region
    $region26: #{tpu_custom_call.1} parent=1 // pred_check
      _
    $region27: #{tpu_custom_call.1} parent=1 // pred_check_branch
      %92 = sbr.rel (0) target = $region29
    $region28: #{tpu_custom_call.1} parent=1 // pred_region
      %94 = vsyncadd [#allocation12], 0
      %s95 = sshll.u32 %s6, 4
      %s96 = int_to_ptr.hbm [resolvable:$true] %s95
      %s97 = sshll.u32 [#allocation11], 4
      %s98 = int_to_ptr.vmem [resolvable:$true] %s97
      %103 = dma.hbm_to_vmem [thread:$0]  %s96, 2048, %s98, [#allocation12], 256, 256, 16
    $region29: #{tpu_custom_call.1} parent=1 // pred_fallthru
      _
    // Predicated region
    $region30: #{tpu_custom_call.1} parent=1 // pred_check
      _
    $region31: #{tpu_custom_call.1} parent=1 // pred_check_branch
      %105 = sbr.rel (0) target = $region33
    $region32: #{tpu_custom_call.1} parent=1 // pred_region
      %107 = vsyncadd [#allocation12], 0
      %s108 = sshll.u32 %s7, 4
      %s109 = int_to_ptr.hbm [resolvable:$true] %s108
      %s110 = sshll.u32 [#allocation13], 4
      %s111 = int_to_ptr.vmem [resolvable:$true] %s110
      %116 = dma.hbm_to_vmem [thread:$0]  %s109, 8192, %s111, [#allocation12], 128, 128, 8
    $region33: #{tpu_custom_call.1} parent=1 // pred_fallthru
      _
    // Predicated region
    $region34: #{tpu_custom_call.1} parent=1 // pred_check
      _
    $region35: #{tpu_custom_call.1} parent=1 // pred_check_branch
      %118 = sbr.rel (0) target = $region37
    $region36: #{tpu_custom_call.1} parent=1 // pred_region
      _
    $region37: #{tpu_custom_call.1} parent=1 // pred_fallthru
      _
    // Predicated region
    $region38: #{tpu_custom_call.1} parent=1 // pred_check
      _
    $region39: #{tpu_custom_call.1} parent=1 // pred_check_branch
      %120 = sbr.rel (0) target = $region41
    $region40: #{tpu_custom_call.1} parent=1 // pred_region
      %122 = vsyncadd [#allocation15], 0
      %s123 = sshll.u32 %s9, 4
      %s124 = int_to_ptr.hbm [resolvable:$true] %s123
      %s125 = sshll.u32 [#allocation14], 4
      %s126 = int_to_ptr.vmem [resolvable:$true] %s125
      %131 = dma.hbm_to_vmem [thread:$0]  %s124, 2048, %s126, [#allocation15], 128, 128, 8
    $region41: #{tpu_custom_call.1} parent=1 // pred_fallthru
      _
    // Predicated region
    $region42: #{tpu_custom_call.1} parent=1 // pred_check
      _
    $region43: #{tpu_custom_call.1} parent=1 // pred_check_branch
      %133 = sbr.rel (0) target = $region45
    $region44: #{tpu_custom_call.1} parent=1 // pred_region
      _
    $region45: #{tpu_custom_call.1} parent=1 // pred_fallthru
      _
    // Predicated region
    $region46: #{tpu_custom_call.1} parent=1 // pred_check
      _
    $region47: #{tpu_custom_call.1} parent=1 // pred_check_branch
      %135 = sbr.rel (0) target = $region49
    $region48: #{tpu_custom_call.1} parent=1 // pred_region
      %137 = vsyncadd [#allocation15], 0
      %s138 = sshll.u32 %s11, 4
      %s139 = int_to_ptr.hbm [resolvable:$true] %s138
      %s140 = sshll.u32 [#allocation16], 4
      %s141 = int_to_ptr.vmem [resolvable:$true] %s140
      %146 = dma.hbm_to_vmem [thread:$0]  %s139, 2048, %s141, [#allocation15], 128, 128, 8
    $region49: #{tpu_custom_call.1} parent=1 // pred_fallthru
      _
    // Predicated region
    $region50: #{tpu_custom_call.1} parent=1 // pred_check
      _
    $region51: #{tpu_custom_call.1} parent=1 // pred_check_branch
      %148 = sbr.rel (0) target = $region53
    $region52: #{tpu_custom_call.1} parent=1 // pred_region
      _
    $region53: #{tpu_custom_call.1} parent=1 // pred_fallthru
      _
    // Predicated region
    $region54: #{tpu_custom_call.1} parent=1 // pred_check
      _
    $region55: #{tpu_custom_call.1} parent=1 // pred_check_branch
      %150 = sbr.rel (0) target = $region57
    $region56: #{tpu_custom_call.1} parent=1 // pred_region
      %152 = dma.done [#allocation3], 5120
    $region57: #{tpu_custom_call.1} parent=1 // pred_fallthru
      _
    // Predicated region
    $region58: #{tpu_custom_call.1} parent=1 // pred_check
      _
    $region59: #{tpu_custom_call.1} parent=1 // pred_check_branch
      %154 = sbr.rel (0) target = $region61
    $region60: #{tpu_custom_call.1} parent=1 // pred_region
      %156 = dma.done [#allocation6], 20480
    $region61: #{tpu_custom_call.1} parent=1 // pred_fallthru
      _
    // Predicated region
    $region62: #{tpu_custom_call.1} parent=1 // pred_check
      _
    $region63: #{tpu_custom_call.1} parent=1 // pred_check_branch
      %158 = sbr.rel (0) target = $region65
    $region64: #{tpu_custom_call.1} parent=1 // pred_region
      %160 = dma.done [#allocation6], 32
    $region65: #{tpu_custom_call.1} parent=1 // pred_fallthru
      _
    // Predicated region
    $region66: #{tpu_custom_call.1} parent=1 // pred_check
      _
    $region67: #{tpu_custom_call.1} parent=1 // pred_check_branch
      %162 = sbr.rel (0) target = $region69
    $region68: #{tpu_custom_call.1} parent=1 // pred_region
      %164 = dma.done [#allocation9], 18432
    $region69: #{tpu_custom_call.1} parent=1 // pred_fallthru
      _
    // Predicated region
    $region70: #{tpu_custom_call.1} parent=1 // pred_check
      _
    $region71: #{tpu_custom_call.1} parent=1 // pred_check_branch
      %166 = sbr.rel (0) target = $region73
    $region72: #{tpu_custom_call.1} parent=1 // pred_region
      %168 = dma.done [#allocation9], 20480
    $region73: #{tpu_custom_call.1} parent=1 // pred_fallthru
      _
    // Predicated region
    $region74: #{tpu_custom_call.1} parent=1 // pred_check
      _
    $region75: #{tpu_custom_call.1} parent=1 // pred_check_branch
      %170 = sbr.rel (0) target = $region77
    $region76: #{tpu_custom_call.1} parent=1 // pred_region
      %172 = dma.done [#allocation12], 2048
    $region77: #{tpu_custom_call.1} parent=1 // pred_fallthru
      _
    // Predicated region
    $region78: #{tpu_custom_call.1} parent=1 // pred_check
      _
    $region79: #{tpu_custom_call.1} parent=1 // pred_check_branch
      %174 = sbr.rel (0) target = $region81
    $region80: #{tpu_custom_call.1} parent=1 // pred_region
      %176 = dma.done [#allocation12], 8192
    $region81: #{tpu_custom_call.1} parent=1 // pred_fallthru
      _
    // Predicated region
    $region82: #{tpu_custom_call.1} parent=1 // pred_check
      _
    $region83: #{tpu_custom_call.1} parent=1 // pred_check_branch
      %178 = sbr.rel (0) target = $region85
    $region84: #{tpu_custom_call.1} parent=1 // pred_region
      %180 = dma.done [#allocation15], 2048
    $region85: #{tpu_custom_call.1} parent=1 // pred_fallthru
      _
    // Predicated region
    $region86: #{tpu_custom_call.1} parent=1 // pred_check
      _
    $region87: #{tpu_custom_call.1} parent=1 // pred_check_branch
      %182 = sbr.rel (0) target = $region89
    $region88: #{tpu_custom_call.1} parent=1 // pred_region
      %184 = dma.done [#allocation15], 2048
    $region89: #{tpu_custom_call.1} parent=1 // pred_fallthru
      _
    %v185 = vld [vmem:[#allocation2] sm:$0xff]
    %v186 = vld [vmem:[#allocation2 + $0x8] sm:$0xff]
    %v187 = vld [vmem:[#allocation2 + $0x10] sm:$0xff]
    %v188 = vld [vmem:[#allocation2 + $0x18] sm:$0xff]
    %v189 = vld [vmem:[#allocation2 + $0x20] sm:$0xff]
    %v190 = vld [vmem:[#allocation2 + $0x28] sm:$0xff]
    %v191 = vld [vmem:[#allocation2 + $0x30] sm:$0xff]
    %v192 = vld [vmem:[#allocation2 + $0x38] sm:$0xff]
    %v193 = vld [vmem:[#allocation2 + $0x40] sm:$0xff]
    %v194 = vld [vmem:[#allocation2 + $0x48] sm:$0xff]
    %v195 = vld [vmem:[#allocation2 + $0x50] sm:$0xff]
    %v196 = vld [vmem:[#allocation2 + $0x58] sm:$0xff]
    %v197 = vld [vmem:[#allocation2 + $0x60] sm:$0xff]
    %v198 = vld [vmem:[#allocation2 + $0x68] sm:$0xff]
    %v199 = vld [vmem:[#allocation2 + $0x70] sm:$0xff]
    %v200 = vld [vmem:[#allocation2 + $0x78] sm:$0xff]
    %v201 = vld [vmem:[#allocation2 + $0x80] sm:$0xff]
    %v202 = vld [vmem:[#allocation2 + $0x88] sm:$0xff]
    %v203 = vld [vmem:[#allocation2 + $0x90] sm:$0xff]
    %v204 = vld [vmem:[#allocation2 + $0x98] sm:$0xff]
    %v205 = vld [vmem:[#allocation2 + $0xa0] sm:$0xff]
    %v206 = vld [vmem:[#allocation2 + $0xa8] sm:$0xff]
    %v207 = vld [vmem:[#allocation2 + $0xb0] sm:$0xff]
    %v208 = vld [vmem:[#allocation2 + $0xb8] sm:$0xff]
    %v209 = vld [vmem:[#allocation2 + $0xc0] sm:$0xff]
    %v210 = vld [vmem:[#allocation2 + $0xc8] sm:$0xff]
    %v211 = vld [vmem:[#allocation2 + $0xd0] sm:$0xff]
    %v212 = vld [vmem:[#allocation2 + $0xd8] sm:$0xff]
    %v213 = vld [vmem:[#allocation2 + $0xe0] sm:$0xff]
    %v214 = vld [vmem:[#allocation2 + $0xe8] sm:$0xff]
    %v215 = vld [vmem:[#allocation2 + $0xf0] sm:$0xff]
    %v216 = vld [vmem:[#allocation2 + $0xf8] sm:$0xff]
    %v217 = vld [vmem:[#allocation2 + $0x100] sm:$0xff]
    %v218 = vld [vmem:[#allocation2 + $0x108] sm:$0xff]
    %v219 = vld [vmem:[#allocation2 + $0x110] sm:$0xff]
    %v220 = vld [vmem:[#allocation2 + $0x118] sm:$0xff]
    %v221 = vld [vmem:[#allocation2 + $0x120] sm:$0xff]
    %v222 = vld [vmem:[#allocation2 + $0x128] sm:$0xff]
    %v223 = vld [vmem:[#allocation2 + $0x130] sm:$0xff]
    %v224 = vld [vmem:[#allocation2 + $0x138] sm:$0xff]
    %v225 = vld [vmem:[#allocation5] sm:$0xff]
    %v226 = vld [vmem:[#allocation5 + $0x8] sm:$0xff]
    %v227 = vld [vmem:[#allocation5 + $0x10] sm:$0xff]
    %v228 = vld [vmem:[#allocation5 + $0x18] sm:$0xff]
    %v229 = vld [vmem:[#allocation5 + $0x20] sm:$0xff]
    %v230 = vld [vmem:[#allocation5 + $0x28] sm:$0xff]
    %v231 = vld [vmem:[#allocation5 + $0x30] sm:$0xff]
    %v232 = vld [vmem:[#allocation5 + $0x38] sm:$0xff]
    %v233 = vld [vmem:[#allocation5 + $0x40] sm:$0xff]
    %v234 = vld [vmem:[#allocation5 + $0x48] sm:$0xff]
    %v235 = vld [vmem:[#allocation5 + $0x50] sm:$0xff]
    %v236 = vld [vmem:[#allocation5 + $0x58] sm:$0xff]
    %v237 = vld [vmem:[#allocation5 + $0x60] sm:$0xff]
    %v238 = vld [vmem:[#allocation5 + $0x68] sm:$0xff]
    %v239 = vld [vmem:[#allocation5 + $0x70] sm:$0xff]
    %v240 = vld [vmem:[#allocation5 + $0x78] sm:$0xff]
    %s241 = scalar_lea.vmem [#allocation5], 128
    %v242 = vld [vmem:[%s241] sm:$0xff]
    %v243 = vld [vmem:[%s241 + $0x8] sm:$0xff]
    %v244 = vld [vmem:[%s241 + $0x10] sm:$0xff]
    %v245 = vld [vmem:[%s241 + $0x18] sm:$0xff]
    %v246 = vld [vmem:[%s241 + $0x20] sm:$0xff]
    %v247 = vld [vmem:[%s241 + $0x28] sm:$0xff]
    %v248 = vld [vmem:[%s241 + $0x30] sm:$0xff]
    %v249 = vld [vmem:[%s241 + $0x38] sm:$0xff]
    %v250 = vld [vmem:[%s241 + $0x40] sm:$0xff]
    %v251 = vld [vmem:[%s241 + $0x48] sm:$0xff]
    %v252 = vld [vmem:[%s241 + $0x50] sm:$0xff]
    %v253 = vld [vmem:[%s241 + $0x58] sm:$0xff]
    %v254 = vld [vmem:[%s241 + $0x60] sm:$0xff]
    %v255 = vld [vmem:[%s241 + $0x68] sm:$0xff]
    %v256 = vld [vmem:[%s241 + $0x70] sm:$0xff]
    %v257 = vld [vmem:[%s241 + $0x78] sm:$0xff]
    %vm298 = vcmask 1046528
    %v299 = vrot.slane %v185, 1
    %v300 = vrot.slane %v186, 1
    %v301 = vsel %vm298, %v299, %v300
    %v302 = vrot.slane %v187, 1
    %v303 = vsel %vm298, %v300, %v302
    %v304 = vrot.slane %v188, 1
    %v305 = vsel %vm298, %v302, %v304
    %v306 = vrot.slane %v189, 1
    %v307 = vsel %vm298, %v304, %v306
    %v308 = vrot.slane %v190, 1
    %v309 = vsel %vm298, %v306, %v308
    %v310 = vrot.slane %v191, 1
    %v311 = vsel %vm298, %v308, %v310
    %v312 = vrot.slane %v192, 1
    %v313 = vsel %vm298, %v310, %v312
    %v314 = vrot.slane %v193, 1
    %v315 = vsel %vm298, %v312, %v314
    %v316 = vrot.slane %v194, 1
    %v317 = vsel %vm298, %v314, %v316
    %v318 = vrot.slane %v195, 1
    %v319 = vsel %vm298, %v316, %v318
    %v320 = vrot.slane %v196, 1
    %v321 = vsel %vm298, %v318, %v320
    %v322 = vrot.slane %v197, 1
    %v323 = vsel %vm298, %v320, %v322
    %v324 = vrot.slane %v198, 1
    %v325 = vsel %vm298, %v322, %v324
    %v326 = vrot.slane %v199, 1
    %v327 = vsel %vm298, %v324, %v326
    %v328 = vrot.slane %v200, 1
    %v329 = vsel %vm298, %v326, %v328
    %v330 = vrot.slane %v201, 1
    %v331 = vsel %vm298, %v328, %v330
    %v332 = vrot.slane %v202, 1
    %v333 = vsel %vm298, %v330, %v332
    %v334 = vrot.slane %v203, 1
    %v335 = vsel %vm298, %v332, %v334
    %v336 = vrot.slane %v204, 1
    %v337 = vsel %vm298, %v334, %v336
    %v338 = vrot.slane %v205, 1
    %v339 = vsel %vm298, %v336, %v338
    %v340 = vrot.slane %v206, 1
    %v341 = vsel %vm298, %v338, %v340
    %v342 = vrot.slane %v207, 1
    %v343 = vsel %vm298, %v340, %v342
    %v344 = vrot.slane %v208, 1
    %v345 = vsel %vm298, %v342, %v344
    %v346 = vrot.slane %v209, 1
    %v347 = vsel %vm298, %v344, %v346
    %v348 = vrot.slane %v210, 1
    %v349 = vsel %vm298, %v346, %v348
    %v350 = vrot.slane %v211, 1
    %v351 = vsel %vm298, %v348, %v350
    %v352 = vrot.slane %v212, 1
    %v353 = vsel %vm298, %v350, %v352
    %v354 = vrot.slane %v213, 1
    %v355 = vsel %vm298, %v352, %v354
    %v356 = vrot.slane %v214, 1
    %v357 = vsel %vm298, %v354, %v356
    %v358 = vrot.slane %v215, 1
    %v359 = vsel %vm298, %v356, %v358
    %v360 = vrot.slane %v216, 1
    %v361 = vsel %vm298, %v358, %v360
    %v362 = vrot.slane %v217, 1
    %v363 = vsel %vm298, %v360, %v362
    %v364 = vrot.slane %v218, 1
    %v365 = vsel %vm298, %v362, %v364
    %v366 = vrot.slane %v219, 1
    %v367 = vsel %vm298, %v364, %v366
    %v368 = vrot.slane %v220, 1
    %v369 = vsel %vm298, %v366, %v368
    %v370 = vrot.slane %v221, 1
    %v371 = vsel %vm298, %v368, %v370
    %v372 = vrot.slane %v222, 1
    %v373 = vsel %vm298, %v370, %v372
    %v374 = vrot.slane %v223, 1
    %v375 = vsel %vm298, %v372, %v374
    %v376 = vrot.slane %v224, 1
    %v377 = vsel %vm298, %v374, %v376
    %417 = vmatpush.msra.mxu0 %v257
    %418 = vmatpush.msra.mxu0 %v256
    %419 = vmatpush.msra.mxu0 %v255
    %420 = vmatpush.msra.mxu0 %v254
    %421 = vmatpush.msra.mxu0 %v253
    %422 = vmatpush.msra.mxu0 %v252
    %423 = vmatpush.msra.mxu0 %v251
    %424 = vmatpush.msra.mxu0 %v250
    %425 = vmatpush.msra.mxu0 %v249
    %426 = vmatpush.msra.mxu0 %v248
    %427 = vmatpush.msra.mxu0 %v247
    %428 = vmatpush.msra.mxu0 %v246
    %429 = vmatpush.msra.mxu0 %v245
    %430 = vmatpush.msra.mxu0 %v244
    %431 = vmatpush.msra.mxu0 %v243
    %432 = vmatpush.msra.mxu0 %v242
    %433 = vmatmul.f32.gmra.mxu0 %v301
    %v434 = vpop.f32.mrf.mxu0
    %v435 = vadd.f32 0.0, %v434
    %436 = vmatmul.f32.gmra.mxu0 %v303
    %v437 = vpop.f32.mrf.mxu0
    %v438 = vadd.f32 0.0, %v437
    %439 = vmatmul.f32.gmra.mxu0 %v305
    %v440 = vpop.f32.mrf.mxu0
    %v441 = vadd.f32 0.0, %v440
    %442 = vmatmul.f32.gmra.mxu0 %v307
    %v443 = vpop.f32.mrf.mxu0
    %v444 = vadd.f32 0.0, %v443
    %445 = vmatmul.f32.gmra.mxu0 %v309
    %v446 = vpop.f32.mrf.mxu0
    %v447 = vadd.f32 0.0, %v446
    %448 = vmatmul.f32.gmra.mxu0 %v311
    %v449 = vpop.f32.mrf.mxu0
    %v450 = vadd.f32 0.0, %v449
    %451 = vmatmul.f32.gmra.mxu0 %v313
    %v452 = vpop.f32.mrf.mxu0
    %v453 = vadd.f32 0.0, %v452
    %454 = vmatmul.f32.gmra.mxu0 %v315
    %v455 = vpop.f32.mrf.mxu0
    %v456 = vadd.f32 0.0, %v455
    %457 = vmatmul.f32.gmra.mxu0 %v317
    %v458 = vpop.f32.mrf.mxu0
    %v459 = vadd.f32 0.0, %v458
    %460 = vmatmul.f32.gmra.mxu0 %v319
    %v461 = vpop.f32.mrf.mxu0
    %v462 = vadd.f32 0.0, %v461
    %463 = vmatmul.f32.gmra.mxu0 %v321
    %v464 = vpop.f32.mrf.mxu0
    %v465 = vadd.f32 0.0, %v464
    %466 = vmatmul.f32.gmra.mxu0 %v323
    %v467 = vpop.f32.mrf.mxu0
    %v468 = vadd.f32 0.0, %v467
    %469 = vmatmul.f32.gmra.mxu0 %v325
    %v470 = vpop.f32.mrf.mxu0
    %v471 = vadd.f32 0.0, %v470
    %472 = vmatmul.f32.gmra.mxu0 %v327
    %v473 = vpop.f32.mrf.mxu0
    %v474 = vadd.f32 0.0, %v473
    %475 = vmatmul.f32.gmra.mxu0 %v329
    %v476 = vpop.f32.mrf.mxu0
    %v477 = vadd.f32 0.0, %v476
    %478 = vmatmul.f32.gmra.mxu0 %v331
    %v479 = vpop.f32.mrf.mxu0
    %v480 = vadd.f32 0.0, %v479
    %481 = vmatmul.f32.gmra.mxu0 %v333
    %v482 = vpop.f32.mrf.mxu0
    %v483 = vadd.f32 0.0, %v482
    %484 = vmatmul.f32.gmra.mxu0 %v335
    %v485 = vpop.f32.mrf.mxu0
    %v486 = vadd.f32 0.0, %v485
    %487 = vmatmul.f32.gmra.mxu0 %v337
    %v488 = vpop.f32.mrf.mxu0
    %v489 = vadd.f32 0.0, %v488
    %490 = vmatmul.f32.gmra.mxu0 %v339
    %v491 = vpop.f32.mrf.mxu0
    %v492 = vadd.f32 0.0, %v491
    %493 = vmatmul.f32.gmra.mxu0 %v341
    %v494 = vpop.f32.mrf.mxu0
    %v495 = vadd.f32 0.0, %v494
    %496 = vmatmul.f32.gmra.mxu0 %v343
    %v497 = vpop.f32.mrf.mxu0
    %v498 = vadd.f32 0.0, %v497
    %499 = vmatmul.f32.gmra.mxu0 %v345
    %v500 = vpop.f32.mrf.mxu0
    %v501 = vadd.f32 0.0, %v500
    %502 = vmatmul.f32.gmra.mxu0 %v347
    %v503 = vpop.f32.mrf.mxu0
    %v504 = vadd.f32 0.0, %v503
    %505 = vmatmul.f32.gmra.mxu0 %v349
    %v506 = vpop.f32.mrf.mxu0
    %v507 = vadd.f32 0.0, %v506
    %508 = vmatmul.f32.gmra.mxu0 %v351
    %v509 = vpop.f32.mrf.mxu0
    %v510 = vadd.f32 0.0, %v509
    %511 = vmatmul.f32.gmra.mxu0 %v353
    %v512 = vpop.f32.mrf.mxu0
    %v513 = vadd.f32 0.0, %v512
    %514 = vmatmul.f32.gmra.mxu0 %v355
    %v515 = vpop.f32.mrf.mxu0
    %v516 = vadd.f32 0.0, %v515
    %517 = vmatmul.f32.gmra.mxu0 %v357
    %v518 = vpop.f32.mrf.mxu0
    %v519 = vadd.f32 0.0, %v518
    %520 = vmatmul.f32.gmra.mxu0 %v359
    %v521 = vpop.f32.mrf.mxu0
    %v522 = vadd.f32 0.0, %v521
    %523 = vmatmul.f32.gmra.mxu0 %v361
    %v524 = vpop.f32.mrf.mxu0
    %v525 = vadd.f32 0.0, %v524
    %526 = vmatmul.f32.gmra.mxu0 %v363
    %v527 = vpop.f32.mrf.mxu0
    %v528 = vadd.f32 0.0, %v527
    %529 = vmatmul.f32.gmra.mxu0 %v365
    %v530 = vpop.f32.mrf.mxu0
    %v531 = vadd.f32 0.0, %v530
    %532 = vmatmul.f32.gmra.mxu0 %v367
    %v533 = vpop.f32.mrf.mxu0
    %v534 = vadd.f32 0.0, %v533
    %535 = vmatmul.f32.gmra.mxu0 %v369
    %v536 = vpop.f32.mrf.mxu0
    %v537 = vadd.f32 0.0, %v536
    %538 = vmatmul.f32.gmra.mxu0 %v371
    %v539 = vpop.f32.mrf.mxu0
    %v540 = vadd.f32 0.0, %v539
    %541 = vmatmul.f32.gmra.mxu0 %v373
    %v542 = vpop.f32.mrf.mxu0
    %v543 = vadd.f32 0.0, %v542
    %544 = vmatmul.f32.gmra.mxu0 %v375
    %v545 = vpop.f32.mrf.mxu0
    %v546 = vadd.f32 0.0, %v545
    %547 = vmatmul.f32.gmra.mxu0 %v377
    %v548 = vpop.f32.mrf.mxu0
    %v549 = vadd.f32 0.0, %v548
    %550 = vdwg.mxu0
    %551 = vmatpush.msra.mxu0 %v240
    %552 = vmatpush.msra.mxu0 %v239
    %553 = vmatpush.msra.mxu0 %v238
    %554 = vmatpush.msra.mxu0 %v237
    %555 = vmatpush.msra.mxu0 %v236
    %556 = vmatpush.msra.mxu0 %v235
    %557 = vmatpush.msra.mxu0 %v234
    %558 = vmatpush.msra.mxu0 %v233
    %559 = vmatpush.msra.mxu0 %v232
    %560 = vmatpush.msra.mxu0 %v231
    %561 = vmatpush.msra.mxu0 %v230
    %562 = vmatpush.msra.mxu0 %v229
    %563 = vmatpush.msra.mxu0 %v228
    %564 = vmatpush.msra.mxu0 %v227
    %565 = vmatpush.msra.mxu0 %v226
    %566 = vmatpush.msra.mxu0 %v225
    %567 = vmatmul.f32.gmra.mxu0 %v185
    %v568 = vpop.f32.mrf.mxu0
    %v569 = vadd.f32 %v435, %v568
    %570 = vmatmul.f32.gmra.mxu0 %v186
    %v571 = vpop.f32.mrf.mxu0
    %v572 = vadd.f32 %v438, %v571
    %573 = vmatmul.f32.gmra.mxu0 %v187
    %v574 = vpop.f32.mrf.mxu0
    %v575 = vadd.f32 %v441, %v574
    %576 = vmatmul.f32.gmra.mxu0 %v188
    %v577 = vpop.f32.mrf.mxu0
    %v578 = vadd.f32 %v444, %v577
    %579 = vmatmul.f32.gmra.mxu0 %v189
    %v580 = vpop.f32.mrf.mxu0
    %v581 = vadd.f32 %v447, %v580
    %582 = vmatmul.f32.gmra.mxu0 %v190
    %v583 = vpop.f32.mrf.mxu0
    %v584 = vadd.f32 %v450, %v583
    %585 = vmatmul.f32.gmra.mxu0 %v191
    %v586 = vpop.f32.mrf.mxu0
    %v587 = vadd.f32 %v453, %v586
    %588 = vmatmul.f32.gmra.mxu0 %v192
    %v589 = vpop.f32.mrf.mxu0
    %v590 = vadd.f32 %v456, %v589
    %591 = vmatmul.f32.gmra.mxu0 %v193
    %v592 = vpop.f32.mrf.mxu0
    %v593 = vadd.f32 %v459, %v592
    %594 = vmatmul.f32.gmra.mxu0 %v194
    %v595 = vpop.f32.mrf.mxu0
    %v596 = vadd.f32 %v462, %v595
    %597 = vmatmul.f32.gmra.mxu0 %v195
    %v598 = vpop.f32.mrf.mxu0
    %v599 = vadd.f32 %v465, %v598
    %600 = vmatmul.f32.gmra.mxu0 %v196
    %v601 = vpop.f32.mrf.mxu0
    %v602 = vadd.f32 %v468, %v601
    %603 = vmatmul.f32.gmra.mxu0 %v197
    %v604 = vpop.f32.mrf.mxu0
    %v605 = vadd.f32 %v471, %v604
    %606 = vmatmul.f32.gmra.mxu0 %v198
    %v607 = vpop.f32.mrf.mxu0
    %v608 = vadd.f32 %v474, %v607
    %609 = vmatmul.f32.gmra.mxu0 %v199
    %v610 = vpop.f32.mrf.mxu0
    %v611 = vadd.f32 %v477, %v610
    %612 = vmatmul.f32.gmra.mxu0 %v200
    %v613 = vpop.f32.mrf.mxu0
    %v614 = vadd.f32 %v480, %v613
    %615 = vmatmul.f32.gmra.mxu0 %v201
    %v616 = vpop.f32.mrf.mxu0
    %v617 = vadd.f32 %v483, %v616
    %618 = vmatmul.f32.gmra.mxu0 %v202
    %v619 = vpop.f32.mrf.mxu0
    %v620 = vadd.f32 %v486, %v619
    %621 = vmatmul.f32.gmra.mxu0 %v203
    %v622 = vpop.f32.mrf.mxu0
    %v623 = vadd.f32 %v489, %v622
    %624 = vmatmul.f32.gmra.mxu0 %v204
    %v625 = vpop.f32.mrf.mxu0
    %v626 = vadd.f32 %v492, %v625
    %627 = vmatmul.f32.gmra.mxu0 %v205
    %v628 = vpop.f32.mrf.mxu0
    %v629 = vadd.f32 %v495, %v628
    %630 = vmatmul.f32.gmra.mxu0 %v206
    %v631 = vpop.f32.mrf.mxu0
    %v632 = vadd.f32 %v498, %v631
    %633 = vmatmul.f32.gmra.mxu0 %v207
    %v634 = vpop.f32.mrf.mxu0
    %v635 = vadd.f32 %v501, %v634
    %636 = vmatmul.f32.gmra.mxu0 %v208
    %v637 = vpop.f32.mrf.mxu0
    %v638 = vadd.f32 %v504, %v637
    %639 = vmatmul.f32.gmra.mxu0 %v209
    %v640 = vpop.f32.mrf.mxu0
    %v641 = vadd.f32 %v507, %v640
    %642 = vmatmul.f32.gmra.mxu0 %v210
    %v643 = vpop.f32.mrf.mxu0
    %v644 = vadd.f32 %v510, %v643
    %645 = vmatmul.f32.gmra.mxu0 %v211
    %v646 = vpop.f32.mrf.mxu0
    %v647 = vadd.f32 %v513, %v646
    %648 = vmatmul.f32.gmra.mxu0 %v212
    %v649 = vpop.f32.mrf.mxu0
    %v650 = vadd.f32 %v516, %v649
    %651 = vmatmul.f32.gmra.mxu0 %v213
    %v652 = vpop.f32.mrf.mxu0
    %v653 = vadd.f32 %v519, %v652
    %654 = vmatmul.f32.gmra.mxu0 %v214
    %v655 = vpop.f32.mrf.mxu0
    %v656 = vadd.f32 %v522, %v655
    %657 = vmatmul.f32.gmra.mxu0 %v215
    %v658 = vpop.f32.mrf.mxu0
    %v659 = vadd.f32 %v525, %v658
    %660 = vmatmul.f32.gmra.mxu0 %v216
    %v661 = vpop.f32.mrf.mxu0
    %v662 = vadd.f32 %v528, %v661
    %663 = vmatmul.f32.gmra.mxu0 %v217
    %v664 = vpop.f32.mrf.mxu0
    %v665 = vadd.f32 %v531, %v664
    %666 = vmatmul.f32.gmra.mxu0 %v218
    %v667 = vpop.f32.mrf.mxu0
    %v668 = vadd.f32 %v534, %v667
    %669 = vmatmul.f32.gmra.mxu0 %v219
    %v670 = vpop.f32.mrf.mxu0
    %v671 = vadd.f32 %v537, %v670
    %672 = vmatmul.f32.gmra.mxu0 %v220
    %v673 = vpop.f32.mrf.mxu0
    %v674 = vadd.f32 %v540, %v673
    %675 = vmatmul.f32.gmra.mxu0 %v221
    %v676 = vpop.f32.mrf.mxu0
    %v677 = vadd.f32 %v543, %v676
    %678 = vmatmul.f32.gmra.mxu0 %v222
    %v679 = vpop.f32.mrf.mxu0
    %v680 = vadd.f32 %v546, %v679
    %681 = vmatmul.f32.gmra.mxu0 %v223
    %v682 = vpop.f32.mrf.mxu0
    %v683 = vadd.f32 %v549, %v682
    %684 = vdwg.mxu0
    %s685 = scalar_lea.vmem [#allocation5], 256
    %v686 = vld [vmem:[%s685] sm:$0xff]
    %v687 = vld [vmem:[%s685 + $0x8] sm:$0xff]
    %v688 = vld [vmem:[%s685 + $0x10] sm:$0xff]
    %v689 = vld [vmem:[%s685 + $0x18] sm:$0xff]
    %v690 = vld [vmem:[%s685 + $0x20] sm:$0xff]
    %v691 = vld [vmem:[%s685 + $0x28] sm:$0xff]
    %v692 = vld [vmem:[%s685 + $0x30] sm:$0xff]
    %v693 = vld [vmem:[%s685 + $0x38] sm:$0xff]
    %v694 = vld [vmem:[%s685 + $0x40] sm:$0xff]
    %v695 = vld [vmem:[%s685 + $0x48] sm:$0xff]
    %v696 = vld [vmem:[%s685 + $0x50] sm:$0xff]
    %v697 = vld [vmem:[%s685 + $0x58] sm:$0xff]
    %v698 = vld [vmem:[%s685 + $0x60] sm:$0xff]
    %v699 = vld [vmem:[%s685 + $0x68] sm:$0xff]
    %v700 = vld [vmem:[%s685 + $0x70] sm:$0xff]
    %v701 = vld [vmem:[%s685 + $0x78] sm:$0xff]
    %vm702 = vcmask 1045504
    %v703 = vrot.slane %v185, 2
    %v704 = vrot.slane %v186, 2
    %v705 = vsel %vm702, %v703, %v704
    %v706 = vrot.slane %v187, 2
    %v707 = vsel %vm702, %v704, %v706
    %v708 = vrot.slane %v188, 2
    %v709 = vsel %vm702, %v706, %v708
    %v710 = vrot.slane %v189, 2
    %v711 = vsel %vm702, %v708, %v710
    %v712 = vrot.slane %v190, 2
    %v713 = vsel %vm702, %v710, %v712
    %v714 = vrot.slane %v191, 2
    %v715 = vsel %vm702, %v712, %v714
    %v716 = vrot.slane %v192, 2
    %v717 = vsel %vm702, %v714, %v716
    %v718 = vrot.slane %v193, 2
    %v719 = vsel %vm702, %v716, %v718
    %v720 = vrot.slane %v194, 2
    %v721 = vsel %vm702, %v718, %v720
    %v722 = vrot.slane %v195, 2
    %v723 = vsel %vm702, %v720, %v722
    %v724 = vrot.slane %v196, 2
    %v725 = vsel %vm702, %v722, %v724
    %v726 = vrot.slane %v197, 2
    %v727 = vsel %vm702, %v724, %v726
    %v728 = vrot.slane %v198, 2
    %v729 = vsel %vm702, %v726, %v728
    %v730 = vrot.slane %v199, 2
    %v731 = vsel %vm702, %v728, %v730
    %v732 = vrot.slane %v200, 2
    %v733 = vsel %vm702, %v730, %v732
    %v734 = vrot.slane %v201, 2
    %v735 = vsel %vm702, %v732, %v734
    %v736 = vrot.slane %v202, 2
    %v737 = vsel %vm702, %v734, %v736
    %v738 = vrot.slane %v203, 2
    %v739 = vsel %vm702, %v736, %v738
    %v740 = vrot.slane %v204, 2
    %v741 = vsel %vm702, %v738, %v740
    %v742 = vrot.slane %v205, 2
    %v743 = vsel %vm702, %v740, %v742
    %v744 = vrot.slane %v206, 2
    %v745 = vsel %vm702, %v742, %v744
    %v746 = vrot.slane %v207, 2
    %v747 = vsel %vm702, %v744, %v746
    %v748 = vrot.slane %v208, 2
    %v749 = vsel %vm702, %v746, %v748
    %v750 = vrot.slane %v209, 2
    %v751 = vsel %vm702, %v748, %v750
    %v752 = vrot.slane %v210, 2
    %v753 = vsel %vm702, %v750, %v752
    %v754 = vrot.slane %v211, 2
    %v755 = vsel %vm702, %v752, %v754
    %v756 = vrot.slane %v212, 2
    %v757 = vsel %vm702, %v754, %v756
    %v758 = vrot.slane %v213, 2
    %v759 = vsel %vm702, %v756, %v758
    %v760 = vrot.slane %v214, 2
    %v761 = vsel %vm702, %v758, %v760
    %v762 = vrot.slane %v215, 2
    %v763 = vsel %vm702, %v760, %v762
    %v764 = vrot.slane %v216, 2
    %v765 = vsel %vm702, %v762, %v764
    %v766 = vrot.slane %v217, 2
    %v767 = vsel %vm702, %v764, %v766
    %v768 = vrot.slane %v218, 2
    %v769 = vsel %vm702, %v766, %v768
    %v770 = vrot.slane %v219, 2
    %v771 = vsel %vm702, %v768, %v770
    %v772 = vrot.slane %v220, 2
    %v773 = vsel %vm702, %v770, %v772
    %v774 = vrot.slane %v221, 2
    %v775 = vsel %vm702, %v772, %v774
    %v776 = vrot.slane %v222, 2
    %v777 = vsel %vm702, %v774, %v776
    %v778 = vrot.slane %v223, 2
    %v779 = vsel %vm702, %v776, %v778
    %v780 = vrot.slane %v224, 2
    %v781 = vsel %vm702, %v778, %v780
    %821 = vmatpush.msra.mxu0 %v701
    %822 = vmatpush.msra.mxu0 %v700
    %823 = vmatpush.msra.mxu0 %v699
    %824 = vmatpush.msra.mxu0 %v698
    %825 = vmatpush.msra.mxu0 %v697
    %826 = vmatpush.msra.mxu0 %v696
    %827 = vmatpush.msra.mxu0 %v695
    %828 = vmatpush.msra.mxu0 %v694
    %829 = vmatpush.msra.mxu0 %v693
    %830 = vmatpush.msra.mxu0 %v692
    %831 = vmatpush.msra.mxu0 %v691
    %832 = vmatpush.msra.mxu0 %v690
    %833 = vmatpush.msra.mxu0 %v689
    %834 = vmatpush.msra.mxu0 %v688
    %835 = vmatpush.msra.mxu0 %v687
    %836 = vmatpush.msra.mxu0 %v686
    %837 = vmatmul.f32.gmra.mxu0 %v705
    %v838 = vpop.f32.mrf.mxu0
    %v839 = vadd.f32 0.0, %v838
    %840 = vmatmul.f32.gmra.mxu0 %v707
    %v841 = vpop.f32.mrf.mxu0
    %v842 = vadd.f32 0.0, %v841
    %843 = vmatmul.f32.gmra.mxu0 %v709
    %v844 = vpop.f32.mrf.mxu0
    %v845 = vadd.f32 0.0, %v844
    %846 = vmatmul.f32.gmra.mxu0 %v711
    %v847 = vpop.f32.mrf.mxu0
    %v848 = vadd.f32 0.0, %v847
    %849 = vmatmul.f32.gmra.mxu0 %v713
    %v850 = vpop.f32.mrf.mxu0
    %v851 = vadd.f32 0.0, %v850
    %852 = vmatmul.f32.gmra.mxu0 %v715
    %v853 = vpop.f32.mrf.mxu0
    %v854 = vadd.f32 0.0, %v853
    %855 = vmatmul.f32.gmra.mxu0 %v717
    %v856 = vpop.f32.mrf.mxu0
    %v857 = vadd.f32 0.0, %v856
    %858 = vmatmul.f32.gmra.mxu0 %v719
    %v859 = vpop.f32.mrf.mxu0
    %v860 = vadd.f32 0.0, %v859
    %861 = vmatmul.f32.gmra.mxu0 %v721
    %v862 = vpop.f32.mrf.mxu0
    %v863 = vadd.f32 0.0, %v862
    %864 = vmatmul.f32.gmra.mxu0 %v723
    %v865 = vpop.f32.mrf.mxu0
    %v866 = vadd.f32 0.0, %v865
    %867 = vmatmul.f32.gmra.mxu0 %v725
    %v868 = vpop.f32.mrf.mxu0
    %v869 = vadd.f32 0.0, %v868
    %870 = vmatmul.f32.gmra.mxu0 %v727
    %v871 = vpop.f32.mrf.mxu0
    %v872 = vadd.f32 0.0, %v871
    %873 = vmatmul.f32.gmra.mxu0 %v729
    %v874 = vpop.f32.mrf.mxu0
    %v875 = vadd.f32 0.0, %v874
    %876 = vmatmul.f32.gmra.mxu0 %v731
    %v877 = vpop.f32.mrf.mxu0
    %v878 = vadd.f32 0.0, %v877
    %879 = vmatmul.f32.gmra.mxu0 %v733
    %v880 = vpop.f32.mrf.mxu0
    %v881 = vadd.f32 0.0, %v880
    %882 = vmatmul.f32.gmra.mxu0 %v735
    %v883 = vpop.f32.mrf.mxu0
    %v884 = vadd.f32 0.0, %v883
    %885 = vmatmul.f32.gmra.mxu0 %v737
    %v886 = vpop.f32.mrf.mxu0
    %v887 = vadd.f32 0.0, %v886
    %888 = vmatmul.f32.gmra.mxu0 %v739
    %v889 = vpop.f32.mrf.mxu0
    %v890 = vadd.f32 0.0, %v889
    %891 = vmatmul.f32.gmra.mxu0 %v741
    %v892 = vpop.f32.mrf.mxu0
    %v893 = vadd.f32 0.0, %v892
    %894 = vmatmul.f32.gmra.mxu0 %v743
    %v895 = vpop.f32.mrf.mxu0
    %v896 = vadd.f32 0.0, %v895
    %897 = vmatmul.f32.gmra.mxu0 %v745
    %v898 = vpop.f32.mrf.mxu0
    %v899 = vadd.f32 0.0, %v898
    %900 = vmatmul.f32.gmra.mxu0 %v747
    %v901 = vpop.f32.mrf.mxu0
    %v902 = vadd.f32 0.0, %v901
    %903 = vmatmul.f32.gmra.mxu0 %v749
    %v904 = vpop.f32.mrf.mxu0
    %v905 = vadd.f32 0.0, %v904
    %906 = vmatmul.f32.gmra.mxu0 %v751
    %v907 = vpop.f32.mrf.mxu0
    %v908 = vadd.f32 0.0, %v907
    %909 = vmatmul.f32.gmra.mxu0 %v753
    %v910 = vpop.f32.mrf.mxu0
    %v911 = vadd.f32 0.0, %v910
    %912 = vmatmul.f32.gmra.mxu0 %v755
    %v913 = vpop.f32.mrf.mxu0
    %v914 = vadd.f32 0.0, %v913
    %915 = vmatmul.f32.gmra.mxu0 %v757
    %v916 = vpop.f32.mrf.mxu0
    %v917 = vadd.f32 0.0, %v916
    %918 = vmatmul.f32.gmra.mxu0 %v759
    %v919 = vpop.f32.mrf.mxu0
    %v920 = vadd.f32 0.0, %v919
    %921 = vmatmul.f32.gmra.mxu0 %v761
    %v922 = vpop.f32.mrf.mxu0
    %v923 = vadd.f32 0.0, %v922
    %924 = vmatmul.f32.gmra.mxu0 %v763
    %v925 = vpop.f32.mrf.mxu0
    %v926 = vadd.f32 0.0, %v925
    %927 = vmatmul.f32.gmra.mxu0 %v765
    %v928 = vpop.f32.mrf.mxu0
    %v929 = vadd.f32 0.0, %v928
    %930 = vmatmul.f32.gmra.mxu0 %v767
    %v931 = vpop.f32.mrf.mxu0
    %v932 = vadd.f32 0.0, %v931
    %933 = vmatmul.f32.gmra.mxu0 %v769
    %v934 = vpop.f32.mrf.mxu0
    %v935 = vadd.f32 0.0, %v934
    %936 = vmatmul.f32.gmra.mxu0 %v771
    %v937 = vpop.f32.mrf.mxu0
    %v938 = vadd.f32 0.0, %v937
    %939 = vmatmul.f32.gmra.mxu0 %v773
    %v940 = vpop.f32.mrf.mxu0
    %v941 = vadd.f32 0.0, %v940
    %942 = vmatmul.f32.gmra.mxu0 %v775
    %v943 = vpop.f32.mrf.mxu0
    %v944 = vadd.f32 0.0, %v943
    %945 = vmatmul.f32.gmra.mxu0 %v777
    %v946 = vpop.f32.mrf.mxu0
    %v947 = vadd.f32 0.0, %v946
    %948 = vmatmul.f32.gmra.mxu0 %v779
    %v949 = vpop.f32.mrf.mxu0
    %v950 = vadd.f32 0.0, %v949
    %951 = vmatmul.f32.gmra.mxu0 %v781
    %v952 = vpop.f32.mrf.mxu0
    %v953 = vadd.f32 0.0, %v952
    %954 = vdwg.mxu0
    %v955 = vadd.f32 %v569, %v839
    %v956 = vadd.f32 %v572, %v842
    %v957 = vadd.f32 %v575, %v845
    %v958 = vadd.f32 %v578, %v848
    %v959 = vadd.f32 %v581, %v851
    %v960 = vadd.f32 %v584, %v854
    %v961 = vadd.f32 %v587, %v857
    %v962 = vadd.f32 %v590, %v860
    %v963 = vadd.f32 %v593, %v863
    %v964 = vadd.f32 %v596, %v866
    %v965 = vadd.f32 %v599, %v869
    %v966 = vadd.f32 %v602, %v872
    %v967 = vadd.f32 %v605, %v875
    %v968 = vadd.f32 %v608, %v878
    %v969 = vadd.f32 %v611, %v881
    %v970 = vadd.f32 %v614, %v884
    %v971 = vadd.f32 %v617, %v887
    %v972 = vadd.f32 %v620, %v890
    %v973 = vadd.f32 %v623, %v893
    %v974 = vadd.f32 %v626, %v896
    %v975 = vadd.f32 %v629, %v899
    %v976 = vadd.f32 %v632, %v902
    %v977 = vadd.f32 %v635, %v905
    %v978 = vadd.f32 %v638, %v908
    %v979 = vadd.f32 %v641, %v911
    %v980 = vadd.f32 %v644, %v914
    %v981 = vadd.f32 %v647, %v917
    %v982 = vadd.f32 %v650, %v920
    %v983 = vadd.f32 %v653, %v923
    %v984 = vadd.f32 %v656, %v926
    %v985 = vadd.f32 %v659, %v929
    %v986 = vadd.f32 %v662, %v932
    %v987 = vadd.f32 %v665, %v935
    %v988 = vadd.f32 %v668, %v938
    %v989 = vadd.f32 %v671, %v941
    %v990 = vadd.f32 %v674, %v944
    %v991 = vadd.f32 %v677, %v947
    %v992 = vadd.f32 %v680, %v950
    %v993 = vadd.f32 %v683, %v953
    %s994 = scalar_lea.vmem [#allocation5], 384
    %v995 = vld [vmem:[%s994] sm:$0xff]
    %v996 = vld [vmem:[%s994 + $0x8] sm:$0xff]
    %v997 = vld [vmem:[%s994 + $0x10] sm:$0xff]
    %v998 = vld [vmem:[%s994 + $0x18] sm:$0xff]
    %v999 = vld [vmem:[%s994 + $0x20] sm:$0xff]
    %v1000 = vld [vmem:[%s994 + $0x28] sm:$0xff]
    %v1001 = vld [vmem:[%s994 + $0x30] sm:$0xff]
    %v1002 = vld [vmem:[%s994 + $0x38] sm:$0xff]
    %v1003 = vld [vmem:[%s994 + $0x40] sm:$0xff]
    %v1004 = vld [vmem:[%s994 + $0x48] sm:$0xff]
    %v1005 = vld [vmem:[%s994 + $0x50] sm:$0xff]
    %v1006 = vld [vmem:[%s994 + $0x58] sm:$0xff]
    %v1007 = vld [vmem:[%s994 + $0x60] sm:$0xff]
    %v1008 = vld [vmem:[%s994 + $0x68] sm:$0xff]
    %v1009 = vld [vmem:[%s994 + $0x70] sm:$0xff]
    %v1010 = vld [vmem:[%s994 + $0x78] sm:$0xff]
    %vm1011 = vcmask 1044480
    %v1012 = vrot.slane %v185, 3
    %v1013 = vrot.slane %v186, 3
    %v1014 = vsel %vm1011, %v1012, %v1013
    %v1015 = vrot.slane %v187, 3
    %v1016 = vsel %vm1011, %v1013, %v1015
    %v1017 = vrot.slane %v188, 3
    %v1018 = vsel %vm1011, %v1015, %v1017
    %v1019 = vrot.slane %v189, 3
    %v1020 = vsel %vm1011, %v1017, %v1019
    %v1021 = vrot.slane %v190, 3
    %v1022 = vsel %vm1011, %v1019, %v1021
    %v1023 = vrot.slane %v191, 3
    %v1024 = vsel %vm1011, %v1021, %v1023
    %v1025 = vrot.slane %v192, 3
    %v1026 = vsel %vm1011, %v1023, %v1025
    %v1027 = vrot.slane %v193, 3
    %v1028 = vsel %vm1011, %v1025, %v1027
    %v1029 = vrot.slane %v194, 3
    %v1030 = vsel %vm1011, %v1027, %v1029
    %v1031 = vrot.slane %v195, 3
    %v1032 = vsel %vm1011, %v1029, %v1031
    %v1033 = vrot.slane %v196, 3
    %v1034 = vsel %vm1011, %v1031, %v1033
    %v1035 = vrot.slane %v197, 3
    %v1036 = vsel %vm1011, %v1033, %v1035
    %v1037 = vrot.slane %v198, 3
    %v1038 = vsel %vm1011, %v1035, %v1037
    %v1039 = vrot.slane %v199, 3
    %v1040 = vsel %vm1011, %v1037, %v1039
    %v1041 = vrot.slane %v200, 3
    %v1042 = vsel %vm1011, %v1039, %v1041
    %v1043 = vrot.slane %v201, 3
    %v1044 = vsel %vm1011, %v1041, %v1043
    %v1045 = vrot.slane %v202, 3
    %v1046 = vsel %vm1011, %v1043, %v1045
    %v1047 = vrot.slane %v203, 3
    %v1048 = vsel %vm1011, %v1045, %v1047
    %v1049 = vrot.slane %v204, 3
    %v1050 = vsel %vm1011, %v1047, %v1049
    %v1051 = vrot.slane %v205, 3
    %v1052 = vsel %vm1011, %v1049, %v1051
    %v1053 = vrot.slane %v206, 3
    %v1054 = vsel %vm1011, %v1051, %v1053
    %v1055 = vrot.slane %v207, 3
    %v1056 = vsel %vm1011, %v1053, %v1055
    %v1057 = vrot.slane %v208, 3
    %v1058 = vsel %vm1011, %v1055, %v1057
    %v1059 = vrot.slane %v209, 3
    %v1060 = vsel %vm1011, %v1057, %v1059
    %v1061 = vrot.slane %v210, 3
    %v1062 = vsel %vm1011, %v1059, %v1061
    %v1063 = vrot.slane %v211, 3
    %v1064 = vsel %vm1011, %v1061, %v1063
    %v1065 = vrot.slane %v212, 3
    %v1066 = vsel %vm1011, %v1063, %v1065
    %v1067 = vrot.slane %v213, 3
    %v1068 = vsel %vm1011, %v1065, %v1067
    %v1069 = vrot.slane %v214, 3
    %v1070 = vsel %vm1011, %v1067, %v1069
    %v1071 = vrot.slane %v215, 3
    %v1072 = vsel %vm1011, %v1069, %v1071
    %v1073 = vrot.slane %v216, 3
    %v1074 = vsel %vm1011, %v1071, %v1073
    %v1075 = vrot.slane %v217, 3
    %v1076 = vsel %vm1011, %v1073, %v1075
    %v1077 = vrot.slane %v218, 3
    %v1078 = vsel %vm1011, %v1075, %v1077
    %v1079 = vrot.slane %v219, 3
    %v1080 = vsel %vm1011, %v1077, %v1079
    %v1081 = vrot.slane %v220, 3
    %v1082 = vsel %vm1011, %v1079, %v1081
    %v1083 = vrot.slane %v221, 3
    %v1084 = vsel %vm1011, %v1081, %v1083
    %v1085 = vrot.slane %v222, 3
    %v1086 = vsel %vm1011, %v1083, %v1085
    %v1087 = vrot.slane %v223, 3
    %v1088 = vsel %vm1011, %v1085, %v1087
    %v1089 = vrot.slane %v224, 3
    %v1090 = vsel %vm1011, %v1087, %v1089
    %1130 = vmatpush.msra.mxu0 %v1010
    %1131 = vmatpush.msra.mxu0 %v1009
    %1132 = vmatpush.msra.mxu0 %v1008
    %1133 = vmatpush.msra.mxu0 %v1007
    %1134 = vmatpush.msra.mxu0 %v1006
    %1135 = vmatpush.msra.mxu0 %v1005
    %1136 = vmatpush.msra.mxu0 %v1004
    %1137 = vmatpush.msra.mxu0 %v1003
    %1138 = vmatpush.msra.mxu0 %v1002
    %1139 = vmatpush.msra.mxu0 %v1001
    %1140 = vmatpush.msra.mxu0 %v1000
    %1141 = vmatpush.msra.mxu0 %v999
    %1142 = vmatpush.msra.mxu0 %v998
    %1143 = vmatpush.msra.mxu0 %v997
    %1144 = vmatpush.msra.mxu0 %v996
    %1145 = vmatpush.msra.mxu0 %v995
    %1146 = vmatmul.f32.gmra.mxu0 %v1014
    %v1147 = vpop.f32.mrf.mxu0
    %v1148 = vadd.f32 0.0, %v1147
    %1149 = vmatmul.f32.gmra.mxu0 %v1016
    %v1150 = vpop.f32.mrf.mxu0
    %v1151 = vadd.f32 0.0, %v1150
    %1152 = vmatmul.f32.gmra.mxu0 %v1018
    %v1153 = vpop.f32.mrf.mxu0
    %v1154 = vadd.f32 0.0, %v1153
    %1155 = vmatmul.f32.gmra.mxu0 %v1020
    %v1156 = vpop.f32.mrf.mxu0
    %v1157 = vadd.f32 0.0, %v1156
    %1158 = vmatmul.f32.gmra.mxu0 %v1022
    %v1159 = vpop.f32.mrf.mxu0
    %v1160 = vadd.f32 0.0, %v1159
    %1161 = vmatmul.f32.gmra.mxu0 %v1024
    %v1162 = vpop.f32.mrf.mxu0
    %v1163 = vadd.f32 0.0, %v1162
    %1164 = vmatmul.f32.gmra.mxu0 %v1026
    %v1165 = vpop.f32.mrf.mxu0
    %v1166 = vadd.f32 0.0, %v1165
    %1167 = vmatmul.f32.gmra.mxu0 %v1028
    %v1168 = vpop.f32.mrf.mxu0
    %v1169 = vadd.f32 0.0, %v1168
    %1170 = vmatmul.f32.gmra.mxu0 %v1030
    %v1171 = vpop.f32.mrf.mxu0
    %v1172 = vadd.f32 0.0, %v1171
    %1173 = vmatmul.f32.gmra.mxu0 %v1032
    %v1174 = vpop.f32.mrf.mxu0
    %v1175 = vadd.f32 0.0, %v1174
    %1176 = vmatmul.f32.gmra.mxu0 %v1034
    %v1177 = vpop.f32.mrf.mxu0
    %v1178 = vadd.f32 0.0, %v1177
    %1179 = vmatmul.f32.gmra.mxu0 %v1036
    %v1180 = vpop.f32.mrf.mxu0
    %v1181 = vadd.f32 0.0, %v1180
    %1182 = vmatmul.f32.gmra.mxu0 %v1038
    %v1183 = vpop.f32.mrf.mxu0
    %v1184 = vadd.f32 0.0, %v1183
    %1185 = vmatmul.f32.gmra.mxu0 %v1040
    %v1186 = vpop.f32.mrf.mxu0
    %v1187 = vadd.f32 0.0, %v1186
    %1188 = vmatmul.f32.gmra.mxu0 %v1042
    %v1189 = vpop.f32.mrf.mxu0
    %v1190 = vadd.f32 0.0, %v1189
    %1191 = vmatmul.f32.gmra.mxu0 %v1044
    %v1192 = vpop.f32.mrf.mxu0
    %v1193 = vadd.f32 0.0, %v1192
    %1194 = vmatmul.f32.gmra.mxu0 %v1046
    %v1195 = vpop.f32.mrf.mxu0
    %v1196 = vadd.f32 0.0, %v1195
    %1197 = vmatmul.f32.gmra.mxu0 %v1048
    %v1198 = vpop.f32.mrf.mxu0
    %v1199 = vadd.f32 0.0, %v1198
    %1200 = vmatmul.f32.gmra.mxu0 %v1050
    %v1201 = vpop.f32.mrf.mxu0
    %v1202 = vadd.f32 0.0, %v1201
    %1203 = vmatmul.f32.gmra.mxu0 %v1052
    %v1204 = vpop.f32.mrf.mxu0
    %v1205 = vadd.f32 0.0, %v1204
    %1206 = vmatmul.f32.gmra.mxu0 %v1054
    %v1207 = vpop.f32.mrf.mxu0
    %v1208 = vadd.f32 0.0, %v1207
    %1209 = vmatmul.f32.gmra.mxu0 %v1056
    %v1210 = vpop.f32.mrf.mxu0
    %v1211 = vadd.f32 0.0, %v1210
    %1212 = vmatmul.f32.gmra.mxu0 %v1058
    %v1213 = vpop.f32.mrf.mxu0
    %v1214 = vadd.f32 0.0, %v1213
    %1215 = vmatmul.f32.gmra.mxu0 %v1060
    %v1216 = vpop.f32.mrf.mxu0
    %v1217 = vadd.f32 0.0, %v1216
    %1218 = vmatmul.f32.gmra.mxu0 %v1062
    %v1219 = vpop.f32.mrf.mxu0
    %v1220 = vadd.f32 0.0, %v1219
    %1221 = vmatmul.f32.gmra.mxu0 %v1064
    %v1222 = vpop.f32.mrf.mxu0
    %v1223 = vadd.f32 0.0, %v1222
    %1224 = vmatmul.f32.gmra.mxu0 %v1066
    %v1225 = vpop.f32.mrf.mxu0
    %v1226 = vadd.f32 0.0, %v1225
    %1227 = vmatmul.f32.gmra.mxu0 %v1068
    %v1228 = vpop.f32.mrf.mxu0
    %v1229 = vadd.f32 0.0, %v1228
    %1230 = vmatmul.f32.gmra.mxu0 %v1070
    %v1231 = vpop.f32.mrf.mxu0
    %v1232 = vadd.f32 0.0, %v1231
    %1233 = vmatmul.f32.gmra.mxu0 %v1072
    %v1234 = vpop.f32.mrf.mxu0
    %v1235 = vadd.f32 0.0, %v1234
    %1236 = vmatmul.f32.gmra.mxu0 %v1074
    %v1237 = vpop.f32.mrf.mxu0
    %v1238 = vadd.f32 0.0, %v1237
    %1239 = vmatmul.f32.gmra.mxu0 %v1076
    %v1240 = vpop.f32.mrf.mxu0
    %v1241 = vadd.f32 0.0, %v1240
    %1242 = vmatmul.f32.gmra.mxu0 %v1078
    %v1243 = vpop.f32.mrf.mxu0
    %v1244 = vadd.f32 0.0, %v1243
    %1245 = vmatmul.f32.gmra.mxu0 %v1080
    %v1246 = vpop.f32.mrf.mxu0
    %v1247 = vadd.f32 0.0, %v1246
    %1248 = vmatmul.f32.gmra.mxu0 %v1082
    %v1249 = vpop.f32.mrf.mxu0
    %v1250 = vadd.f32 0.0, %v1249
    %1251 = vmatmul.f32.gmra.mxu0 %v1084
    %v1252 = vpop.f32.mrf.mxu0
    %v1253 = vadd.f32 0.0, %v1252
    %1254 = vmatmul.f32.gmra.mxu0 %v1086
    %v1255 = vpop.f32.mrf.mxu0
    %v1256 = vadd.f32 0.0, %v1255
    %1257 = vmatmul.f32.gmra.mxu0 %v1088
    %v1258 = vpop.f32.mrf.mxu0
    %v1259 = vadd.f32 0.0, %v1258
    %1260 = vmatmul.f32.gmra.mxu0 %v1090
    %v1261 = vpop.f32.mrf.mxu0
    %v1262 = vadd.f32 0.0, %v1261
    %1263 = vdwg.mxu0
    %v1264 = vadd.f32 %v955, %v1148
    %v1265 = vadd.f32 %v956, %v1151
    %v1266 = vadd.f32 %v957, %v1154
    %v1267 = vadd.f32 %v958, %v1157
    %v1268 = vadd.f32 %v959, %v1160
    %v1269 = vadd.f32 %v960, %v1163
    %v1270 = vadd.f32 %v961, %v1166
    %v1271 = vadd.f32 %v962, %v1169
    %v1272 = vadd.f32 %v963, %v1172
    %v1273 = vadd.f32 %v964, %v1175
    %v1274 = vadd.f32 %v965, %v1178
    %v1275 = vadd.f32 %v966, %v1181
    %v1276 = vadd.f32 %v967, %v1184
    %v1277 = vadd.f32 %v968, %v1187
    %v1278 = vadd.f32 %v969, %v1190
    %v1279 = vadd.f32 %v970, %v1193
    %v1280 = vadd.f32 %v971, %v1196
    %v1281 = vadd.f32 %v972, %v1199
    %v1282 = vadd.f32 %v973, %v1202
    %v1283 = vadd.f32 %v974, %v1205
    %v1284 = vadd.f32 %v975, %v1208
    %v1285 = vadd.f32 %v976, %v1211
    %v1286 = vadd.f32 %v977, %v1214
    %v1287 = vadd.f32 %v978, %v1217
    %v1288 = vadd.f32 %v979, %v1220
    %v1289 = vadd.f32 %v980, %v1223
    %v1290 = vadd.f32 %v981, %v1226
    %v1291 = vadd.f32 %v982, %v1229
    %v1292 = vadd.f32 %v983, %v1232
    %v1293 = vadd.f32 %v984, %v1235
    %v1294 = vadd.f32 %v985, %v1238
    %v1295 = vadd.f32 %v986, %v1241
    %v1296 = vadd.f32 %v987, %v1244
    %v1297 = vadd.f32 %v988, %v1247
    %v1298 = vadd.f32 %v989, %v1250
    %v1299 = vadd.f32 %v990, %v1253
    %v1300 = vadd.f32 %v991, %v1256
    %v1301 = vadd.f32 %v992, %v1259
    %v1302 = vadd.f32 %v993, %v1262
    %s1303 = scalar_lea.vmem [#allocation5], 512
    %v1304 = vld [vmem:[%s1303] sm:$0xff]
    %v1305 = vld [vmem:[%s1303 + $0x8] sm:$0xff]
    %v1306 = vld [vmem:[%s1303 + $0x10] sm:$0xff]
    %v1307 = vld [vmem:[%s1303 + $0x18] sm:$0xff]
    %v1308 = vld [vmem:[%s1303 + $0x20] sm:$0xff]
    %v1309 = vld [vmem:[%s1303 + $0x28] sm:$0xff]
    %v1310 = vld [vmem:[%s1303 + $0x30] sm:$0xff]
    %v1311 = vld [vmem:[%s1303 + $0x38] sm:$0xff]
    %v1312 = vld [vmem:[%s1303 + $0x40] sm:$0xff]
    %v1313 = vld [vmem:[%s1303 + $0x48] sm:$0xff]
    %v1314 = vld [vmem:[%s1303 + $0x50] sm:$0xff]
    %v1315 = vld [vmem:[%s1303 + $0x58] sm:$0xff]
    %v1316 = vld [vmem:[%s1303 + $0x60] sm:$0xff]
    %v1317 = vld [vmem:[%s1303 + $0x68] sm:$0xff]
    %v1318 = vld [vmem:[%s1303 + $0x70] sm:$0xff]
    %v1319 = vld [vmem:[%s1303 + $0x78] sm:$0xff]
    %vm1320 = vcmask 1043456
    %v1321 = vrot.slane %v185, 4
    %v1322 = vrot.slane %v186, 4
    %v1323 = vsel %vm1320, %v1321, %v1322
    %v1324 = vrot.slane %v187, 4
    %v1325 = vsel %vm1320, %v1322, %v1324
    %v1326 = vrot.slane %v188, 4
    %v1327 = vsel %vm1320, %v1324, %v1326
    %v1328 = vrot.slane %v189, 4
    %v1329 = vsel %vm1320, %v1326, %v1328
    %v1330 = vrot.slane %v190, 4
    %v1331 = vsel %vm1320, %v1328, %v1330
    %v1332 = vrot.slane %v191, 4
    %v1333 = vsel %vm1320, %v1330, %v1332
    %v1334 = vrot.slane %v192, 4
    %v1335 = vsel %vm1320, %v1332, %v1334
    %v1336 = vrot.slane %v193, 4
    %v1337 = vsel %vm1320, %v1334, %v1336
    %v1338 = vrot.slane %v194, 4
    %v1339 = vsel %vm1320, %v1336, %v1338
    %v1340 = vrot.slane %v195, 4
    %v1341 = vsel %vm1320, %v1338, %v1340
    %v1342 = vrot.slane %v196, 4
    %v1343 = vsel %vm1320, %v1340, %v1342
    %v1344 = vrot.slane %v197, 4
    %v1345 = vsel %vm1320, %v1342, %v1344
    %v1346 = vrot.slane %v198, 4
    %v1347 = vsel %vm1320, %v1344, %v1346
    %v1348 = vrot.slane %v199, 4
    %v1349 = vsel %vm1320, %v1346, %v1348
    %v1350 = vrot.slane %v200, 4
    %v1351 = vsel %vm1320, %v1348, %v1350
    %v1352 = vrot.slane %v201, 4
    %v1353 = vsel %vm1320, %v1350, %v1352
    %v1354 = vrot.slane %v202, 4
    %v1355 = vsel %vm1320, %v1352, %v1354
    %v1356 = vrot.slane %v203, 4
    %v1357 = vsel %vm1320, %v1354, %v1356
    %v1358 = vrot.slane %v204, 4
    %v1359 = vsel %vm1320, %v1356, %v1358
    %v1360 = vrot.slane %v205, 4
    %v1361 = vsel %vm1320, %v1358, %v1360
    %v1362 = vrot.slane %v206, 4
    %v1363 = vsel %vm1320, %v1360, %v1362
    %v1364 = vrot.slane %v207, 4
    %v1365 = vsel %vm1320, %v1362, %v1364
    %v1366 = vrot.slane %v208, 4
    %v1367 = vsel %vm1320, %v1364, %v1366
    %v1368 = vrot.slane %v209, 4
    %v1369 = vsel %vm1320, %v1366, %v1368
    %v1370 = vrot.slane %v210, 4
    %v1371 = vsel %vm1320, %v1368, %v1370
    %v1372 = vrot.slane %v211, 4
    %v1373 = vsel %vm1320, %v1370, %v1372
    %v1374 = vrot.slane %v212, 4
    %v1375 = vsel %vm1320, %v1372, %v1374
    %v1376 = vrot.slane %v213, 4
    %v1377 = vsel %vm1320, %v1374, %v1376
    %v1378 = vrot.slane %v214, 4
    %v1379 = vsel %vm1320, %v1376, %v1378
    %v1380 = vrot.slane %v215, 4
    %v1381 = vsel %vm1320, %v1378, %v1380
    %v1382 = vrot.slane %v216, 4
    %v1383 = vsel %vm1320, %v1380, %v1382
    %v1384 = vrot.slane %v217, 4
    %v1385 = vsel %vm1320, %v1382, %v1384
    %v1386 = vrot.slane %v218, 4
    %v1387 = vsel %vm1320, %v1384, %v1386
    %v1388 = vrot.slane %v219, 4
    %v1389 = vsel %vm1320, %v1386, %v1388
    %v1390 = vrot.slane %v220, 4
    %v1391 = vsel %vm1320, %v1388, %v1390
    %v1392 = vrot.slane %v221, 4
    %v1393 = vsel %vm1320, %v1390, %v1392
    %v1394 = vrot.slane %v222, 4
    %v1395 = vsel %vm1320, %v1392, %v1394
    %v1396 = vrot.slane %v223, 4
    %v1397 = vsel %vm1320, %v1394, %v1396
    %v1398 = vrot.slane %v224, 4
    %v1399 = vsel %vm1320, %v1396, %v1398
    %1439 = vmatpush.msra.mxu0 %v1319
    %1440 = vmatpush.msra.mxu0 %v1318
    %1441 = vmatpush.msra.mxu0 %v1317
    %1442 = vmatpush.msra.mxu0 %v1316
    %1443 = vmatpush.msra.mxu0 %v1315
    %1444 = vmatpush.msra.mxu0 %v1314
    %1445 = vmatpush.msra.mxu0 %v1313
    %1446 = vmatpush.msra.mxu0 %v1312
    %1447 = vmatpush.msra.mxu0 %v1311
    %1448 = vmatpush.msra.mxu0 %v1310
    %1449 = vmatpush.msra.mxu0 %v1309
    %1450 = vmatpush.msra.mxu0 %v1308
    %1451 = vmatpush.msra.mxu0 %v1307
    %1452 = vmatpush.msra.mxu0 %v1306
    %1453 = vmatpush.msra.mxu0 %v1305
    %1454 = vmatpush.msra.mxu0 %v1304
    %1455 = vmatmul.f32.gmra.mxu0 %v1323
    %v1456 = vpop.f32.mrf.mxu0
    %v1457 = vadd.f32 0.0, %v1456
    %1458 = vmatmul.f32.gmra.mxu0 %v1325
    %v1459 = vpop.f32.mrf.mxu0
    %v1460 = vadd.f32 0.0, %v1459
    %1461 = vmatmul.f32.gmra.mxu0 %v1327
    %v1462 = vpop.f32.mrf.mxu0
    %v1463 = vadd.f32 0.0, %v1462
    %1464 = vmatmul.f32.gmra.mxu0 %v1329
    %v1465 = vpop.f32.mrf.mxu0
    %v1466 = vadd.f32 0.0, %v1465
    %1467 = vmatmul.f32.gmra.mxu0 %v1331
    %v1468 = vpop.f32.mrf.mxu0
    %v1469 = vadd.f32 0.0, %v1468
    %1470 = vmatmul.f32.gmra.mxu0 %v1333
    %v1471 = vpop.f32.mrf.mxu0
    %v1472 = vadd.f32 0.0, %v1471
    %1473 = vmatmul.f32.gmra.mxu0 %v1335
    %v1474 = vpop.f32.mrf.mxu0
    %v1475 = vadd.f32 0.0, %v1474
    %1476 = vmatmul.f32.gmra.mxu0 %v1337
    %v1477 = vpop.f32.mrf.mxu0
    %v1478 = vadd.f32 0.0, %v1477
    %1479 = vmatmul.f32.gmra.mxu0 %v1339
    %v1480 = vpop.f32.mrf.mxu0
    %v1481 = vadd.f32 0.0, %v1480
    %1482 = vmatmul.f32.gmra.mxu0 %v1341
    %v1483 = vpop.f32.mrf.mxu0
    %v1484 = vadd.f32 0.0, %v1483
    %1485 = vmatmul.f32.gmra.mxu0 %v1343
    %v1486 = vpop.f32.mrf.mxu0
    %v1487 = vadd.f32 0.0, %v1486
    %1488 = vmatmul.f32.gmra.mxu0 %v1345
    %v1489 = vpop.f32.mrf.mxu0
    %v1490 = vadd.f32 0.0, %v1489
    %1491 = vmatmul.f32.gmra.mxu0 %v1347
    %v1492 = vpop.f32.mrf.mxu0
    %v1493 = vadd.f32 0.0, %v1492
    %1494 = vmatmul.f32.gmra.mxu0 %v1349
    %v1495 = vpop.f32.mrf.mxu0
    %v1496 = vadd.f32 0.0, %v1495
    %1497 = vmatmul.f32.gmra.mxu0 %v1351
    %v1498 = vpop.f32.mrf.mxu0
    %v1499 = vadd.f32 0.0, %v1498
    %1500 = vmatmul.f32.gmra.mxu0 %v1353
    %v1501 = vpop.f32.mrf.mxu0
    %v1502 = vadd.f32 0.0, %v1501
    %1503 = vmatmul.f32.gmra.mxu0 %v1355
    %v1504 = vpop.f32.mrf.mxu0
    %v1505 = vadd.f32 0.0, %v1504
    %1506 = vmatmul.f32.gmra.mxu0 %v1357
    %v1507 = vpop.f32.mrf.mxu0
    %v1508 = vadd.f32 0.0, %v1507
    %1509 = vmatmul.f32.gmra.mxu0 %v1359
    %v1510 = vpop.f32.mrf.mxu0
    %v1511 = vadd.f32 0.0, %v1510
    %1512 = vmatmul.f32.gmra.mxu0 %v1361
    %v1513 = vpop.f32.mrf.mxu0
    %v1514 = vadd.f32 0.0, %v1513
    %1515 = vmatmul.f32.gmra.mxu0 %v1363
    %v1516 = vpop.f32.mrf.mxu0
    %v1517 = vadd.f32 0.0, %v1516
    %1518 = vmatmul.f32.gmra.mxu0 %v1365
    %v1519 = vpop.f32.mrf.mxu0
    %v1520 = vadd.f32 0.0, %v1519
    %1521 = vmatmul.f32.gmra.mxu0 %v1367
    %v1522 = vpop.f32.mrf.mxu0
    %v1523 = vadd.f32 0.0, %v1522
    %1524 = vmatmul.f32.gmra.mxu0 %v1369
    %v1525 = vpop.f32.mrf.mxu0
    %v1526 = vadd.f32 0.0, %v1525
    %1527 = vmatmul.f32.gmra.mxu0 %v1371
    %v1528 = vpop.f32.mrf.mxu0
    %v1529 = vadd.f32 0.0, %v1528
    %1530 = vmatmul.f32.gmra.mxu0 %v1373
    %v1531 = vpop.f32.mrf.mxu0
    %v1532 = vadd.f32 0.0, %v1531
    %1533 = vmatmul.f32.gmra.mxu0 %v1375
    %v1534 = vpop.f32.mrf.mxu0
    %v1535 = vadd.f32 0.0, %v1534
    %1536 = vmatmul.f32.gmra.mxu0 %v1377
    %v1537 = vpop.f32.mrf.mxu0
    %v1538 = vadd.f32 0.0, %v1537
    %1539 = vmatmul.f32.gmra.mxu0 %v1379
    %v1540 = vpop.f32.mrf.mxu0
    %v1541 = vadd.f32 0.0, %v1540
    %1542 = vmatmul.f32.gmra.mxu0 %v1381
    %v1543 = vpop.f32.mrf.mxu0
    %v1544 = vadd.f32 0.0, %v1543
    %1545 = vmatmul.f32.gmra.mxu0 %v1383
    %v1546 = vpop.f32.mrf.mxu0
    %v1547 = vadd.f32 0.0, %v1546
    %1548 = vmatmul.f32.gmra.mxu0 %v1385
    %v1549 = vpop.f32.mrf.mxu0
    %v1550 = vadd.f32 0.0, %v1549
    %1551 = vmatmul.f32.gmra.mxu0 %v1387
    %v1552 = vpop.f32.mrf.mxu0
    %v1553 = vadd.f32 0.0, %v1552
    %1554 = vmatmul.f32.gmra.mxu0 %v1389
    %v1555 = vpop.f32.mrf.mxu0
    %v1556 = vadd.f32 0.0, %v1555
    %1557 = vmatmul.f32.gmra.mxu0 %v1391
    %v1558 = vpop.f32.mrf.mxu0
    %v1559 = vadd.f32 0.0, %v1558
    %1560 = vmatmul.f32.gmra.mxu0 %v1393
    %v1561 = vpop.f32.mrf.mxu0
    %v1562 = vadd.f32 0.0, %v1561
    %1563 = vmatmul.f32.gmra.mxu0 %v1395
    %v1564 = vpop.f32.mrf.mxu0
    %v1565 = vadd.f32 0.0, %v1564
    %1566 = vmatmul.f32.gmra.mxu0 %v1397
    %v1567 = vpop.f32.mrf.mxu0
    %v1568 = vadd.f32 0.0, %v1567
    %1569 = vmatmul.f32.gmra.mxu0 %v1399
    %v1570 = vpop.f32.mrf.mxu0
    %v1571 = vadd.f32 0.0, %v1570
    %1572 = vdwg.mxu0
    %v1573 = vadd.f32 %v1264, %v1457
    %v1574 = vadd.f32 %v1265, %v1460
    %v1575 = vadd.f32 %v1266, %v1463
    %v1576 = vadd.f32 %v1267, %v1466
    %v1577 = vadd.f32 %v1268, %v1469
    %v1578 = vadd.f32 %v1269, %v1472
    %v1579 = vadd.f32 %v1270, %v1475
    %v1580 = vadd.f32 %v1271, %v1478
    %v1581 = vadd.f32 %v1272, %v1481
    %v1582 = vadd.f32 %v1273, %v1484
    %v1583 = vadd.f32 %v1274, %v1487
    %v1584 = vadd.f32 %v1275, %v1490
    %v1585 = vadd.f32 %v1276, %v1493
    %v1586 = vadd.f32 %v1277, %v1496
    %v1587 = vadd.f32 %v1278, %v1499
    %v1588 = vadd.f32 %v1279, %v1502
    %v1589 = vadd.f32 %v1280, %v1505
    %v1590 = vadd.f32 %v1281, %v1508
    %v1591 = vadd.f32 %v1282, %v1511
    %v1592 = vadd.f32 %v1283, %v1514
    %v1593 = vadd.f32 %v1284, %v1517
    %v1594 = vadd.f32 %v1285, %v1520
    %v1595 = vadd.f32 %v1286, %v1523
    %v1596 = vadd.f32 %v1287, %v1526
    %v1597 = vadd.f32 %v1288, %v1529
    %v1598 = vadd.f32 %v1289, %v1532
    %v1599 = vadd.f32 %v1290, %v1535
    %v1600 = vadd.f32 %v1291, %v1538
    %v1601 = vadd.f32 %v1292, %v1541
    %v1602 = vadd.f32 %v1293, %v1544
    %v1603 = vadd.f32 %v1294, %v1547
    %v1604 = vadd.f32 %v1295, %v1550
    %v1605 = vadd.f32 %v1296, %v1553
    %v1606 = vadd.f32 %v1297, %v1556
    %v1607 = vadd.f32 %v1298, %v1559
    %v1608 = vadd.f32 %v1299, %v1562
    %v1609 = vadd.f32 %v1300, %v1565
    %v1610 = vadd.f32 %v1301, %v1568
    %v1611 = vadd.f32 %v1302, %v1571
    %v1612 = vld [vmem:[#allocation7] sm:$0x1]
    %v1614 = vperm.slane %v1612, 0
    %v1616 = vadd.f32 %v1573, %v1614
    %v1617 = vadd.f32 %v1574, %v1614
    %v1618 = vadd.f32 %v1575, %v1614
    %v1619 = vadd.f32 %v1576, %v1614
    %v1620 = vadd.f32 %v1577, %v1614
    %v1621 = vadd.f32 %v1578, %v1614
    %v1622 = vadd.f32 %v1579, %v1614
    %v1623 = vadd.f32 %v1580, %v1614
    %v1624 = vadd.f32 %v1581, %v1614
    %v1625 = vadd.f32 %v1582, %v1614
    %v1626 = vadd.f32 %v1583, %v1614
    %v1627 = vadd.f32 %v1584, %v1614
    %v1628 = vadd.f32 %v1585, %v1614
    %v1629 = vadd.f32 %v1586, %v1614
    %v1630 = vadd.f32 %v1587, %v1614
    %v1631 = vadd.f32 %v1588, %v1614
    %v1632 = vadd.f32 %v1589, %v1614
    %v1633 = vadd.f32 %v1590, %v1614
    %v1634 = vadd.f32 %v1591, %v1614
    %v1635 = vadd.f32 %v1592, %v1614
    %v1636 = vadd.f32 %v1593, %v1614
    %v1637 = vadd.f32 %v1594, %v1614
    %v1638 = vadd.f32 %v1595, %v1614
    %v1639 = vadd.f32 %v1596, %v1614
    %v1640 = vadd.f32 %v1597, %v1614
    %v1641 = vadd.f32 %v1598, %v1614
    %v1642 = vadd.f32 %v1599, %v1614
    %v1643 = vadd.f32 %v1600, %v1614
    %v1644 = vadd.f32 %v1601, %v1614
    %v1645 = vadd.f32 %v1602, %v1614
    %v1646 = vadd.f32 %v1603, %v1614
    %v1647 = vadd.f32 %v1604, %v1614
    %v1648 = vadd.f32 %v1605, %v1614
    %v1649 = vadd.f32 %v1606, %v1614
    %v1650 = vadd.f32 %v1607, %v1614
    %v1651 = vadd.f32 %v1608, %v1614
    %v1652 = vadd.f32 %v1609, %v1614
    %v1653 = vadd.f32 %v1610, %v1614
    %v1654 = vadd.f32 %v1611, %v1614
    %v1655 = vmax.f32 %v1616, 0.0
    %v1656 = vmax.f32 %v1617, 0.0
    %v1657 = vmax.f32 %v1618, 0.0
    %v1658 = vmax.f32 %v1619, 0.0
    %v1659 = vmax.f32 %v1620, 0.0
    %v1660 = vmax.f32 %v1621, 0.0
    %v1661 = vmax.f32 %v1622, 0.0
    %v1662 = vmax.f32 %v1623, 0.0
    %v1663 = vmax.f32 %v1624, 0.0
    %v1664 = vmax.f32 %v1625, 0.0
    %v1665 = vmax.f32 %v1626, 0.0
    %v1666 = vmax.f32 %v1627, 0.0
    %v1667 = vmax.f32 %v1628, 0.0
    %v1668 = vmax.f32 %v1629, 0.0
    %v1669 = vmax.f32 %v1630, 0.0
    %v1670 = vmax.f32 %v1631, 0.0
    %v1671 = vmax.f32 %v1632, 0.0
    %v1672 = vmax.f32 %v1633, 0.0
    %v1673 = vmax.f32 %v1634, 0.0
    %v1674 = vmax.f32 %v1635, 0.0
    %v1675 = vmax.f32 %v1636, 0.0
    %v1676 = vmax.f32 %v1637, 0.0
    %v1677 = vmax.f32 %v1638, 0.0
    %v1678 = vmax.f32 %v1639, 0.0
    %v1679 = vmax.f32 %v1640, 0.0
    %v1680 = vmax.f32 %v1641, 0.0
    %v1681 = vmax.f32 %v1642, 0.0
    %v1682 = vmax.f32 %v1643, 0.0
    %v1683 = vmax.f32 %v1644, 0.0
    %v1684 = vmax.f32 %v1645, 0.0
    %v1685 = vmax.f32 %v1646, 0.0
    %v1686 = vmax.f32 %v1647, 0.0
    %v1687 = vmax.f32 %v1648, 0.0
    %v1688 = vmax.f32 %v1649, 0.0
    %v1689 = vmax.f32 %v1650, 0.0
    %v1690 = vmax.f32 %v1651, 0.0
    %v1691 = vmax.f32 %v1652, 0.0
    %v1692 = vmax.f32 %v1653, 0.0
    %v1693 = vmax.f32 %v1654, 0.0
    %s1694 = scalar_lea.vmem [#allocation5], 640
    %v1695 = vld [vmem:[%s1694] sm:$0xff]
    %v1696 = vld [vmem:[%s1694 + $0x8] sm:$0xff]
    %v1697 = vld [vmem:[%s1694 + $0x10] sm:$0xff]
    %v1698 = vld [vmem:[%s1694 + $0x18] sm:$0xff]
    %v1699 = vld [vmem:[%s1694 + $0x20] sm:$0xff]
    %v1700 = vld [vmem:[%s1694 + $0x28] sm:$0xff]
    %v1701 = vld [vmem:[%s1694 + $0x30] sm:$0xff]
    %v1702 = vld [vmem:[%s1694 + $0x38] sm:$0xff]
    %v1703 = vld [vmem:[%s1694 + $0x40] sm:$0xff]
    %v1704 = vld [vmem:[%s1694 + $0x48] sm:$0xff]
    %v1705 = vld [vmem:[%s1694 + $0x50] sm:$0xff]
    %v1706 = vld [vmem:[%s1694 + $0x58] sm:$0xff]
    %v1707 = vld [vmem:[%s1694 + $0x60] sm:$0xff]
    %v1708 = vld [vmem:[%s1694 + $0x68] sm:$0xff]
    %v1709 = vld [vmem:[%s1694 + $0x70] sm:$0xff]
    %v1710 = vld [vmem:[%s1694 + $0x78] sm:$0xff]
    %s1711 = scalar_lea.vmem [#allocation5], 768
    %v1712 = vld [vmem:[%s1711] sm:$0xff]
    %v1713 = vld [vmem:[%s1711 + $0x8] sm:$0xff]
    %v1714 = vld [vmem:[%s1711 + $0x10] sm:$0xff]
    %v1715 = vld [vmem:[%s1711 + $0x18] sm:$0xff]
    %v1716 = vld [vmem:[%s1711 + $0x20] sm:$0xff]
    %v1717 = vld [vmem:[%s1711 + $0x28] sm:$0xff]
    %v1718 = vld [vmem:[%s1711 + $0x30] sm:$0xff]
    %v1719 = vld [vmem:[%s1711 + $0x38] sm:$0xff]
    %v1720 = vld [vmem:[%s1711 + $0x40] sm:$0xff]
    %v1721 = vld [vmem:[%s1711 + $0x48] sm:$0xff]
    %v1722 = vld [vmem:[%s1711 + $0x50] sm:$0xff]
    %v1723 = vld [vmem:[%s1711 + $0x58] sm:$0xff]
    %v1724 = vld [vmem:[%s1711 + $0x60] sm:$0xff]
    %v1725 = vld [vmem:[%s1711 + $0x68] sm:$0xff]
    %v1726 = vld [vmem:[%s1711 + $0x70] sm:$0xff]
    %v1727 = vld [vmem:[%s1711 + $0x78] sm:$0xff]
    %1728 = vmatpush.msra.mxu0 %v1727
    %1729 = vmatpush.msra.mxu0 %v1726
    %1730 = vmatpush.msra.mxu0 %v1725
    %1731 = vmatpush.msra.mxu0 %v1724
    %1732 = vmatpush.msra.mxu0 %v1723
    %1733 = vmatpush.msra.mxu0 %v1722
    %1734 = vmatpush.msra.mxu0 %v1721
    %1735 = vmatpush.msra.mxu0 %v1720
    %1736 = vmatpush.msra.mxu0 %v1719
    %1737 = vmatpush.msra.mxu0 %v1718
    %1738 = vmatpush.msra.mxu0 %v1717
    %1739 = vmatpush.msra.mxu0 %v1716
    %1740 = vmatpush.msra.mxu0 %v1715
    %1741 = vmatpush.msra.mxu0 %v1714
    %1742 = vmatpush.msra.mxu0 %v1713
    %1743 = vmatpush.msra.mxu0 %v1712
    %1744 = vmatmul.f32.gmra.mxu0 %v301
    %v1745 = vpop.f32.mrf.mxu0
    %v1746 = vadd.f32 0.0, %v1745
    %1747 = vmatmul.f32.gmra.mxu0 %v303
    %v1748 = vpop.f32.mrf.mxu0
    %v1749 = vadd.f32 0.0, %v1748
    %1750 = vmatmul.f32.gmra.mxu0 %v305
    %v1751 = vpop.f32.mrf.mxu0
    %v1752 = vadd.f32 0.0, %v1751
    %1753 = vmatmul.f32.gmra.mxu0 %v307
    %v1754 = vpop.f32.mrf.mxu0
    %v1755 = vadd.f32 0.0, %v1754
    %1756 = vmatmul.f32.gmra.mxu0 %v309
    %v1757 = vpop.f32.mrf.mxu0
    %v1758 = vadd.f32 0.0, %v1757
    %1759 = vmatmul.f32.gmra.mxu0 %v311
    %v1760 = vpop.f32.mrf.mxu0
    %v1761 = vadd.f32 0.0, %v1760
    %1762 = vmatmul.f32.gmra.mxu0 %v313
    %v1763 = vpop.f32.mrf.mxu0
    %v1764 = vadd.f32 0.0, %v1763
    %1765 = vmatmul.f32.gmra.mxu0 %v315
    %v1766 = vpop.f32.mrf.mxu0
    %v1767 = vadd.f32 0.0, %v1766
    %1768 = vmatmul.f32.gmra.mxu0 %v317
    %v1769 = vpop.f32.mrf.mxu0
    %v1770 = vadd.f32 0.0, %v1769
    %1771 = vmatmul.f32.gmra.mxu0 %v319
    %v1772 = vpop.f32.mrf.mxu0
    %v1773 = vadd.f32 0.0, %v1772
    %1774 = vmatmul.f32.gmra.mxu0 %v321
    %v1775 = vpop.f32.mrf.mxu0
    %v1776 = vadd.f32 0.0, %v1775
    %1777 = vmatmul.f32.gmra.mxu0 %v323
    %v1778 = vpop.f32.mrf.mxu0
    %v1779 = vadd.f32 0.0, %v1778
    %1780 = vmatmul.f32.gmra.mxu0 %v325
    %v1781 = vpop.f32.mrf.mxu0
    %v1782 = vadd.f32 0.0, %v1781
    %1783 = vmatmul.f32.gmra.mxu0 %v327
    %v1784 = vpop.f32.mrf.mxu0
    %v1785 = vadd.f32 0.0, %v1784
    %1786 = vmatmul.f32.gmra.mxu0 %v329
    %v1787 = vpop.f32.mrf.mxu0
    %v1788 = vadd.f32 0.0, %v1787
    %1789 = vmatmul.f32.gmra.mxu0 %v331
    %v1790 = vpop.f32.mrf.mxu0
    %v1791 = vadd.f32 0.0, %v1790
    %1792 = vmatmul.f32.gmra.mxu0 %v333
    %v1793 = vpop.f32.mrf.mxu0
    %v1794 = vadd.f32 0.0, %v1793
    %1795 = vmatmul.f32.gmra.mxu0 %v335
    %v1796 = vpop.f32.mrf.mxu0
    %v1797 = vadd.f32 0.0, %v1796
    %1798 = vmatmul.f32.gmra.mxu0 %v337
    %v1799 = vpop.f32.mrf.mxu0
    %v1800 = vadd.f32 0.0, %v1799
    %1801 = vmatmul.f32.gmra.mxu0 %v339
    %v1802 = vpop.f32.mrf.mxu0
    %v1803 = vadd.f32 0.0, %v1802
    %1804 = vmatmul.f32.gmra.mxu0 %v341
    %v1805 = vpop.f32.mrf.mxu0
    %v1806 = vadd.f32 0.0, %v1805
    %1807 = vmatmul.f32.gmra.mxu0 %v343
    %v1808 = vpop.f32.mrf.mxu0
    %v1809 = vadd.f32 0.0, %v1808
    %1810 = vmatmul.f32.gmra.mxu0 %v345
    %v1811 = vpop.f32.mrf.mxu0
    %v1812 = vadd.f32 0.0, %v1811
    %1813 = vmatmul.f32.gmra.mxu0 %v347
    %v1814 = vpop.f32.mrf.mxu0
    %v1815 = vadd.f32 0.0, %v1814
    %1816 = vmatmul.f32.gmra.mxu0 %v349
    %v1817 = vpop.f32.mrf.mxu0
    %v1818 = vadd.f32 0.0, %v1817
    %1819 = vmatmul.f32.gmra.mxu0 %v351
    %v1820 = vpop.f32.mrf.mxu0
    %v1821 = vadd.f32 0.0, %v1820
    %1822 = vmatmul.f32.gmra.mxu0 %v353
    %v1823 = vpop.f32.mrf.mxu0
    %v1824 = vadd.f32 0.0, %v1823
    %1825 = vmatmul.f32.gmra.mxu0 %v355
    %v1826 = vpop.f32.mrf.mxu0
    %v1827 = vadd.f32 0.0, %v1826
    %1828 = vmatmul.f32.gmra.mxu0 %v357
    %v1829 = vpop.f32.mrf.mxu0
    %v1830 = vadd.f32 0.0, %v1829
    %1831 = vmatmul.f32.gmra.mxu0 %v359
    %v1832 = vpop.f32.mrf.mxu0
    %v1833 = vadd.f32 0.0, %v1832
    %1834 = vmatmul.f32.gmra.mxu0 %v361
    %v1835 = vpop.f32.mrf.mxu0
    %v1836 = vadd.f32 0.0, %v1835
    %1837 = vmatmul.f32.gmra.mxu0 %v363
    %v1838 = vpop.f32.mrf.mxu0
    %v1839 = vadd.f32 0.0, %v1838
    %1840 = vmatmul.f32.gmra.mxu0 %v365
    %v1841 = vpop.f32.mrf.mxu0
    %v1842 = vadd.f32 0.0, %v1841
    %1843 = vmatmul.f32.gmra.mxu0 %v367
    %v1844 = vpop.f32.mrf.mxu0
    %v1845 = vadd.f32 0.0, %v1844
    %1846 = vmatmul.f32.gmra.mxu0 %v369
    %v1847 = vpop.f32.mrf.mxu0
    %v1848 = vadd.f32 0.0, %v1847
    %1849 = vmatmul.f32.gmra.mxu0 %v371
    %v1850 = vpop.f32.mrf.mxu0
    %v1851 = vadd.f32 0.0, %v1850
    %1852 = vmatmul.f32.gmra.mxu0 %v373
    %v1853 = vpop.f32.mrf.mxu0
    %v1854 = vadd.f32 0.0, %v1853
    %1855 = vmatmul.f32.gmra.mxu0 %v375
    %v1856 = vpop.f32.mrf.mxu0
    %v1857 = vadd.f32 0.0, %v1856
    %1858 = vmatmul.f32.gmra.mxu0 %v377
    %v1859 = vpop.f32.mrf.mxu0
    %v1860 = vadd.f32 0.0, %v1859
    %1861 = vdwg.mxu0
    %1862 = vmatpush.msra.mxu0 %v1710
    %1863 = vmatpush.msra.mxu0 %v1709
    %1864 = vmatpush.msra.mxu0 %v1708
    %1865 = vmatpush.msra.mxu0 %v1707
    %1866 = vmatpush.msra.mxu0 %v1706
    %1867 = vmatpush.msra.mxu0 %v1705
    %1868 = vmatpush.msra.mxu0 %v1704
    %1869 = vmatpush.msra.mxu0 %v1703
    %1870 = vmatpush.msra.mxu0 %v1702
    %1871 = vmatpush.msra.mxu0 %v1701
    %1872 = vmatpush.msra.mxu0 %v1700
    %1873 = vmatpush.msra.mxu0 %v1699
    %1874 = vmatpush.msra.mxu0 %v1698
    %1875 = vmatpush.msra.mxu0 %v1697
    %1876 = vmatpush.msra.mxu0 %v1696
    %1877 = vmatpush.msra.mxu0 %v1695
    %1878 = vmatmul.f32.gmra.mxu0 %v185
    %v1879 = vpop.f32.mrf.mxu0
    %v1880 = vadd.f32 %v1746, %v1879
    %1881 = vmatmul.f32.gmra.mxu0 %v186
    %v1882 = vpop.f32.mrf.mxu0
    %v1883 = vadd.f32 %v1749, %v1882
    %1884 = vmatmul.f32.gmra.mxu0 %v187
    %v1885 = vpop.f32.mrf.mxu0
    %v1886 = vadd.f32 %v1752, %v1885
    %1887 = vmatmul.f32.gmra.mxu0 %v188
    %v1888 = vpop.f32.mrf.mxu0
    %v1889 = vadd.f32 %v1755, %v1888
    %1890 = vmatmul.f32.gmra.mxu0 %v189
    %v1891 = vpop.f32.mrf.mxu0
    %v1892 = vadd.f32 %v1758, %v1891
    %1893 = vmatmul.f32.gmra.mxu0 %v190
    %v1894 = vpop.f32.mrf.mxu0
    %v1895 = vadd.f32 %v1761, %v1894
    %1896 = vmatmul.f32.gmra.mxu0 %v191
    %v1897 = vpop.f32.mrf.mxu0
    %v1898 = vadd.f32 %v1764, %v1897
    %1899 = vmatmul.f32.gmra.mxu0 %v192
    %v1900 = vpop.f32.mrf.mxu0
    %v1901 = vadd.f32 %v1767, %v1900
    %1902 = vmatmul.f32.gmra.mxu0 %v193
    %v1903 = vpop.f32.mrf.mxu0
    %v1904 = vadd.f32 %v1770, %v1903
    %1905 = vmatmul.f32.gmra.mxu0 %v194
    %v1906 = vpop.f32.mrf.mxu0
    %v1907 = vadd.f32 %v1773, %v1906
    %1908 = vmatmul.f32.gmra.mxu0 %v195
    %v1909 = vpop.f32.mrf.mxu0
    %v1910 = vadd.f32 %v1776, %v1909
    %1911 = vmatmul.f32.gmra.mxu0 %v196
    %v1912 = vpop.f32.mrf.mxu0
    %v1913 = vadd.f32 %v1779, %v1912
    %1914 = vmatmul.f32.gmra.mxu0 %v197
    %v1915 = vpop.f32.mrf.mxu0
    %v1916 = vadd.f32 %v1782, %v1915
    %1917 = vmatmul.f32.gmra.mxu0 %v198
    %v1918 = vpop.f32.mrf.mxu0
    %v1919 = vadd.f32 %v1785, %v1918
    %1920 = vmatmul.f32.gmra.mxu0 %v199
    %v1921 = vpop.f32.mrf.mxu0
    %v1922 = vadd.f32 %v1788, %v1921
    %1923 = vmatmul.f32.gmra.mxu0 %v200
    %v1924 = vpop.f32.mrf.mxu0
    %v1925 = vadd.f32 %v1791, %v1924
    %1926 = vmatmul.f32.gmra.mxu0 %v201
    %v1927 = vpop.f32.mrf.mxu0
    %v1928 = vadd.f32 %v1794, %v1927
    %1929 = vmatmul.f32.gmra.mxu0 %v202
    %v1930 = vpop.f32.mrf.mxu0
    %v1931 = vadd.f32 %v1797, %v1930
    %1932 = vmatmul.f32.gmra.mxu0 %v203
    %v1933 = vpop.f32.mrf.mxu0
    %v1934 = vadd.f32 %v1800, %v1933
    %1935 = vmatmul.f32.gmra.mxu0 %v204
    %v1936 = vpop.f32.mrf.mxu0
    %v1937 = vadd.f32 %v1803, %v1936
    %1938 = vmatmul.f32.gmra.mxu0 %v205
    %v1939 = vpop.f32.mrf.mxu0
    %v1940 = vadd.f32 %v1806, %v1939
    %1941 = vmatmul.f32.gmra.mxu0 %v206
    %v1942 = vpop.f32.mrf.mxu0
    %v1943 = vadd.f32 %v1809, %v1942
    %1944 = vmatmul.f32.gmra.mxu0 %v207
    %v1945 = vpop.f32.mrf.mxu0
    %v1946 = vadd.f32 %v1812, %v1945
    %1947 = vmatmul.f32.gmra.mxu0 %v208
    %v1948 = vpop.f32.mrf.mxu0
    %v1949 = vadd.f32 %v1815, %v1948
    %1950 = vmatmul.f32.gmra.mxu0 %v209
    %v1951 = vpop.f32.mrf.mxu0
    %v1952 = vadd.f32 %v1818, %v1951
    %1953 = vmatmul.f32.gmra.mxu0 %v210
    %v1954 = vpop.f32.mrf.mxu0
    %v1955 = vadd.f32 %v1821, %v1954
    %1956 = vmatmul.f32.gmra.mxu0 %v211
    %v1957 = vpop.f32.mrf.mxu0
    %v1958 = vadd.f32 %v1824, %v1957
    %1959 = vmatmul.f32.gmra.mxu0 %v212
    %v1960 = vpop.f32.mrf.mxu0
    %v1961 = vadd.f32 %v1827, %v1960
    %1962 = vmatmul.f32.gmra.mxu0 %v213
    %v1963 = vpop.f32.mrf.mxu0
    %v1964 = vadd.f32 %v1830, %v1963
    %1965 = vmatmul.f32.gmra.mxu0 %v214
    %v1966 = vpop.f32.mrf.mxu0
    %v1967 = vadd.f32 %v1833, %v1966
    %1968 = vmatmul.f32.gmra.mxu0 %v215
    %v1969 = vpop.f32.mrf.mxu0
    %v1970 = vadd.f32 %v1836, %v1969
    %1971 = vmatmul.f32.gmra.mxu0 %v216
    %v1972 = vpop.f32.mrf.mxu0
    %v1973 = vadd.f32 %v1839, %v1972
    %1974 = vmatmul.f32.gmra.mxu0 %v217
    %v1975 = vpop.f32.mrf.mxu0
    %v1976 = vadd.f32 %v1842, %v1975
    %1977 = vmatmul.f32.gmra.mxu0 %v218
    %v1978 = vpop.f32.mrf.mxu0
    %v1979 = vadd.f32 %v1845, %v1978
    %1980 = vmatmul.f32.gmra.mxu0 %v219
    %v1981 = vpop.f32.mrf.mxu0
    %v1982 = vadd.f32 %v1848, %v1981
    %1983 = vmatmul.f32.gmra.mxu0 %v220
    %v1984 = vpop.f32.mrf.mxu0
    %v1985 = vadd.f32 %v1851, %v1984
    %1986 = vmatmul.f32.gmra.mxu0 %v221
    %v1987 = vpop.f32.mrf.mxu0
    %v1988 = vadd.f32 %v1854, %v1987
    %1989 = vmatmul.f32.gmra.mxu0 %v222
    %v1990 = vpop.f32.mrf.mxu0
    %v1991 = vadd.f32 %v1857, %v1990
    %1992 = vmatmul.f32.gmra.mxu0 %v223
    %v1993 = vpop.f32.mrf.mxu0
    %v1994 = vadd.f32 %v1860, %v1993
    %1995 = vdwg.mxu0
    %s1996 = scalar_lea.vmem [#allocation5], 896
    %v1997 = vld [vmem:[%s1996] sm:$0xff]
    %v1998 = vld [vmem:[%s1996 + $0x8] sm:$0xff]
    %v1999 = vld [vmem:[%s1996 + $0x10] sm:$0xff]
    %v2000 = vld [vmem:[%s1996 + $0x18] sm:$0xff]
    %v2001 = vld [vmem:[%s1996 + $0x20] sm:$0xff]
    %v2002 = vld [vmem:[%s1996 + $0x28] sm:$0xff]
    %v2003 = vld [vmem:[%s1996 + $0x30] sm:$0xff]
    %v2004 = vld [vmem:[%s1996 + $0x38] sm:$0xff]
    %v2005 = vld [vmem:[%s1996 + $0x40] sm:$0xff]
    %v2006 = vld [vmem:[%s1996 + $0x48] sm:$0xff]
    %v2007 = vld [vmem:[%s1996 + $0x50] sm:$0xff]
    %v2008 = vld [vmem:[%s1996 + $0x58] sm:$0xff]
    %v2009 = vld [vmem:[%s1996 + $0x60] sm:$0xff]
    %v2010 = vld [vmem:[%s1996 + $0x68] sm:$0xff]
    %v2011 = vld [vmem:[%s1996 + $0x70] sm:$0xff]
    %v2012 = vld [vmem:[%s1996 + $0x78] sm:$0xff]
    %2013 = vmatpush.msra.mxu0 %v2012
    %2014 = vmatpush.msra.mxu0 %v2011
    %2015 = vmatpush.msra.mxu0 %v2010
    %2016 = vmatpush.msra.mxu0 %v2009
    %2017 = vmatpush.msra.mxu0 %v2008
    %2018 = vmatpush.msra.mxu0 %v2007
    %2019 = vmatpush.msra.mxu0 %v2006
    %2020 = vmatpush.msra.mxu0 %v2005
    %2021 = vmatpush.msra.mxu0 %v2004
    %2022 = vmatpush.msra.mxu0 %v2003
    %2023 = vmatpush.msra.mxu0 %v2002
    %2024 = vmatpush.msra.mxu0 %v2001
    %2025 = vmatpush.msra.mxu0 %v2000
    %2026 = vmatpush.msra.mxu0 %v1999
    %2027 = vmatpush.msra.mxu0 %v1998
    %2028 = vmatpush.msra.mxu0 %v1997
    %2029 = vmatmul.f32.gmra.mxu0 %v705
    %v2030 = vpop.f32.mrf.mxu0
    %v2031 = vadd.f32 0.0, %v2030
    %2032 = vmatmul.f32.gmra.mxu0 %v707
    %v2033 = vpop.f32.mrf.mxu0
    %v2034 = vadd.f32 0.0, %v2033
    %2035 = vmatmul.f32.gmra.mxu0 %v709
    %v2036 = vpop.f32.mrf.mxu0
    %v2037 = vadd.f32 0.0, %v2036
    %2038 = vmatmul.f32.gmra.mxu0 %v711
    %v2039 = vpop.f32.mrf.mxu0
    %v2040 = vadd.f32 0.0, %v2039
    %2041 = vmatmul.f32.gmra.mxu0 %v713
    %v2042 = vpop.f32.mrf.mxu0
    %v2043 = vadd.f32 0.0, %v2042
    %2044 = vmatmul.f32.gmra.mxu0 %v715
    %v2045 = vpop.f32.mrf.mxu0
    %v2046 = vadd.f32 0.0, %v2045
    %2047 = vmatmul.f32.gmra.mxu0 %v717
    %v2048 = vpop.f32.mrf.mxu0
    %v2049 = vadd.f32 0.0, %v2048
    %2050 = vmatmul.f32.gmra.mxu0 %v719
    %v2051 = vpop.f32.mrf.mxu0
    %v2052 = vadd.f32 0.0, %v2051
    %2053 = vmatmul.f32.gmra.mxu0 %v721
    %v2054 = vpop.f32.mrf.mxu0
    %v2055 = vadd.f32 0.0, %v2054
    %2056 = vmatmul.f32.gmra.mxu0 %v723
    %v2057 = vpop.f32.mrf.mxu0
    %v2058 = vadd.f32 0.0, %v2057
    %2059 = vmatmul.f32.gmra.mxu0 %v725
    %v2060 = vpop.f32.mrf.mxu0
    %v2061 = vadd.f32 0.0, %v2060
    %2062 = vmatmul.f32.gmra.mxu0 %v727
    %v2063 = vpop.f32.mrf.mxu0
    %v2064 = vadd.f32 0.0, %v2063
    %2065 = vmatmul.f32.gmra.mxu0 %v729
    %v2066 = vpop.f32.mrf.mxu0
    %v2067 = vadd.f32 0.0, %v2066
    %2068 = vmatmul.f32.gmra.mxu0 %v731
    %v2069 = vpop.f32.mrf.mxu0
    %v2070 = vadd.f32 0.0, %v2069
    %2071 = vmatmul.f32.gmra.mxu0 %v733
    %v2072 = vpop.f32.mrf.mxu0
    %v2073 = vadd.f32 0.0, %v2072
    %2074 = vmatmul.f32.gmra.mxu0 %v735
    %v2075 = vpop.f32.mrf.mxu0
    %v2076 = vadd.f32 0.0, %v2075
    %2077 = vmatmul.f32.gmra.mxu0 %v737
    %v2078 = vpop.f32.mrf.mxu0
    %v2079 = vadd.f32 0.0, %v2078
    %2080 = vmatmul.f32.gmra.mxu0 %v739
    %v2081 = vpop.f32.mrf.mxu0
    %v2082 = vadd.f32 0.0, %v2081
    %2083 = vmatmul.f32.gmra.mxu0 %v741
    %v2084 = vpop.f32.mrf.mxu0
    %v2085 = vadd.f32 0.0, %v2084
    %2086 = vmatmul.f32.gmra.mxu0 %v743
    %v2087 = vpop.f32.mrf.mxu0
    %v2088 = vadd.f32 0.0, %v2087
    %2089 = vmatmul.f32.gmra.mxu0 %v745
    %v2090 = vpop.f32.mrf.mxu0
    %v2091 = vadd.f32 0.0, %v2090
    %2092 = vmatmul.f32.gmra.mxu0 %v747
    %v2093 = vpop.f32.mrf.mxu0
    %v2094 = vadd.f32 0.0, %v2093
    %2095 = vmatmul.f32.gmra.mxu0 %v749
    %v2096 = vpop.f32.mrf.mxu0
    %v2097 = vadd.f32 0.0, %v2096
    %2098 = vmatmul.f32.gmra.mxu0 %v751
    %v2099 = vpop.f32.mrf.mxu0
    %v2100 = vadd.f32 0.0, %v2099
    %2101 = vmatmul.f32.gmra.mxu0 %v753
    %v2102 = vpop.f32.mrf.mxu0
    %v2103 = vadd.f32 0.0, %v2102
    %2104 = vmatmul.f32.gmra.mxu0 %v755
    %v2105 = vpop.f32.mrf.mxu0
    %v2106 = vadd.f32 0.0, %v2105
    %2107 = vmatmul.f32.gmra.mxu0 %v757
    %v2108 = vpop.f32.mrf.mxu0
    %v2109 = vadd.f32 0.0, %v2108
    %2110 = vmatmul.f32.gmra.mxu0 %v759
    %v2111 = vpop.f32.mrf.mxu0
    %v2112 = vadd.f32 0.0, %v2111
    %2113 = vmatmul.f32.gmra.mxu0 %v761
    %v2114 = vpop.f32.mrf.mxu0
    %v2115 = vadd.f32 0.0, %v2114
    %2116 = vmatmul.f32.gmra.mxu0 %v763
    %v2117 = vpop.f32.mrf.mxu0
    %v2118 = vadd.f32 0.0, %v2117
    %2119 = vmatmul.f32.gmra.mxu0 %v765
    %v2120 = vpop.f32.mrf.mxu0
    %v2121 = vadd.f32 0.0, %v2120
    %2122 = vmatmul.f32.gmra.mxu0 %v767
    %v2123 = vpop.f32.mrf.mxu0
    %v2124 = vadd.f32 0.0, %v2123
    %2125 = vmatmul.f32.gmra.mxu0 %v769
    %v2126 = vpop.f32.mrf.mxu0
    %v2127 = vadd.f32 0.0, %v2126
    %2128 = vmatmul.f32.gmra.mxu0 %v771
    %v2129 = vpop.f32.mrf.mxu0
    %v2130 = vadd.f32 0.0, %v2129
    %2131 = vmatmul.f32.gmra.mxu0 %v773
    %v2132 = vpop.f32.mrf.mxu0
    %v2133 = vadd.f32 0.0, %v2132
    %2134 = vmatmul.f32.gmra.mxu0 %v775
    %v2135 = vpop.f32.mrf.mxu0
    %v2136 = vadd.f32 0.0, %v2135
    %2137 = vmatmul.f32.gmra.mxu0 %v777
    %v2138 = vpop.f32.mrf.mxu0
    %v2139 = vadd.f32 0.0, %v2138
    %2140 = vmatmul.f32.gmra.mxu0 %v779
    %v2141 = vpop.f32.mrf.mxu0
    %v2142 = vadd.f32 0.0, %v2141
    %2143 = vmatmul.f32.gmra.mxu0 %v781
    %v2144 = vpop.f32.mrf.mxu0
    %v2145 = vadd.f32 0.0, %v2144
    %2146 = vdwg.mxu0
    %v2147 = vadd.f32 %v1880, %v2031
    %v2148 = vadd.f32 %v1883, %v2034
    %v2149 = vadd.f32 %v1886, %v2037
    %v2150 = vadd.f32 %v1889, %v2040
    %v2151 = vadd.f32 %v1892, %v2043
    %v2152 = vadd.f32 %v1895, %v2046
    %v2153 = vadd.f32 %v1898, %v2049
    %v2154 = vadd.f32 %v1901, %v2052
    %v2155 = vadd.f32 %v1904, %v2055
    %v2156 = vadd.f32 %v1907, %v2058
    %v2157 = vadd.f32 %v1910, %v2061
    %v2158 = vadd.f32 %v1913, %v2064
    %v2159 = vadd.f32 %v1916, %v2067
    %v2160 = vadd.f32 %v1919, %v2070
    %v2161 = vadd.f32 %v1922, %v2073
    %v2162 = vadd.f32 %v1925, %v2076
    %v2163 = vadd.f32 %v1928, %v2079
    %v2164 = vadd.f32 %v1931, %v2082
    %v2165 = vadd.f32 %v1934, %v2085
    %v2166 = vadd.f32 %v1937, %v2088
    %v2167 = vadd.f32 %v1940, %v2091
    %v2168 = vadd.f32 %v1943, %v2094
    %v2169 = vadd.f32 %v1946, %v2097
    %v2170 = vadd.f32 %v1949, %v2100
    %v2171 = vadd.f32 %v1952, %v2103
    %v2172 = vadd.f32 %v1955, %v2106
    %v2173 = vadd.f32 %v1958, %v2109
    %v2174 = vadd.f32 %v1961, %v2112
    %v2175 = vadd.f32 %v1964, %v2115
    %v2176 = vadd.f32 %v1967, %v2118
    %v2177 = vadd.f32 %v1970, %v2121
    %v2178 = vadd.f32 %v1973, %v2124
    %v2179 = vadd.f32 %v1976, %v2127
    %v2180 = vadd.f32 %v1979, %v2130
    %v2181 = vadd.f32 %v1982, %v2133
    %v2182 = vadd.f32 %v1985, %v2136
    %v2183 = vadd.f32 %v1988, %v2139
    %v2184 = vadd.f32 %v1991, %v2142
    %v2185 = vadd.f32 %v1994, %v2145
    %s2186 = scalar_lea.vmem [#allocation5], 1024
    %v2187 = vld [vmem:[%s2186] sm:$0xff]
    %v2188 = vld [vmem:[%s2186 + $0x8] sm:$0xff]
    %v2189 = vld [vmem:[%s2186 + $0x10] sm:$0xff]
    %v2190 = vld [vmem:[%s2186 + $0x18] sm:$0xff]
    %v2191 = vld [vmem:[%s2186 + $0x20] sm:$0xff]
    %v2192 = vld [vmem:[%s2186 + $0x28] sm:$0xff]
    %v2193 = vld [vmem:[%s2186 + $0x30] sm:$0xff]
    %v2194 = vld [vmem:[%s2186 + $0x38] sm:$0xff]
    %v2195 = vld [vmem:[%s2186 + $0x40] sm:$0xff]
    %v2196 = vld [vmem:[%s2186 + $0x48] sm:$0xff]
    %v2197 = vld [vmem:[%s2186 + $0x50] sm:$0xff]
    %v2198 = vld [vmem:[%s2186 + $0x58] sm:$0xff]
    %v2199 = vld [vmem:[%s2186 + $0x60] sm:$0xff]
    %v2200 = vld [vmem:[%s2186 + $0x68] sm:$0xff]
    %v2201 = vld [vmem:[%s2186 + $0x70] sm:$0xff]
    %v2202 = vld [vmem:[%s2186 + $0x78] sm:$0xff]
    %2203 = vmatpush.msra.mxu0 %v2202
    %2204 = vmatpush.msra.mxu0 %v2201
    %2205 = vmatpush.msra.mxu0 %v2200
    %2206 = vmatpush.msra.mxu0 %v2199
    %2207 = vmatpush.msra.mxu0 %v2198
    %2208 = vmatpush.msra.mxu0 %v2197
    %2209 = vmatpush.msra.mxu0 %v2196
    %2210 = vmatpush.msra.mxu0 %v2195
    %2211 = vmatpush.msra.mxu0 %v2194
    %2212 = vmatpush.msra.mxu0 %v2193
    %2213 = vmatpush.msra.mxu0 %v2192
    %2214 = vmatpush.msra.mxu0 %v2191
    %2215 = vmatpush.msra.mxu0 %v2190
    %2216 = vmatpush.msra.mxu0 %v2189
    %2217 = vmatpush.msra.mxu0 %v2188
    %2218 = vmatpush.msra.mxu0 %v2187
    %2219 = vmatmul.f32.gmra.mxu0 %v1014
    %v2220 = vpop.f32.mrf.mxu0
    %v2221 = vadd.f32 0.0, %v2220
    %2222 = vmatmul.f32.gmra.mxu0 %v1016
    %v2223 = vpop.f32.mrf.mxu0
    %v2224 = vadd.f32 0.0, %v2223
    %2225 = vmatmul.f32.gmra.mxu0 %v1018
    %v2226 = vpop.f32.mrf.mxu0
    %v2227 = vadd.f32 0.0, %v2226
    %2228 = vmatmul.f32.gmra.mxu0 %v1020
    %v2229 = vpop.f32.mrf.mxu0
    %v2230 = vadd.f32 0.0, %v2229
    %2231 = vmatmul.f32.gmra.mxu0 %v1022
    %v2232 = vpop.f32.mrf.mxu0
    %v2233 = vadd.f32 0.0, %v2232
    %2234 = vmatmul.f32.gmra.mxu0 %v1024
    %v2235 = vpop.f32.mrf.mxu0
    %v2236 = vadd.f32 0.0, %v2235
    %2237 = vmatmul.f32.gmra.mxu0 %v1026
    %v2238 = vpop.f32.mrf.mxu0
    %v2239 = vadd.f32 0.0, %v2238
    %2240 = vmatmul.f32.gmra.mxu0 %v1028
    %v2241 = vpop.f32.mrf.mxu0
    %v2242 = vadd.f32 0.0, %v2241
    %2243 = vmatmul.f32.gmra.mxu0 %v1030
    %v2244 = vpop.f32.mrf.mxu0
    %v2245 = vadd.f32 0.0, %v2244
    %2246 = vmatmul.f32.gmra.mxu0 %v1032
    %v2247 = vpop.f32.mrf.mxu0
    %v2248 = vadd.f32 0.0, %v2247
    %2249 = vmatmul.f32.gmra.mxu0 %v1034
    %v2250 = vpop.f32.mrf.mxu0
    %v2251 = vadd.f32 0.0, %v2250
    %2252 = vmatmul.f32.gmra.mxu0 %v1036
    %v2253 = vpop.f32.mrf.mxu0
    %v2254 = vadd.f32 0.0, %v2253
    %2255 = vmatmul.f32.gmra.mxu0 %v1038
    %v2256 = vpop.f32.mrf.mxu0
    %v2257 = vadd.f32 0.0, %v2256
    %2258 = vmatmul.f32.gmra.mxu0 %v1040
    %v2259 = vpop.f32.mrf.mxu0
    %v2260 = vadd.f32 0.0, %v2259
    %2261 = vmatmul.f32.gmra.mxu0 %v1042
    %v2262 = vpop.f32.mrf.mxu0
    %v2263 = vadd.f32 0.0, %v2262
    %2264 = vmatmul.f32.gmra.mxu0 %v1044
    %v2265 = vpop.f32.mrf.mxu0
    %v2266 = vadd.f32 0.0, %v2265
    %2267 = vmatmul.f32.gmra.mxu0 %v1046
    %v2268 = vpop.f32.mrf.mxu0
    %v2269 = vadd.f32 0.0, %v2268
    %2270 = vmatmul.f32.gmra.mxu0 %v1048
    %v2271 = vpop.f32.mrf.mxu0
    %v2272 = vadd.f32 0.0, %v2271
    %2273 = vmatmul.f32.gmra.mxu0 %v1050
    %v2274 = vpop.f32.mrf.mxu0
    %v2275 = vadd.f32 0.0, %v2274
    %2276 = vmatmul.f32.gmra.mxu0 %v1052
    %v2277 = vpop.f32.mrf.mxu0
    %v2278 = vadd.f32 0.0, %v2277
    %2279 = vmatmul.f32.gmra.mxu0 %v1054
    %v2280 = vpop.f32.mrf.mxu0
    %v2281 = vadd.f32 0.0, %v2280
    %2282 = vmatmul.f32.gmra.mxu0 %v1056
    %v2283 = vpop.f32.mrf.mxu0
    %v2284 = vadd.f32 0.0, %v2283
    %2285 = vmatmul.f32.gmra.mxu0 %v1058
    %v2286 = vpop.f32.mrf.mxu0
    %v2287 = vadd.f32 0.0, %v2286
    %2288 = vmatmul.f32.gmra.mxu0 %v1060
    %v2289 = vpop.f32.mrf.mxu0
    %v2290 = vadd.f32 0.0, %v2289
    %2291 = vmatmul.f32.gmra.mxu0 %v1062
    %v2292 = vpop.f32.mrf.mxu0
    %v2293 = vadd.f32 0.0, %v2292
    %2294 = vmatmul.f32.gmra.mxu0 %v1064
    %v2295 = vpop.f32.mrf.mxu0
    %v2296 = vadd.f32 0.0, %v2295
    %2297 = vmatmul.f32.gmra.mxu0 %v1066
    %v2298 = vpop.f32.mrf.mxu0
    %v2299 = vadd.f32 0.0, %v2298
    %2300 = vmatmul.f32.gmra.mxu0 %v1068
    %v2301 = vpop.f32.mrf.mxu0
    %v2302 = vadd.f32 0.0, %v2301
    %2303 = vmatmul.f32.gmra.mxu0 %v1070
    %v2304 = vpop.f32.mrf.mxu0
    %v2305 = vadd.f32 0.0, %v2304
    %2306 = vmatmul.f32.gmra.mxu0 %v1072
    %v2307 = vpop.f32.mrf.mxu0
    %v2308 = vadd.f32 0.0, %v2307
    %2309 = vmatmul.f32.gmra.mxu0 %v1074
    %v2310 = vpop.f32.mrf.mxu0
    %v2311 = vadd.f32 0.0, %v2310
    %2312 = vmatmul.f32.gmra.mxu0 %v1076
    %v2313 = vpop.f32.mrf.mxu0
    %v2314 = vadd.f32 0.0, %v2313
    %2315 = vmatmul.f32.gmra.mxu0 %v1078
    %v2316 = vpop.f32.mrf.mxu0
    %v2317 = vadd.f32 0.0, %v2316
    %2318 = vmatmul.f32.gmra.mxu0 %v1080
    %v2319 = vpop.f32.mrf.mxu0
    %v2320 = vadd.f32 0.0, %v2319
    %2321 = vmatmul.f32.gmra.mxu0 %v1082
    %v2322 = vpop.f32.mrf.mxu0
    %v2323 = vadd.f32 0.0, %v2322
    %2324 = vmatmul.f32.gmra.mxu0 %v1084
    %v2325 = vpop.f32.mrf.mxu0
    %v2326 = vadd.f32 0.0, %v2325
    %2327 = vmatmul.f32.gmra.mxu0 %v1086
    %v2328 = vpop.f32.mrf.mxu0
    %v2329 = vadd.f32 0.0, %v2328
    %2330 = vmatmul.f32.gmra.mxu0 %v1088
    %v2331 = vpop.f32.mrf.mxu0
    %v2332 = vadd.f32 0.0, %v2331
    %2333 = vmatmul.f32.gmra.mxu0 %v1090
    %v2334 = vpop.f32.mrf.mxu0
    %v2335 = vadd.f32 0.0, %v2334
    %2336 = vdwg.mxu0
    %v2337 = vadd.f32 %v2147, %v2221
    %v2338 = vadd.f32 %v2148, %v2224
    %v2339 = vadd.f32 %v2149, %v2227
    %v2340 = vadd.f32 %v2150, %v2230
    %v2341 = vadd.f32 %v2151, %v2233
    %v2342 = vadd.f32 %v2152, %v2236
    %v2343 = vadd.f32 %v2153, %v2239
    %v2344 = vadd.f32 %v2154, %v2242
    %v2345 = vadd.f32 %v2155, %v2245
    %v2346 = vadd.f32 %v2156, %v2248
    %v2347 = vadd.f32 %v2157, %v2251
    %v2348 = vadd.f32 %v2158, %v2254
    %v2349 = vadd.f32 %v2159, %v2257
    %v2350 = vadd.f32 %v2160, %v2260
    %v2351 = vadd.f32 %v2161, %v2263
    %v2352 = vadd.f32 %v2162, %v2266
    %v2353 = vadd.f32 %v2163, %v2269
    %v2354 = vadd.f32 %v2164, %v2272
    %v2355 = vadd.f32 %v2165, %v2275
    %v2356 = vadd.f32 %v2166, %v2278
    %v2357 = vadd.f32 %v2167, %v2281
    %v2358 = vadd.f32 %v2168, %v2284
    %v2359 = vadd.f32 %v2169, %v2287
    %v2360 = vadd.f32 %v2170, %v2290
    %v2361 = vadd.f32 %v2171, %v2293
    %v2362 = vadd.f32 %v2172, %v2296
    %v2363 = vadd.f32 %v2173, %v2299
    %v2364 = vadd.f32 %v2174, %v2302
    %v2365 = vadd.f32 %v2175, %v2305
    %v2366 = vadd.f32 %v2176, %v2308
    %v2367 = vadd.f32 %v2177, %v2311
    %v2368 = vadd.f32 %v2178, %v2314
    %v2369 = vadd.f32 %v2179, %v2317
    %v2370 = vadd.f32 %v2180, %v2320
    %v2371 = vadd.f32 %v2181, %v2323
    %v2372 = vadd.f32 %v2182, %v2326
    %v2373 = vadd.f32 %v2183, %v2329
    %v2374 = vadd.f32 %v2184, %v2332
    %v2375 = vadd.f32 %v2185, %v2335
    %s2376 = scalar_lea.vmem [#allocation5], 1152
    %v2377 = vld [vmem:[%s2376] sm:$0xff]
    %v2378 = vld [vmem:[%s2376 + $0x8] sm:$0xff]
    %v2379 = vld [vmem:[%s2376 + $0x10] sm:$0xff]
    %v2380 = vld [vmem:[%s2376 + $0x18] sm:$0xff]
    %v2381 = vld [vmem:[%s2376 + $0x20] sm:$0xff]
    %v2382 = vld [vmem:[%s2376 + $0x28] sm:$0xff]
    %v2383 = vld [vmem:[%s2376 + $0x30] sm:$0xff]
    %v2384 = vld [vmem:[%s2376 + $0x38] sm:$0xff]
    %v2385 = vld [vmem:[%s2376 + $0x40] sm:$0xff]
    %v2386 = vld [vmem:[%s2376 + $0x48] sm:$0xff]
    %v2387 = vld [vmem:[%s2376 + $0x50] sm:$0xff]
    %v2388 = vld [vmem:[%s2376 + $0x58] sm:$0xff]
    %v2389 = vld [vmem:[%s2376 + $0x60] sm:$0xff]
    %v2390 = vld [vmem:[%s2376 + $0x68] sm:$0xff]
    %v2391 = vld [vmem:[%s2376 + $0x70] sm:$0xff]
    %v2392 = vld [vmem:[%s2376 + $0x78] sm:$0xff]
    %2393 = vmatpush.msra.mxu0 %v2392
    %2394 = vmatpush.msra.mxu0 %v2391
    %2395 = vmatpush.msra.mxu0 %v2390
    %2396 = vmatpush.msra.mxu0 %v2389
    %2397 = vmatpush.msra.mxu0 %v2388
    %2398 = vmatpush.msra.mxu0 %v2387
    %2399 = vmatpush.msra.mxu0 %v2386
    %2400 = vmatpush.msra.mxu0 %v2385
    %2401 = vmatpush.msra.mxu0 %v2384
    %2402 = vmatpush.msra.mxu0 %v2383
    %2403 = vmatpush.msra.mxu0 %v2382
    %2404 = vmatpush.msra.mxu0 %v2381
    %2405 = vmatpush.msra.mxu0 %v2380
    %2406 = vmatpush.msra.mxu0 %v2379
    %2407 = vmatpush.msra.mxu0 %v2378
    %2408 = vmatpush.msra.mxu0 %v2377
    %2409 = vmatmul.f32.gmra.mxu0 %v1323
    %v2410 = vpop.f32.mrf.mxu0
    %v2411 = vadd.f32 0.0, %v2410
    %2412 = vmatmul.f32.gmra.mxu0 %v1325
    %v2413 = vpop.f32.mrf.mxu0
    %v2414 = vadd.f32 0.0, %v2413
    %2415 = vmatmul.f32.gmra.mxu0 %v1327
    %v2416 = vpop.f32.mrf.mxu0
    %v2417 = vadd.f32 0.0, %v2416
    %2418 = vmatmul.f32.gmra.mxu0 %v1329
    %v2419 = vpop.f32.mrf.mxu0
    %v2420 = vadd.f32 0.0, %v2419
    %2421 = vmatmul.f32.gmra.mxu0 %v1331
    %v2422 = vpop.f32.mrf.mxu0
    %v2423 = vadd.f32 0.0, %v2422
    %2424 = vmatmul.f32.gmra.mxu0 %v1333
    %v2425 = vpop.f32.mrf.mxu0
    %v2426 = vadd.f32 0.0, %v2425
    %2427 = vmatmul.f32.gmra.mxu0 %v1335
    %v2428 = vpop.f32.mrf.mxu0
    %v2429 = vadd.f32 0.0, %v2428
    %2430 = vmatmul.f32.gmra.mxu0 %v1337
    %v2431 = vpop.f32.mrf.mxu0
    %v2432 = vadd.f32 0.0, %v2431
    %2433 = vmatmul.f32.gmra.mxu0 %v1339
    %v2434 = vpop.f32.mrf.mxu0
    %v2435 = vadd.f32 0.0, %v2434
    %2436 = vmatmul.f32.gmra.mxu0 %v1341
    %v2437 = vpop.f32.mrf.mxu0
    %v2438 = vadd.f32 0.0, %v2437
    %2439 = vmatmul.f32.gmra.mxu0 %v1343
    %v2440 = vpop.f32.mrf.mxu0
    %v2441 = vadd.f32 0.0, %v2440
    %2442 = vmatmul.f32.gmra.mxu0 %v1345
    %v2443 = vpop.f32.mrf.mxu0
    %v2444 = vadd.f32 0.0, %v2443
    %2445 = vmatmul.f32.gmra.mxu0 %v1347
    %v2446 = vpop.f32.mrf.mxu0
    %v2447 = vadd.f32 0.0, %v2446
    %2448 = vmatmul.f32.gmra.mxu0 %v1349
    %v2449 = vpop.f32.mrf.mxu0
    %v2450 = vadd.f32 0.0, %v2449
    %2451 = vmatmul.f32.gmra.mxu0 %v1351
    %v2452 = vpop.f32.mrf.mxu0
    %v2453 = vadd.f32 0.0, %v2452
    %2454 = vmatmul.f32.gmra.mxu0 %v1353
    %v2455 = vpop.f32.mrf.mxu0
    %v2456 = vadd.f32 0.0, %v2455
    %2457 = vmatmul.f32.gmra.mxu0 %v1355
    %v2458 = vpop.f32.mrf.mxu0
    %v2459 = vadd.f32 0.0, %v2458
    %2460 = vmatmul.f32.gmra.mxu0 %v1357
    %v2461 = vpop.f32.mrf.mxu0
    %v2462 = vadd.f32 0.0, %v2461
    %2463 = vmatmul.f32.gmra.mxu0 %v1359
    %v2464 = vpop.f32.mrf.mxu0
    %v2465 = vadd.f32 0.0, %v2464
    %2466 = vmatmul.f32.gmra.mxu0 %v1361
    %v2467 = vpop.f32.mrf.mxu0
    %v2468 = vadd.f32 0.0, %v2467
    %2469 = vmatmul.f32.gmra.mxu0 %v1363
    %v2470 = vpop.f32.mrf.mxu0
    %v2471 = vadd.f32 0.0, %v2470
    %2472 = vmatmul.f32.gmra.mxu0 %v1365
    %v2473 = vpop.f32.mrf.mxu0
    %v2474 = vadd.f32 0.0, %v2473
    %2475 = vmatmul.f32.gmra.mxu0 %v1367
    %v2476 = vpop.f32.mrf.mxu0
    %v2477 = vadd.f32 0.0, %v2476
    %2478 = vmatmul.f32.gmra.mxu0 %v1369
    %v2479 = vpop.f32.mrf.mxu0
    %v2480 = vadd.f32 0.0, %v2479
    %2481 = vmatmul.f32.gmra.mxu0 %v1371
    %v2482 = vpop.f32.mrf.mxu0
    %v2483 = vadd.f32 0.0, %v2482
    %2484 = vmatmul.f32.gmra.mxu0 %v1373
    %v2485 = vpop.f32.mrf.mxu0
    %v2486 = vadd.f32 0.0, %v2485
    %2487 = vmatmul.f32.gmra.mxu0 %v1375
    %v2488 = vpop.f32.mrf.mxu0
    %v2489 = vadd.f32 0.0, %v2488
    %2490 = vmatmul.f32.gmra.mxu0 %v1377
    %v2491 = vpop.f32.mrf.mxu0
    %v2492 = vadd.f32 0.0, %v2491
    %2493 = vmatmul.f32.gmra.mxu0 %v1379
    %v2494 = vpop.f32.mrf.mxu0
    %v2495 = vadd.f32 0.0, %v2494
    %2496 = vmatmul.f32.gmra.mxu0 %v1381
    %v2497 = vpop.f32.mrf.mxu0
    %v2498 = vadd.f32 0.0, %v2497
    %2499 = vmatmul.f32.gmra.mxu0 %v1383
    %v2500 = vpop.f32.mrf.mxu0
    %v2501 = vadd.f32 0.0, %v2500
    %2502 = vmatmul.f32.gmra.mxu0 %v1385
    %v2503 = vpop.f32.mrf.mxu0
    %v2504 = vadd.f32 0.0, %v2503
    %2505 = vmatmul.f32.gmra.mxu0 %v1387
    %v2506 = vpop.f32.mrf.mxu0
    %v2507 = vadd.f32 0.0, %v2506
    %2508 = vmatmul.f32.gmra.mxu0 %v1389
    %v2509 = vpop.f32.mrf.mxu0
    %v2510 = vadd.f32 0.0, %v2509
    %2511 = vmatmul.f32.gmra.mxu0 %v1391
    %v2512 = vpop.f32.mrf.mxu0
    %v2513 = vadd.f32 0.0, %v2512
    %2514 = vmatmul.f32.gmra.mxu0 %v1393
    %v2515 = vpop.f32.mrf.mxu0
    %v2516 = vadd.f32 0.0, %v2515
    %2517 = vmatmul.f32.gmra.mxu0 %v1395
    %v2518 = vpop.f32.mrf.mxu0
    %v2519 = vadd.f32 0.0, %v2518
    %2520 = vmatmul.f32.gmra.mxu0 %v1397
    %v2521 = vpop.f32.mrf.mxu0
    %v2522 = vadd.f32 0.0, %v2521
    %2523 = vmatmul.f32.gmra.mxu0 %v1399
    %v2524 = vpop.f32.mrf.mxu0
    %v2525 = vadd.f32 0.0, %v2524
    %2526 = vdwg.mxu0
    %v2527 = vadd.f32 %v2337, %v2411
    %v2528 = vadd.f32 %v2338, %v2414
    %v2529 = vadd.f32 %v2339, %v2417
    %v2530 = vadd.f32 %v2340, %v2420
    %v2531 = vadd.f32 %v2341, %v2423
    %v2532 = vadd.f32 %v2342, %v2426
    %v2533 = vadd.f32 %v2343, %v2429
    %v2534 = vadd.f32 %v2344, %v2432
    %v2535 = vadd.f32 %v2345, %v2435
    %v2536 = vadd.f32 %v2346, %v2438
    %v2537 = vadd.f32 %v2347, %v2441
    %v2538 = vadd.f32 %v2348, %v2444
    %v2539 = vadd.f32 %v2349, %v2447
    %v2540 = vadd.f32 %v2350, %v2450
    %v2541 = vadd.f32 %v2351, %v2453
    %v2542 = vadd.f32 %v2352, %v2456
    %v2543 = vadd.f32 %v2353, %v2459
    %v2544 = vadd.f32 %v2354, %v2462
    %v2545 = vadd.f32 %v2355, %v2465
    %v2546 = vadd.f32 %v2356, %v2468
    %v2547 = vadd.f32 %v2357, %v2471
    %v2548 = vadd.f32 %v2358, %v2474
    %v2549 = vadd.f32 %v2359, %v2477
    %v2550 = vadd.f32 %v2360, %v2480
    %v2551 = vadd.f32 %v2361, %v2483
    %v2552 = vadd.f32 %v2362, %v2486
    %v2553 = vadd.f32 %v2363, %v2489
    %v2554 = vadd.f32 %v2364, %v2492
    %v2555 = vadd.f32 %v2365, %v2495
    %v2556 = vadd.f32 %v2366, %v2498
    %v2557 = vadd.f32 %v2367, %v2501
    %v2558 = vadd.f32 %v2368, %v2504
    %v2559 = vadd.f32 %v2369, %v2507
    %v2560 = vadd.f32 %v2370, %v2510
    %v2561 = vadd.f32 %v2371, %v2513
    %v2562 = vadd.f32 %v2372, %v2516
    %v2563 = vadd.f32 %v2373, %v2519
    %v2564 = vadd.f32 %v2374, %v2522
    %v2565 = vadd.f32 %v2375, %v2525
    %s2566 = scalar_lea.vmem [#allocation7], 1
    %v2567 = vld [vmem:[%s2566] sm:$0x1]
    %v2569 = vperm.slane %v2567, 0
    %v2571 = vadd.f32 %v2527, %v2569
    %v2572 = vadd.f32 %v2528, %v2569
    %v2573 = vadd.f32 %v2529, %v2569
    %v2574 = vadd.f32 %v2530, %v2569
    %v2575 = vadd.f32 %v2531, %v2569
    %v2576 = vadd.f32 %v2532, %v2569
    %v2577 = vadd.f32 %v2533, %v2569
    %v2578 = vadd.f32 %v2534, %v2569
    %v2579 = vadd.f32 %v2535, %v2569
    %v2580 = vadd.f32 %v2536, %v2569
    %v2581 = vadd.f32 %v2537, %v2569
    %v2582 = vadd.f32 %v2538, %v2569
    %v2583 = vadd.f32 %v2539, %v2569
    %v2584 = vadd.f32 %v2540, %v2569
    %v2585 = vadd.f32 %v2541, %v2569
    %v2586 = vadd.f32 %v2542, %v2569
    %v2587 = vadd.f32 %v2543, %v2569
    %v2588 = vadd.f32 %v2544, %v2569
    %v2589 = vadd.f32 %v2545, %v2569
    %v2590 = vadd.f32 %v2546, %v2569
    %v2591 = vadd.f32 %v2547, %v2569
    %v2592 = vadd.f32 %v2548, %v2569
    %v2593 = vadd.f32 %v2549, %v2569
    %v2594 = vadd.f32 %v2550, %v2569
    %v2595 = vadd.f32 %v2551, %v2569
    %v2596 = vadd.f32 %v2552, %v2569
    %v2597 = vadd.f32 %v2553, %v2569
    %v2598 = vadd.f32 %v2554, %v2569
    %v2599 = vadd.f32 %v2555, %v2569
    %v2600 = vadd.f32 %v2556, %v2569
    %v2601 = vadd.f32 %v2557, %v2569
    %v2602 = vadd.f32 %v2558, %v2569
    %v2603 = vadd.f32 %v2559, %v2569
    %v2604 = vadd.f32 %v2560, %v2569
    %v2605 = vadd.f32 %v2561, %v2569
    %v2606 = vadd.f32 %v2562, %v2569
    %v2607 = vadd.f32 %v2563, %v2569
    %v2608 = vadd.f32 %v2564, %v2569
    %v2609 = vadd.f32 %v2565, %v2569
    %v2610 = vmax.f32 %v2571, 0.0
    %v2611 = vmax.f32 %v2572, 0.0
    %v2612 = vmax.f32 %v2573, 0.0
    %v2613 = vmax.f32 %v2574, 0.0
    %v2614 = vmax.f32 %v2575, 0.0
    %v2615 = vmax.f32 %v2576, 0.0
    %v2616 = vmax.f32 %v2577, 0.0
    %v2617 = vmax.f32 %v2578, 0.0
    %v2618 = vmax.f32 %v2579, 0.0
    %v2619 = vmax.f32 %v2580, 0.0
    %v2620 = vmax.f32 %v2581, 0.0
    %v2621 = vmax.f32 %v2582, 0.0
    %v2622 = vmax.f32 %v2583, 0.0
    %v2623 = vmax.f32 %v2584, 0.0
    %v2624 = vmax.f32 %v2585, 0.0
    %v2625 = vmax.f32 %v2586, 0.0
    %v2626 = vmax.f32 %v2587, 0.0
    %v2627 = vmax.f32 %v2588, 0.0
    %v2628 = vmax.f32 %v2589, 0.0
    %v2629 = vmax.f32 %v2590, 0.0
    %v2630 = vmax.f32 %v2591, 0.0
    %v2631 = vmax.f32 %v2592, 0.0
    %v2632 = vmax.f32 %v2593, 0.0
    %v2633 = vmax.f32 %v2594, 0.0
    %v2634 = vmax.f32 %v2595, 0.0
    %v2635 = vmax.f32 %v2596, 0.0
    %v2636 = vmax.f32 %v2597, 0.0
    %v2637 = vmax.f32 %v2598, 0.0
    %v2638 = vmax.f32 %v2599, 0.0
    %v2639 = vmax.f32 %v2600, 0.0
    %v2640 = vmax.f32 %v2601, 0.0
    %v2641 = vmax.f32 %v2602, 0.0
    %v2642 = vmax.f32 %v2603, 0.0
    %v2643 = vmax.f32 %v2604, 0.0
    %v2644 = vmax.f32 %v2605, 0.0
    %v2645 = vmax.f32 %v2606, 0.0
    %v2646 = vmax.f32 %v2607, 0.0
    %v2647 = vmax.f32 %v2608, 0.0
    %v2648 = vmax.f32 %v2609, 0.0
    %v2649 = vmax.f32 %v1655, %v2610
    %v2650 = vmax.f32 %v1656, %v2611
    %v2651 = vmax.f32 %v1657, %v2612
    %v2652 = vmax.f32 %v1658, %v2613
    %v2653 = vmax.f32 %v1659, %v2614
    %v2654 = vmax.f32 %v1660, %v2615
    %v2655 = vmax.f32 %v1661, %v2616
    %v2656 = vmax.f32 %v1662, %v2617
    %v2657 = vmax.f32 %v1663, %v2618
    %v2658 = vmax.f32 %v1664, %v2619
    %v2659 = vmax.f32 %v1665, %v2620
    %v2660 = vmax.f32 %v1666, %v2621
    %v2661 = vmax.f32 %v1667, %v2622
    %v2662 = vmax.f32 %v1668, %v2623
    %v2663 = vmax.f32 %v1669, %v2624
    %v2664 = vmax.f32 %v1670, %v2625
    %v2665 = vmax.f32 %v1671, %v2626
    %v2666 = vmax.f32 %v1672, %v2627
    %v2667 = vmax.f32 %v1673, %v2628
    %v2668 = vmax.f32 %v1674, %v2629
    %v2669 = vmax.f32 %v1675, %v2630
    %v2670 = vmax.f32 %v1676, %v2631
    %v2671 = vmax.f32 %v1677, %v2632
    %v2672 = vmax.f32 %v1678, %v2633
    %v2673 = vmax.f32 %v1679, %v2634
    %v2674 = vmax.f32 %v1680, %v2635
    %v2675 = vmax.f32 %v1681, %v2636
    %v2676 = vmax.f32 %v1682, %v2637
    %v2677 = vmax.f32 %v1683, %v2638
    %v2678 = vmax.f32 %v1684, %v2639
    %v2679 = vmax.f32 %v1685, %v2640
    %v2680 = vmax.f32 %v1686, %v2641
    %v2681 = vmax.f32 %v1687, %v2642
    %v2682 = vmax.f32 %v1688, %v2643
    %v2683 = vmax.f32 %v1689, %v2644
    %v2684 = vmax.f32 %v1690, %v2645
    %v2685 = vmax.f32 %v1691, %v2646
    %v2686 = vmax.f32 %v1692, %v2647
    %v2687 = vmax.f32 %v1693, %v2648
    %v2688 = vld [vmem:[#allocation8] sm:$0xff]
    %v2689 = vld [vmem:[#allocation8 + $0x8] sm:$0xff]
    %v2690 = vld [vmem:[#allocation8 + $0x10] sm:$0xff]
    %v2691 = vld [vmem:[#allocation8 + $0x18] sm:$0xff]
    %v2692 = vld [vmem:[#allocation8 + $0x20] sm:$0xff]
    %v2693 = vld [vmem:[#allocation8 + $0x28] sm:$0xff]
    %v2694 = vld [vmem:[#allocation8 + $0x30] sm:$0xff]
    %v2695 = vld [vmem:[#allocation8 + $0x38] sm:$0xff]
    %v2696 = vld [vmem:[#allocation8 + $0x40] sm:$0xff]
    %v2697 = vld [vmem:[#allocation8 + $0x48] sm:$0xff]
    %v2698 = vld [vmem:[#allocation8 + $0x50] sm:$0xff]
    %v2699 = vld [vmem:[#allocation8 + $0x58] sm:$0xff]
    %v2700 = vld [vmem:[#allocation8 + $0x60] sm:$0xff]
    %v2701 = vld [vmem:[#allocation8 + $0x68] sm:$0xff]
    %v2702 = vld [vmem:[#allocation8 + $0x70] sm:$0xff]
    %v2703 = vld [vmem:[#allocation8 + $0x78] sm:$0xff]
    %v2704 = vld [vmem:[#allocation8 + $0x80] sm:$0xff]
    %v2705 = vld [vmem:[#allocation8 + $0x88] sm:$0xff]
    %v2706 = vld [vmem:[#allocation8 + $0x90] sm:$0xff]
    %v2707 = vld [vmem:[#allocation8 + $0x98] sm:$0xff]
    %v2708 = vld [vmem:[#allocation8 + $0xa0] sm:$0xff]
    %v2709 = vld [vmem:[#allocation8 + $0xa8] sm:$0xff]
    %v2710 = vld [vmem:[#allocation8 + $0xb0] sm:$0xff]
    %v2711 = vld [vmem:[#allocation8 + $0xb8] sm:$0xff]
    %v2712 = vld [vmem:[#allocation8 + $0xc0] sm:$0xff]
    %v2713 = vld [vmem:[#allocation8 + $0xc8] sm:$0xff]
    %v2714 = vld [vmem:[#allocation8 + $0xd0] sm:$0xff]
    %v2715 = vld [vmem:[#allocation8 + $0xd8] sm:$0xff]
    %v2716 = vld [vmem:[#allocation8 + $0xe0] sm:$0xff]
    %v2717 = vld [vmem:[#allocation8 + $0xe8] sm:$0xff]
    %v2718 = vld [vmem:[#allocation8 + $0xf0] sm:$0xff]
    %v2719 = vld [vmem:[#allocation8 + $0xf8] sm:$0xff]
    %v2720 = vld [vmem:[#allocation8 + $0x100] sm:$0xff]
    %v2721 = vld [vmem:[#allocation8 + $0x108] sm:$0xff]
    %v2722 = vld [vmem:[#allocation8 + $0x110] sm:$0xff]
    %v2723 = vld [vmem:[#allocation8 + $0x118] sm:$0xff]
    %v2724 = vld [vmem:[#allocation8 + $0x120] sm:$0xff]
    %v2725 = vld [vmem:[#allocation8 + $0x128] sm:$0xff]
    %v2726 = vld [vmem:[#allocation8 + $0x130] sm:$0xff]
    %v2727 = vld [vmem:[#allocation8 + $0x138] sm:$0xff]
    %v2728 = vld [vmem:[#allocation8 + $0x140] sm:$0xff]
    %v2729 = vld [vmem:[#allocation8 + $0x148] sm:$0xff]
    %v2730 = vld [vmem:[#allocation8 + $0x150] sm:$0xff]
    %v2731 = vld [vmem:[#allocation8 + $0x158] sm:$0xff]
    %v2732 = vld [vmem:[#allocation8 + $0x160] sm:$0xff]
    %v2733 = vld [vmem:[#allocation8 + $0x168] sm:$0xff]
    %v2734 = vld [vmem:[#allocation8 + $0x170] sm:$0xff]
    %v2735 = vld [vmem:[#allocation8 + $0x178] sm:$0xff]
    %v2736 = vld [vmem:[#allocation8 + $0x180] sm:$0xff]
    %v2737 = vld [vmem:[#allocation8 + $0x188] sm:$0xff]
    %v2738 = vld [vmem:[#allocation8 + $0x190] sm:$0xff]
    %v2739 = vld [vmem:[#allocation8 + $0x198] sm:$0xff]
    %v2740 = vld [vmem:[#allocation8 + $0x1a0] sm:$0xff]
    %v2741 = vld [vmem:[#allocation8 + $0x1a8] sm:$0xff]
    %v2742 = vld [vmem:[#allocation8 + $0x1b0] sm:$0xff]
    %v2743 = vld [vmem:[#allocation8 + $0x1b8] sm:$0xff]
    %v2744 = vld [vmem:[#allocation8 + $0x1c0] sm:$0xff]
    %v2745 = vld [vmem:[#allocation8 + $0x1c8] sm:$0xff]
    %v2746 = vld [vmem:[#allocation8 + $0x1d0] sm:$0xff]
    %v2747 = vld [vmem:[#allocation8 + $0x1d8] sm:$0xff]
    %v2748 = vld [vmem:[#allocation8 + $0x1e0] sm:$0xff]
    %v2749 = vld [vmem:[#allocation8 + $0x1e8] sm:$0xff]
    %v2750 = vld [vmem:[#allocation8 + $0x1f0] sm:$0xff]
    %v2751 = vld [vmem:[#allocation8 + $0x1f8] sm:$0xff]
    %v2752 = vld [vmem:[#allocation8 + $0x200] sm:$0xff]
    %v2753 = vld [vmem:[#allocation8 + $0x208] sm:$0xff]
    %v2754 = vld [vmem:[#allocation8 + $0x210] sm:$0xff]
    %v2755 = vld [vmem:[#allocation8 + $0x218] sm:$0xff]
    %v2756 = vld [vmem:[#allocation8 + $0x220] sm:$0xff]
    %v2757 = vld [vmem:[#allocation8 + $0x228] sm:$0xff]
    %v2758 = vld [vmem:[#allocation8 + $0x230] sm:$0xff]
    %v2759 = vld [vmem:[#allocation8 + $0x238] sm:$0xff]
    %vm2760 = vcmask 457728
    %v2762 = vsel %vm2760, %v2690, 0
    %v2765 = vsel %vm2760, %v2693, 0
    %v2768 = vsel %vm2760, %v2696, 0
    %v2771 = vsel %vm2760, %v2699, 0
    %v2774 = vsel %vm2760, %v2702, 0
    %v2777 = vsel %vm2760, %v2705, 0
    %v2780 = vsel %vm2760, %v2708, 0
    %v2783 = vsel %vm2760, %v2711, 0
    %v2786 = vsel %vm2760, %v2714, 0
    %v2789 = vsel %vm2760, %v2717, 0
    %v2792 = vsel %vm2760, %v2720, 0
    %v2795 = vsel %vm2760, %v2723, 0
    %v2798 = vsel %vm2760, %v2726, 0
    %v2801 = vsel %vm2760, %v2729, 0
    %v2804 = vsel %vm2760, %v2732, 0
    %v2807 = vsel %vm2760, %v2735, 0
    %v2810 = vsel %vm2760, %v2738, 0
    %v2813 = vsel %vm2760, %v2741, 0
    %v2816 = vsel %vm2760, %v2744, 0
    %v2819 = vsel %vm2760, %v2747, 0
    %v2822 = vsel %vm2760, %v2750, 0
    %v2825 = vsel %vm2760, %v2753, 0
    %v2828 = vsel %vm2760, %v2756, 0
    %v2831 = vsel %vm2760, %v2759, 0
    %2833 = vmatpush.msra.mxu0 %v2664
    %2834 = vmatpush.msra.mxu0 %v2663
    %2835 = vmatpush.msra.mxu0 %v2662
    %2836 = vmatpush.msra.mxu0 %v2661
    %2837 = vmatpush.msra.mxu0 %v2660
    %2838 = vmatpush.msra.mxu0 %v2659
    %2839 = vmatpush.msra.mxu0 %v2658
    %2840 = vmatpush.msra.mxu0 %v2657
    %2841 = vmatpush.msra.mxu0 %v2656
    %2842 = vmatpush.msra.mxu0 %v2655
    %2843 = vmatpush.msra.mxu0 %v2654
    %2844 = vmatpush.msra.mxu0 %v2653
    %2845 = vmatpush.msra.mxu0 %v2652
    %2846 = vmatpush.msra.mxu0 %v2651
    %2847 = vmatpush.msra.mxu0 %v2650
    %2848 = vmatpush.msra.mxu0 %v2649
    %2849 = vmatmul.f32.gmra.mxu0 %v2688
    %v2850 = vpop.f32.mrf.mxu0
    %v2851 = vadd.f32 0.0, %v2850
    %2852 = vmatmul.f32.gmra.mxu0 %v2691
    %v2853 = vpop.f32.mrf.mxu0
    %v2854 = vadd.f32 0.0, %v2853
    %2855 = vmatmul.f32.gmra.mxu0 %v2694
    %v2856 = vpop.f32.mrf.mxu0
    %v2857 = vadd.f32 0.0, %v2856
    %2858 = vmatmul.f32.gmra.mxu0 %v2697
    %v2859 = vpop.f32.mrf.mxu0
    %v2860 = vadd.f32 0.0, %v2859
    %2861 = vmatmul.f32.gmra.mxu0 %v2700
    %v2862 = vpop.f32.mrf.mxu0
    %v2863 = vadd.f32 0.0, %v2862
    %2864 = vmatmul.f32.gmra.mxu0 %v2703
    %v2865 = vpop.f32.mrf.mxu0
    %v2866 = vadd.f32 0.0, %v2865
    %2867 = vmatmul.f32.gmra.mxu0 %v2706
    %v2868 = vpop.f32.mrf.mxu0
    %v2869 = vadd.f32 0.0, %v2868
    %2870 = vmatmul.f32.gmra.mxu0 %v2709
    %v2871 = vpop.f32.mrf.mxu0
    %v2872 = vadd.f32 0.0, %v2871
    %2873 = vmatmul.f32.gmra.mxu0 %v2712
    %v2874 = vpop.f32.mrf.mxu0
    %v2875 = vadd.f32 0.0, %v2874
    %2876 = vmatmul.f32.gmra.mxu0 %v2715
    %v2877 = vpop.f32.mrf.mxu0
    %v2878 = vadd.f32 0.0, %v2877
    %2879 = vmatmul.f32.gmra.mxu0 %v2718
    %v2880 = vpop.f32.mrf.mxu0
    %v2881 = vadd.f32 0.0, %v2880
    %2882 = vmatmul.f32.gmra.mxu0 %v2721
    %v2883 = vpop.f32.mrf.mxu0
    %v2884 = vadd.f32 0.0, %v2883
    %2885 = vmatmul.f32.gmra.mxu0 %v2724
    %v2886 = vpop.f32.mrf.mxu0
    %v2887 = vadd.f32 0.0, %v2886
    %2888 = vmatmul.f32.gmra.mxu0 %v2727
    %v2889 = vpop.f32.mrf.mxu0
    %v2890 = vadd.f32 0.0, %v2889
    %2891 = vmatmul.f32.gmra.mxu0 %v2730
    %v2892 = vpop.f32.mrf.mxu0
    %v2893 = vadd.f32 0.0, %v2892
    %2894 = vmatmul.f32.gmra.mxu0 %v2733
    %v2895 = vpop.f32.mrf.mxu0
    %v2896 = vadd.f32 0.0, %v2895
    %2897 = vmatmul.f32.gmra.mxu0 %v2736
    %v2898 = vpop.f32.mrf.mxu0
    %v2899 = vadd.f32 0.0, %v2898
    %2900 = vmatmul.f32.gmra.mxu0 %v2739
    %v2901 = vpop.f32.mrf.mxu0
    %v2902 = vadd.f32 0.0, %v2901
    %2903 = vmatmul.f32.gmra.mxu0 %v2742
    %v2904 = vpop.f32.mrf.mxu0
    %v2905 = vadd.f32 0.0, %v2904
    %2906 = vmatmul.f32.gmra.mxu0 %v2745
    %v2907 = vpop.f32.mrf.mxu0
    %v2908 = vadd.f32 0.0, %v2907
    %2909 = vmatmul.f32.gmra.mxu0 %v2748
    %v2910 = vpop.f32.mrf.mxu0
    %v2911 = vadd.f32 0.0, %v2910
    %2912 = vmatmul.f32.gmra.mxu0 %v2751
    %v2913 = vpop.f32.mrf.mxu0
    %v2914 = vadd.f32 0.0, %v2913
    %2915 = vmatmul.f32.gmra.mxu0 %v2754
    %v2916 = vpop.f32.mrf.mxu0
    %v2917 = vadd.f32 0.0, %v2916
    %2918 = vmatmul.f32.gmra.mxu0 %v2757
    %v2919 = vpop.f32.mrf.mxu0
    %v2920 = vadd.f32 0.0, %v2919
    %2921 = vdwg.mxu0
    %2922 = vmatpush.msra.mxu0 %v2680
    %2923 = vmatpush.msra.mxu0 %v2679
    %2924 = vmatpush.msra.mxu0 %v2678
    %2925 = vmatpush.msra.mxu0 %v2677
    %2926 = vmatpush.msra.mxu0 %v2676
    %2927 = vmatpush.msra.mxu0 %v2675
    %2928 = vmatpush.msra.mxu0 %v2674
    %2929 = vmatpush.msra.mxu0 %v2673
    %2930 = vmatpush.msra.mxu0 %v2672
    %2931 = vmatpush.msra.mxu0 %v2671
    %2932 = vmatpush.msra.mxu0 %v2670
    %2933 = vmatpush.msra.mxu0 %v2669
    %2934 = vmatpush.msra.mxu0 %v2668
    %2935 = vmatpush.msra.mxu0 %v2667
    %2936 = vmatpush.msra.mxu0 %v2666
    %2937 = vmatpush.msra.mxu0 %v2665
    %2938 = vmatmul.f32.gmra.mxu0 %v2689
    %v2939 = vpop.f32.mrf.mxu0
    %v2940 = vadd.f32 %v2851, %v2939
    %2941 = vmatmul.f32.gmra.mxu0 %v2692
    %v2942 = vpop.f32.mrf.mxu0
    %v2943 = vadd.f32 %v2854, %v2942
    %2944 = vmatmul.f32.gmra.mxu0 %v2695
    %v2945 = vpop.f32.mrf.mxu0
    %v2946 = vadd.f32 %v2857, %v2945
    %2947 = vmatmul.f32.gmra.mxu0 %v2698
    %v2948 = vpop.f32.mrf.mxu0
    %v2949 = vadd.f32 %v2860, %v2948
    %2950 = vmatmul.f32.gmra.mxu0 %v2701
    %v2951 = vpop.f32.mrf.mxu0
    %v2952 = vadd.f32 %v2863, %v2951
    %2953 = vmatmul.f32.gmra.mxu0 %v2704
    %v2954 = vpop.f32.mrf.mxu0
    %v2955 = vadd.f32 %v2866, %v2954
    %2956 = vmatmul.f32.gmra.mxu0 %v2707
    %v2957 = vpop.f32.mrf.mxu0
    %v2958 = vadd.f32 %v2869, %v2957
    %2959 = vmatmul.f32.gmra.mxu0 %v2710
    %v2960 = vpop.f32.mrf.mxu0
    %v2961 = vadd.f32 %v2872, %v2960
    %2962 = vmatmul.f32.gmra.mxu0 %v2713
    %v2963 = vpop.f32.mrf.mxu0
    %v2964 = vadd.f32 %v2875, %v2963
    %2965 = vmatmul.f32.gmra.mxu0 %v2716
    %v2966 = vpop.f32.mrf.mxu0
    %v2967 = vadd.f32 %v2878, %v2966
    %2968 = vmatmul.f32.gmra.mxu0 %v2719
    %v2969 = vpop.f32.mrf.mxu0
    %v2970 = vadd.f32 %v2881, %v2969
    %2971 = vmatmul.f32.gmra.mxu0 %v2722
    %v2972 = vpop.f32.mrf.mxu0
    %v2973 = vadd.f32 %v2884, %v2972
    %2974 = vmatmul.f32.gmra.mxu0 %v2725
    %v2975 = vpop.f32.mrf.mxu0
    %v2976 = vadd.f32 %v2887, %v2975
    %2977 = vmatmul.f32.gmra.mxu0 %v2728
    %v2978 = vpop.f32.mrf.mxu0
    %v2979 = vadd.f32 %v2890, %v2978
    %2980 = vmatmul.f32.gmra.mxu0 %v2731
    %v2981 = vpop.f32.mrf.mxu0
    %v2982 = vadd.f32 %v2893, %v2981
    %2983 = vmatmul.f32.gmra.mxu0 %v2734
    %v2984 = vpop.f32.mrf.mxu0
    %v2985 = vadd.f32 %v2896, %v2984
    %2986 = vmatmul.f32.gmra.mxu0 %v2737
    %v2987 = vpop.f32.mrf.mxu0
    %v2988 = vadd.f32 %v2899, %v2987
    %2989 = vmatmul.f32.gmra.mxu0 %v2740
    %v2990 = vpop.f32.mrf.mxu0
    %v2991 = vadd.f32 %v2902, %v2990
    %2992 = vmatmul.f32.gmra.mxu0 %v2743
    %v2993 = vpop.f32.mrf.mxu0
    %v2994 = vadd.f32 %v2905, %v2993
    %2995 = vmatmul.f32.gmra.mxu0 %v2746
    %v2996 = vpop.f32.mrf.mxu0
    %v2997 = vadd.f32 %v2908, %v2996
    %2998 = vmatmul.f32.gmra.mxu0 %v2749
    %v2999 = vpop.f32.mrf.mxu0
    %v3000 = vadd.f32 %v2911, %v2999
    %3001 = vmatmul.f32.gmra.mxu0 %v2752
    %v3002 = vpop.f32.mrf.mxu0
    %v3003 = vadd.f32 %v2914, %v3002
    %3004 = vmatmul.f32.gmra.mxu0 %v2755
    %v3005 = vpop.f32.mrf.mxu0
    %v3006 = vadd.f32 %v2917, %v3005
    %3007 = vmatmul.f32.gmra.mxu0 %v2758
    %v3008 = vpop.f32.mrf.mxu0
    %v3009 = vadd.f32 %v2920, %v3008
    %3010 = vdwg.mxu0
    %3011 = vmatpush.msra.mxu0 0.0
    %3012 = vmatpush.msra.mxu0 0.0
    %3013 = vmatpush.msra.mxu0 0.0
    %3014 = vmatpush.msra.mxu0 0.0
    %3015 = vmatpush.msra.mxu0 0.0
    %3016 = vmatpush.msra.mxu0 0.0
    %3017 = vmatpush.msra.mxu0 0.0
    %3018 = vmatpush.msra.mxu0 0.0
    %3019 = vmatpush.msra.mxu0 0.0
    %3020 = vmatpush.msra.mxu0 %v2687
    %3021 = vmatpush.msra.mxu0 %v2686
    %3022 = vmatpush.msra.mxu0 %v2685
    %3023 = vmatpush.msra.mxu0 %v2684
    %3024 = vmatpush.msra.mxu0 %v2683
    %3025 = vmatpush.msra.mxu0 %v2682
    %3026 = vmatpush.msra.mxu0 %v2681
    %3027 = vmatmul.f32.gmra.mxu0 %v2762
    %v3028 = vpop.f32.mrf.mxu0
    %v3029 = vadd.f32 %v2940, %v3028
    %3030 = vmatmul.f32.gmra.mxu0 %v2765
    %v3031 = vpop.f32.mrf.mxu0
    %v3032 = vadd.f32 %v2943, %v3031
    %3033 = vmatmul.f32.gmra.mxu0 %v2768
    %v3034 = vpop.f32.mrf.mxu0
    %v3035 = vadd.f32 %v2946, %v3034
    %3036 = vmatmul.f32.gmra.mxu0 %v2771
    %v3037 = vpop.f32.mrf.mxu0
    %v3038 = vadd.f32 %v2949, %v3037
    %3039 = vmatmul.f32.gmra.mxu0 %v2774
    %v3040 = vpop.f32.mrf.mxu0
    %v3041 = vadd.f32 %v2952, %v3040
    %3042 = vmatmul.f32.gmra.mxu0 %v2777
    %v3043 = vpop.f32.mrf.mxu0
    %v3044 = vadd.f32 %v2955, %v3043
    %3045 = vmatmul.f32.gmra.mxu0 %v2780
    %v3046 = vpop.f32.mrf.mxu0
    %v3047 = vadd.f32 %v2958, %v3046
    %3048 = vmatmul.f32.gmra.mxu0 %v2783
    %v3049 = vpop.f32.mrf.mxu0
    %v3050 = vadd.f32 %v2961, %v3049
    %3051 = vmatmul.f32.gmra.mxu0 %v2786
    %v3052 = vpop.f32.mrf.mxu0
    %v3053 = vadd.f32 %v2964, %v3052
    %3054 = vmatmul.f32.gmra.mxu0 %v2789
    %v3055 = vpop.f32.mrf.mxu0
    %v3056 = vadd.f32 %v2967, %v3055
    %3057 = vmatmul.f32.gmra.mxu0 %v2792
    %v3058 = vpop.f32.mrf.mxu0
    %v3059 = vadd.f32 %v2970, %v3058
    %3060 = vmatmul.f32.gmra.mxu0 %v2795
    %v3061 = vpop.f32.mrf.mxu0
    %v3062 = vadd.f32 %v2973, %v3061
    %3063 = vmatmul.f32.gmra.mxu0 %v2798
    %v3064 = vpop.f32.mrf.mxu0
    %v3065 = vadd.f32 %v2976, %v3064
    %3066 = vmatmul.f32.gmra.mxu0 %v2801
    %v3067 = vpop.f32.mrf.mxu0
    %v3068 = vadd.f32 %v2979, %v3067
    %3069 = vmatmul.f32.gmra.mxu0 %v2804
    %v3070 = vpop.f32.mrf.mxu0
    %v3071 = vadd.f32 %v2982, %v3070
    %3072 = vmatmul.f32.gmra.mxu0 %v2807
    %v3073 = vpop.f32.mrf.mxu0
    %v3074 = vadd.f32 %v2985, %v3073
    %3075 = vmatmul.f32.gmra.mxu0 %v2810
    %v3076 = vpop.f32.mrf.mxu0
    %v3077 = vadd.f32 %v2988, %v3076
    %3078 = vmatmul.f32.gmra.mxu0 %v2813
    %v3079 = vpop.f32.mrf.mxu0
    %v3080 = vadd.f32 %v2991, %v3079
    %3081 = vmatmul.f32.gmra.mxu0 %v2816
    %v3082 = vpop.f32.mrf.mxu0
    %v3083 = vadd.f32 %v2994, %v3082
    %3084 = vmatmul.f32.gmra.mxu0 %v2819
    %v3085 = vpop.f32.mrf.mxu0
    %v3086 = vadd.f32 %v2997, %v3085
    %3087 = vmatmul.f32.gmra.mxu0 %v2822
    %v3088 = vpop.f32.mrf.mxu0
    %v3089 = vadd.f32 %v3000, %v3088
    %3090 = vmatmul.f32.gmra.mxu0 %v2825
    %v3091 = vpop.f32.mrf.mxu0
    %v3092 = vadd.f32 %v3003, %v3091
    %3093 = vmatmul.f32.gmra.mxu0 %v2828
    %v3094 = vpop.f32.mrf.mxu0
    %v3095 = vadd.f32 %v3006, %v3094
    %3096 = vmatmul.f32.gmra.mxu0 %v2831
    %v3097 = vpop.f32.mrf.mxu0
    %v3098 = vadd.f32 %v3009, %v3097
    %3099 = vdwg.mxu0
    %s3100 = scalar_lea.vmem [#allocation8], 576
    %v3101 = vld [vmem:[%s3100] sm:$0xff]
    %v3102 = vld [vmem:[%s3100 + $0x8] sm:$0xff]
    %v3103 = vld [vmem:[%s3100 + $0x10] sm:$0xff]
    %v3104 = vld [vmem:[%s3100 + $0x18] sm:$0xff]
    %v3105 = vld [vmem:[%s3100 + $0x20] sm:$0xff]
    %v3106 = vld [vmem:[%s3100 + $0x28] sm:$0xff]
    %v3107 = vld [vmem:[%s3100 + $0x30] sm:$0xff]
    %v3108 = vld [vmem:[%s3100 + $0x38] sm:$0xff]
    %v3109 = vld [vmem:[%s3100 + $0x40] sm:$0xff]
    %v3110 = vld [vmem:[%s3100 + $0x48] sm:$0xff]
    %v3111 = vld [vmem:[%s3100 + $0x50] sm:$0xff]
    %v3112 = vld [vmem:[%s3100 + $0x58] sm:$0xff]
    %v3113 = vld [vmem:[%s3100 + $0x60] sm:$0xff]
    %v3114 = vld [vmem:[%s3100 + $0x68] sm:$0xff]
    %v3115 = vld [vmem:[%s3100 + $0x70] sm:$0xff]
    %v3116 = vld [vmem:[%s3100 + $0x78] sm:$0xff]
    %v3117 = vld [vmem:[%s3100 + $0x80] sm:$0xff]
    %v3118 = vld [vmem:[%s3100 + $0x88] sm:$0xff]
    %v3119 = vld [vmem:[%s3100 + $0x90] sm:$0xff]
    %v3120 = vld [vmem:[%s3100 + $0x98] sm:$0xff]
    %v3121 = vld [vmem:[%s3100 + $0xa0] sm:$0xff]
    %v3122 = vld [vmem:[%s3100 + $0xa8] sm:$0xff]
    %v3123 = vld [vmem:[%s3100 + $0xb0] sm:$0xff]
    %v3124 = vld [vmem:[%s3100 + $0xb8] sm:$0xff]
    %v3125 = vld [vmem:[%s3100 + $0xc0] sm:$0xff]
    %v3126 = vld [vmem:[%s3100 + $0xc8] sm:$0xff]
    %v3127 = vld [vmem:[%s3100 + $0xd0] sm:$0xff]
    %v3128 = vld [vmem:[%s3100 + $0xd8] sm:$0xff]
    %v3129 = vld [vmem:[%s3100 + $0xe0] sm:$0xff]
    %v3130 = vld [vmem:[%s3100 + $0xe8] sm:$0xff]
    %v3131 = vld [vmem:[%s3100 + $0xf0] sm:$0xff]
    %v3132 = vld [vmem:[%s3100 + $0xf8] sm:$0xff]
    %v3133 = vld [vmem:[%s3100 + $0x100] sm:$0xff]
    %v3134 = vld [vmem:[%s3100 + $0x108] sm:$0xff]
    %v3135 = vld [vmem:[%s3100 + $0x110] sm:$0xff]
    %v3136 = vld [vmem:[%s3100 + $0x118] sm:$0xff]
    %v3137 = vld [vmem:[%s3100 + $0x120] sm:$0xff]
    %v3138 = vld [vmem:[%s3100 + $0x128] sm:$0xff]
    %v3139 = vld [vmem:[%s3100 + $0x130] sm:$0xff]
    %v3140 = vld [vmem:[%s3100 + $0x138] sm:$0xff]
    %v3141 = vld [vmem:[%s3100 + $0x140] sm:$0xff]
    %v3142 = vld [vmem:[%s3100 + $0x148] sm:$0xff]
    %v3143 = vld [vmem:[%s3100 + $0x150] sm:$0xff]
    %v3144 = vld [vmem:[%s3100 + $0x158] sm:$0xff]
    %v3145 = vld [vmem:[%s3100 + $0x160] sm:$0xff]
    %v3146 = vld [vmem:[%s3100 + $0x168] sm:$0xff]
    %v3147 = vld [vmem:[%s3100 + $0x170] sm:$0xff]
    %v3148 = vld [vmem:[%s3100 + $0x178] sm:$0xff]
    %v3149 = vld [vmem:[%s3100 + $0x180] sm:$0xff]
    %v3150 = vld [vmem:[%s3100 + $0x188] sm:$0xff]
    %v3151 = vld [vmem:[%s3100 + $0x190] sm:$0xff]
    %v3152 = vld [vmem:[%s3100 + $0x198] sm:$0xff]
    %v3153 = vld [vmem:[%s3100 + $0x1a0] sm:$0xff]
    %v3154 = vld [vmem:[%s3100 + $0x1a8] sm:$0xff]
    %v3155 = vld [vmem:[%s3100 + $0x1b0] sm:$0xff]
    %v3156 = vld [vmem:[%s3100 + $0x1b8] sm:$0xff]
    %v3157 = vld [vmem:[%s3100 + $0x1c0] sm:$0xff]
    %v3158 = vld [vmem:[%s3100 + $0x1c8] sm:$0xff]
    %v3159 = vld [vmem:[%s3100 + $0x1d0] sm:$0xff]
    %v3160 = vld [vmem:[%s3100 + $0x1d8] sm:$0xff]
    %v3161 = vld [vmem:[%s3100 + $0x1e0] sm:$0xff]
    %v3162 = vld [vmem:[%s3100 + $0x1e8] sm:$0xff]
    %v3163 = vld [vmem:[%s3100 + $0x1f0] sm:$0xff]
    %v3164 = vld [vmem:[%s3100 + $0x1f8] sm:$0xff]
    %v3165 = vld [vmem:[%s3100 + $0x200] sm:$0xff]
    %v3166 = vld [vmem:[%s3100 + $0x208] sm:$0xff]
    %v3167 = vld [vmem:[%s3100 + $0x210] sm:$0xff]
    %v3168 = vld [vmem:[%s3100 + $0x218] sm:$0xff]
    %v3169 = vld [vmem:[%s3100 + $0x220] sm:$0xff]
    %v3170 = vld [vmem:[%s3100 + $0x228] sm:$0xff]
    %v3171 = vld [vmem:[%s3100 + $0x230] sm:$0xff]
    %v3172 = vld [vmem:[%s3100 + $0x238] sm:$0xff]
    %v3174 = vsel %vm2760, %v3103, 0
    %v3177 = vsel %vm2760, %v3106, 0
    %v3180 = vsel %vm2760, %v3109, 0
    %v3183 = vsel %vm2760, %v3112, 0
    %v3186 = vsel %vm2760, %v3115, 0
    %v3189 = vsel %vm2760, %v3118, 0
    %v3192 = vsel %vm2760, %v3121, 0
    %v3195 = vsel %vm2760, %v3124, 0
    %v3198 = vsel %vm2760, %v3127, 0
    %v3201 = vsel %vm2760, %v3130, 0
    %v3204 = vsel %vm2760, %v3133, 0
    %v3207 = vsel %vm2760, %v3136, 0
    %v3210 = vsel %vm2760, %v3139, 0
    %v3213 = vsel %vm2760, %v3142, 0
    %v3216 = vsel %vm2760, %v3145, 0
    %v3219 = vsel %vm2760, %v3148, 0
    %v3222 = vsel %vm2760, %v3151, 0
    %v3225 = vsel %vm2760, %v3154, 0
    %v3228 = vsel %vm2760, %v3157, 0
    %v3231 = vsel %vm2760, %v3160, 0
    %v3234 = vsel %vm2760, %v3163, 0
    %v3237 = vsel %vm2760, %v3166, 0
    %v3240 = vsel %vm2760, %v3169, 0
    %v3243 = vsel %vm2760, %v3172, 0
    %3245 = vmatpush.msra.mxu0 %v2664
    %3246 = vmatpush.msra.mxu0 %v2663
    %3247 = vmatpush.msra.mxu0 %v2662
    %3248 = vmatpush.msra.mxu0 %v2661
    %3249 = vmatpush.msra.mxu0 %v2660
    %3250 = vmatpush.msra.mxu0 %v2659
    %3251 = vmatpush.msra.mxu0 %v2658
    %3252 = vmatpush.msra.mxu0 %v2657
    %3253 = vmatpush.msra.mxu0 %v2656
    %3254 = vmatpush.msra.mxu0 %v2655
    %3255 = vmatpush.msra.mxu0 %v2654
    %3256 = vmatpush.msra.mxu0 %v2653
    %3257 = vmatpush.msra.mxu0 %v2652
    %3258 = vmatpush.msra.mxu0 %v2651
    %3259 = vmatpush.msra.mxu0 %v2650
    %3260 = vmatpush.msra.mxu0 %v2649
    %3261 = vmatmul.f32.gmra.mxu0 %v3101
    %v3262 = vpop.f32.mrf.mxu0
    %v3263 = vadd.f32 0.0, %v3262
    %3264 = vmatmul.f32.gmra.mxu0 %v3104
    %v3265 = vpop.f32.mrf.mxu0
    %v3266 = vadd.f32 0.0, %v3265
    %3267 = vmatmul.f32.gmra.mxu0 %v3107
    %v3268 = vpop.f32.mrf.mxu0
    %v3269 = vadd.f32 0.0, %v3268
    %3270 = vmatmul.f32.gmra.mxu0 %v3110
    %v3271 = vpop.f32.mrf.mxu0
    %v3272 = vadd.f32 0.0, %v3271
    %3273 = vmatmul.f32.gmra.mxu0 %v3113
    %v3274 = vpop.f32.mrf.mxu0
    %v3275 = vadd.f32 0.0, %v3274
    %3276 = vmatmul.f32.gmra.mxu0 %v3116
    %v3277 = vpop.f32.mrf.mxu0
    %v3278 = vadd.f32 0.0, %v3277
    %3279 = vmatmul.f32.gmra.mxu0 %v3119
    %v3280 = vpop.f32.mrf.mxu0
    %v3281 = vadd.f32 0.0, %v3280
    %3282 = vmatmul.f32.gmra.mxu0 %v3122
    %v3283 = vpop.f32.mrf.mxu0
    %v3284 = vadd.f32 0.0, %v3283
    %3285 = vmatmul.f32.gmra.mxu0 %v3125
    %v3286 = vpop.f32.mrf.mxu0
    %v3287 = vadd.f32 0.0, %v3286
    %3288 = vmatmul.f32.gmra.mxu0 %v3128
    %v3289 = vpop.f32.mrf.mxu0
    %v3290 = vadd.f32 0.0, %v3289
    %3291 = vmatmul.f32.gmra.mxu0 %v3131
    %v3292 = vpop.f32.mrf.mxu0
    %v3293 = vadd.f32 0.0, %v3292
    %3294 = vmatmul.f32.gmra.mxu0 %v3134
    %v3295 = vpop.f32.mrf.mxu0
    %v3296 = vadd.f32 0.0, %v3295
    %3297 = vmatmul.f32.gmra.mxu0 %v3137
    %v3298 = vpop.f32.mrf.mxu0
    %v3299 = vadd.f32 0.0, %v3298
    %3300 = vmatmul.f32.gmra.mxu0 %v3140
    %v3301 = vpop.f32.mrf.mxu0
    %v3302 = vadd.f32 0.0, %v3301
    %3303 = vmatmul.f32.gmra.mxu0 %v3143
    %v3304 = vpop.f32.mrf.mxu0
    %v3305 = vadd.f32 0.0, %v3304
    %3306 = vmatmul.f32.gmra.mxu0 %v3146
    %v3307 = vpop.f32.mrf.mxu0
    %v3308 = vadd.f32 0.0, %v3307
    %3309 = vmatmul.f32.gmra.mxu0 %v3149
    %v3310 = vpop.f32.mrf.mxu0
    %v3311 = vadd.f32 0.0, %v3310
    %3312 = vmatmul.f32.gmra.mxu0 %v3152
    %v3313 = vpop.f32.mrf.mxu0
    %v3314 = vadd.f32 0.0, %v3313
    %3315 = vmatmul.f32.gmra.mxu0 %v3155
    %v3316 = vpop.f32.mrf.mxu0
    %v3317 = vadd.f32 0.0, %v3316
    %3318 = vmatmul.f32.gmra.mxu0 %v3158
    %v3319 = vpop.f32.mrf.mxu0
    %v3320 = vadd.f32 0.0, %v3319
    %3321 = vmatmul.f32.gmra.mxu0 %v3161
    %v3322 = vpop.f32.mrf.mxu0
    %v3323 = vadd.f32 0.0, %v3322
    %3324 = vmatmul.f32.gmra.mxu0 %v3164
    %v3325 = vpop.f32.mrf.mxu0
    %v3326 = vadd.f32 0.0, %v3325
    %3327 = vmatmul.f32.gmra.mxu0 %v3167
    %v3328 = vpop.f32.mrf.mxu0
    %v3329 = vadd.f32 0.0, %v3328
    %3330 = vmatmul.f32.gmra.mxu0 %v3170
    %v3331 = vpop.f32.mrf.mxu0
    %v3332 = vadd.f32 0.0, %v3331
    %3333 = vdwg.mxu0
    %3334 = vmatpush.msra.mxu0 %v2680
    %3335 = vmatpush.msra.mxu0 %v2679
    %3336 = vmatpush.msra.mxu0 %v2678
    %3337 = vmatpush.msra.mxu0 %v2677
    %3338 = vmatpush.msra.mxu0 %v2676
    %3339 = vmatpush.msra.mxu0 %v2675
    %3340 = vmatpush.msra.mxu0 %v2674
    %3341 = vmatpush.msra.mxu0 %v2673
    %3342 = vmatpush.msra.mxu0 %v2672
    %3343 = vmatpush.msra.mxu0 %v2671
    %3344 = vmatpush.msra.mxu0 %v2670
    %3345 = vmatpush.msra.mxu0 %v2669
    %3346 = vmatpush.msra.mxu0 %v2668
    %3347 = vmatpush.msra.mxu0 %v2667
    %3348 = vmatpush.msra.mxu0 %v2666
    %3349 = vmatpush.msra.mxu0 %v2665
    %3350 = vmatmul.f32.gmra.mxu0 %v3102
    %v3351 = vpop.f32.mrf.mxu0
    %v3352 = vadd.f32 %v3263, %v3351
    %3353 = vmatmul.f32.gmra.mxu0 %v3105
    %v3354 = vpop.f32.mrf.mxu0
    %v3355 = vadd.f32 %v3266, %v3354
    %3356 = vmatmul.f32.gmra.mxu0 %v3108
    %v3357 = vpop.f32.mrf.mxu0
    %v3358 = vadd.f32 %v3269, %v3357
    %3359 = vmatmul.f32.gmra.mxu0 %v3111
    %v3360 = vpop.f32.mrf.mxu0
    %v3361 = vadd.f32 %v3272, %v3360
    %3362 = vmatmul.f32.gmra.mxu0 %v3114
    %v3363 = vpop.f32.mrf.mxu0
    %v3364 = vadd.f32 %v3275, %v3363
    %3365 = vmatmul.f32.gmra.mxu0 %v3117
    %v3366 = vpop.f32.mrf.mxu0
    %v3367 = vadd.f32 %v3278, %v3366
    %3368 = vmatmul.f32.gmra.mxu0 %v3120
    %v3369 = vpop.f32.mrf.mxu0
    %v3370 = vadd.f32 %v3281, %v3369
    %3371 = vmatmul.f32.gmra.mxu0 %v3123
    %v3372 = vpop.f32.mrf.mxu0
    %v3373 = vadd.f32 %v3284, %v3372
    %3374 = vmatmul.f32.gmra.mxu0 %v3126
    %v3375 = vpop.f32.mrf.mxu0
    %v3376 = vadd.f32 %v3287, %v3375
    %3377 = vmatmul.f32.gmra.mxu0 %v3129
    %v3378 = vpop.f32.mrf.mxu0
    %v3379 = vadd.f32 %v3290, %v3378
    %3380 = vmatmul.f32.gmra.mxu0 %v3132
    %v3381 = vpop.f32.mrf.mxu0
    %v3382 = vadd.f32 %v3293, %v3381
    %3383 = vmatmul.f32.gmra.mxu0 %v3135
    %v3384 = vpop.f32.mrf.mxu0
    %v3385 = vadd.f32 %v3296, %v3384
    %3386 = vmatmul.f32.gmra.mxu0 %v3138
    %v3387 = vpop.f32.mrf.mxu0
    %v3388 = vadd.f32 %v3299, %v3387
    %3389 = vmatmul.f32.gmra.mxu0 %v3141
    %v3390 = vpop.f32.mrf.mxu0
    %v3391 = vadd.f32 %v3302, %v3390
    %3392 = vmatmul.f32.gmra.mxu0 %v3144
    %v3393 = vpop.f32.mrf.mxu0
    %v3394 = vadd.f32 %v3305, %v3393
    %3395 = vmatmul.f32.gmra.mxu0 %v3147
    %v3396 = vpop.f32.mrf.mxu0
    %v3397 = vadd.f32 %v3308, %v3396
    %3398 = vmatmul.f32.gmra.mxu0 %v3150
    %v3399 = vpop.f32.mrf.mxu0
    %v3400 = vadd.f32 %v3311, %v3399
    %3401 = vmatmul.f32.gmra.mxu0 %v3153
    %v3402 = vpop.f32.mrf.mxu0
    %v3403 = vadd.f32 %v3314, %v3402
    %3404 = vmatmul.f32.gmra.mxu0 %v3156
    %v3405 = vpop.f32.mrf.mxu0
    %v3406 = vadd.f32 %v3317, %v3405
    %3407 = vmatmul.f32.gmra.mxu0 %v3159
    %v3408 = vpop.f32.mrf.mxu0
    %v3409 = vadd.f32 %v3320, %v3408
    %3410 = vmatmul.f32.gmra.mxu0 %v3162
    %v3411 = vpop.f32.mrf.mxu0
    %v3412 = vadd.f32 %v3323, %v3411
    %3413 = vmatmul.f32.gmra.mxu0 %v3165
    %v3414 = vpop.f32.mrf.mxu0
    %v3415 = vadd.f32 %v3326, %v3414
    %3416 = vmatmul.f32.gmra.mxu0 %v3168
    %v3417 = vpop.f32.mrf.mxu0
    %v3418 = vadd.f32 %v3329, %v3417
    %3419 = vmatmul.f32.gmra.mxu0 %v3171
    %v3420 = vpop.f32.mrf.mxu0
    %v3421 = vadd.f32 %v3332, %v3420
    %3422 = vdwg.mxu0
    %3423 = vmatpush.msra.mxu0 0.0
    %3424 = vmatpush.msra.mxu0 0.0
    %3425 = vmatpush.msra.mxu0 0.0
    %3426 = vmatpush.msra.mxu0 0.0
    %3427 = vmatpush.msra.mxu0 0.0
    %3428 = vmatpush.msra.mxu0 0.0
    %3429 = vmatpush.msra.mxu0 0.0
    %3430 = vmatpush.msra.mxu0 0.0
    %3431 = vmatpush.msra.mxu0 0.0
    %3432 = vmatpush.msra.mxu0 %v2687
    %3433 = vmatpush.msra.mxu0 %v2686
    %3434 = vmatpush.msra.mxu0 %v2685
    %3435 = vmatpush.msra.mxu0 %v2684
    %3436 = vmatpush.msra.mxu0 %v2683
    %3437 = vmatpush.msra.mxu0 %v2682
    %3438 = vmatpush.msra.mxu0 %v2681
    %3439 = vmatmul.f32.gmra.mxu0 %v3174
    %v3440 = vpop.f32.mrf.mxu0
    %v3441 = vadd.f32 %v3352, %v3440
    %3442 = vmatmul.f32.gmra.mxu0 %v3177
    %v3443 = vpop.f32.mrf.mxu0
    %v3444 = vadd.f32 %v3355, %v3443
    %3445 = vmatmul.f32.gmra.mxu0 %v3180
    %v3446 = vpop.f32.mrf.mxu0
    %v3447 = vadd.f32 %v3358, %v3446
    %3448 = vmatmul.f32.gmra.mxu0 %v3183
    %v3449 = vpop.f32.mrf.mxu0
    %v3450 = vadd.f32 %v3361, %v3449
    %3451 = vmatmul.f32.gmra.mxu0 %v3186
    %v3452 = vpop.f32.mrf.mxu0
    %v3453 = vadd.f32 %v3364, %v3452
    %3454 = vmatmul.f32.gmra.mxu0 %v3189
    %v3455 = vpop.f32.mrf.mxu0
    %v3456 = vadd.f32 %v3367, %v3455
    %3457 = vmatmul.f32.gmra.mxu0 %v3192
    %v3458 = vpop.f32.mrf.mxu0
    %v3459 = vadd.f32 %v3370, %v3458
    %3460 = vmatmul.f32.gmra.mxu0 %v3195
    %v3461 = vpop.f32.mrf.mxu0
    %v3462 = vadd.f32 %v3373, %v3461
    %3463 = vmatmul.f32.gmra.mxu0 %v3198
    %v3464 = vpop.f32.mrf.mxu0
    %v3465 = vadd.f32 %v3376, %v3464
    %3466 = vmatmul.f32.gmra.mxu0 %v3201
    %v3467 = vpop.f32.mrf.mxu0
    %v3468 = vadd.f32 %v3379, %v3467
    %3469 = vmatmul.f32.gmra.mxu0 %v3204
    %v3470 = vpop.f32.mrf.mxu0
    %v3471 = vadd.f32 %v3382, %v3470
    %3472 = vmatmul.f32.gmra.mxu0 %v3207
    %v3473 = vpop.f32.mrf.mxu0
    %v3474 = vadd.f32 %v3385, %v3473
    %3475 = vmatmul.f32.gmra.mxu0 %v3210
    %v3476 = vpop.f32.mrf.mxu0
    %v3477 = vadd.f32 %v3388, %v3476
    %3478 = vmatmul.f32.gmra.mxu0 %v3213
    %v3479 = vpop.f32.mrf.mxu0
    %v3480 = vadd.f32 %v3391, %v3479
    %3481 = vmatmul.f32.gmra.mxu0 %v3216
    %v3482 = vpop.f32.mrf.mxu0
    %v3483 = vadd.f32 %v3394, %v3482
    %3484 = vmatmul.f32.gmra.mxu0 %v3219
    %v3485 = vpop.f32.mrf.mxu0
    %v3486 = vadd.f32 %v3397, %v3485
    %3487 = vmatmul.f32.gmra.mxu0 %v3222
    %v3488 = vpop.f32.mrf.mxu0
    %v3489 = vadd.f32 %v3400, %v3488
    %3490 = vmatmul.f32.gmra.mxu0 %v3225
    %v3491 = vpop.f32.mrf.mxu0
    %v3492 = vadd.f32 %v3403, %v3491
    %3493 = vmatmul.f32.gmra.mxu0 %v3228
    %v3494 = vpop.f32.mrf.mxu0
    %v3495 = vadd.f32 %v3406, %v3494
    %3496 = vmatmul.f32.gmra.mxu0 %v3231
    %v3497 = vpop.f32.mrf.mxu0
    %v3498 = vadd.f32 %v3409, %v3497
    %3499 = vmatmul.f32.gmra.mxu0 %v3234
    %v3500 = vpop.f32.mrf.mxu0
    %v3501 = vadd.f32 %v3412, %v3500
    %3502 = vmatmul.f32.gmra.mxu0 %v3237
    %v3503 = vpop.f32.mrf.mxu0
    %v3504 = vadd.f32 %v3415, %v3503
    %3505 = vmatmul.f32.gmra.mxu0 %v3240
    %v3506 = vpop.f32.mrf.mxu0
    %v3507 = vadd.f32 %v3418, %v3506
    %3508 = vmatmul.f32.gmra.mxu0 %v3243
    %v3509 = vpop.f32.mrf.mxu0
    %v3510 = vadd.f32 %v3421, %v3509
    %3511 = vdwg.mxu0
    %v3512 = vmax.f32 %v3029, %v3441
    %v3513 = vmax.f32 %v3032, %v3444
    %v3514 = vmax.f32 %v3035, %v3447
    %v3515 = vmax.f32 %v3038, %v3450
    %v3516 = vmax.f32 %v3041, %v3453
    %v3517 = vmax.f32 %v3044, %v3456
    %v3518 = vmax.f32 %v3047, %v3459
    %v3519 = vmax.f32 %v3050, %v3462
    %v3520 = vmax.f32 %v3053, %v3465
    %v3521 = vmax.f32 %v3056, %v3468
    %v3522 = vmax.f32 %v3059, %v3471
    %v3523 = vmax.f32 %v3062, %v3474
    %v3524 = vmax.f32 %v3065, %v3477
    %v3525 = vmax.f32 %v3068, %v3480
    %v3526 = vmax.f32 %v3071, %v3483
    %v3527 = vmax.f32 %v3074, %v3486
    %v3528 = vmax.f32 %v3077, %v3489
    %v3529 = vmax.f32 %v3080, %v3492
    %v3530 = vmax.f32 %v3083, %v3495
    %v3531 = vmax.f32 %v3086, %v3498
    %v3532 = vmax.f32 %v3089, %v3501
    %v3533 = vmax.f32 %v3092, %v3504
    %v3534 = vmax.f32 %v3095, %v3507
    %v3535 = vmax.f32 %v3098, %v3510
    %v3536 = vld [vmem:[#allocation10] sm:$0xff]
    %v3537 = vld [vmem:[#allocation10 + $0x8] sm:$0xff]
    %v3538 = vld [vmem:[#allocation10 + $0x10] sm:$0xff]
    %v3539 = vld [vmem:[#allocation10 + $0x18] sm:$0xff]
    %v3540 = vld [vmem:[#allocation10 + $0x20] sm:$0xff]
    %v3541 = vld [vmem:[#allocation10 + $0x28] sm:$0xff]
    %v3542 = vld [vmem:[#allocation10 + $0x30] sm:$0xff]
    %v3543 = vld [vmem:[#allocation10 + $0x38] sm:$0xff]
    %v3544 = vld [vmem:[#allocation10 + $0x40] sm:$0xff]
    %v3545 = vld [vmem:[#allocation10 + $0x48] sm:$0xff]
    %v3546 = vld [vmem:[#allocation10 + $0x50] sm:$0xff]
    %v3547 = vld [vmem:[#allocation10 + $0x58] sm:$0xff]
    %v3548 = vld [vmem:[#allocation10 + $0x60] sm:$0xff]
    %v3549 = vld [vmem:[#allocation10 + $0x68] sm:$0xff]
    %v3550 = vld [vmem:[#allocation10 + $0x70] sm:$0xff]
    %v3551 = vld [vmem:[#allocation10 + $0x78] sm:$0xff]
    %s3552 = scalar_lea.vmem [#allocation10], 128
    %v3553 = vld [vmem:[%s3552] sm:$0xff]
    %v3554 = vld [vmem:[%s3552 + $0x8] sm:$0xff]
    %v3555 = vld [vmem:[%s3552 + $0x10] sm:$0xff]
    %v3556 = vld [vmem:[%s3552 + $0x18] sm:$0xff]
    %v3557 = vld [vmem:[%s3552 + $0x20] sm:$0xff]
    %v3558 = vld [vmem:[%s3552 + $0x28] sm:$0xff]
    %v3559 = vld [vmem:[%s3552 + $0x30] sm:$0xff]
    %v3560 = vld [vmem:[%s3552 + $0x38] sm:$0xff]
    %v3561 = vld [vmem:[%s3552 + $0x40] sm:$0xff]
    %v3562 = vld [vmem:[%s3552 + $0x48] sm:$0xff]
    %v3563 = vld [vmem:[%s3552 + $0x50] sm:$0xff]
    %v3564 = vld [vmem:[%s3552 + $0x58] sm:$0xff]
    %v3565 = vld [vmem:[%s3552 + $0x60] sm:$0xff]
    %v3566 = vld [vmem:[%s3552 + $0x68] sm:$0xff]
    %v3567 = vld [vmem:[%s3552 + $0x70] sm:$0xff]
    %v3568 = vld [vmem:[%s3552 + $0x78] sm:$0xff]
    %v3593 = vrot.slane %v3512, 1
    %v3594 = vrot.slane %v3513, 1
    %v3595 = vsel %vm298, %v3593, %v3594
    %v3596 = vrot.slane %v3514, 1
    %v3597 = vsel %vm298, %v3594, %v3596
    %v3598 = vrot.slane %v3515, 1
    %v3599 = vsel %vm298, %v3596, %v3598
    %v3600 = vrot.slane %v3516, 1
    %v3601 = vsel %vm298, %v3598, %v3600
    %v3602 = vrot.slane %v3517, 1
    %v3603 = vsel %vm298, %v3600, %v3602
    %v3604 = vrot.slane %v3518, 1
    %v3605 = vsel %vm298, %v3602, %v3604
    %v3606 = vrot.slane %v3519, 1
    %v3607 = vsel %vm298, %v3604, %v3606
    %v3608 = vrot.slane %v3520, 1
    %v3609 = vsel %vm298, %v3606, %v3608
    %v3610 = vrot.slane %v3521, 1
    %v3611 = vsel %vm298, %v3608, %v3610
    %v3612 = vrot.slane %v3522, 1
    %v3613 = vsel %vm298, %v3610, %v3612
    %v3614 = vrot.slane %v3523, 1
    %v3615 = vsel %vm298, %v3612, %v3614
    %v3616 = vrot.slane %v3524, 1
    %v3617 = vsel %vm298, %v3614, %v3616
    %v3618 = vrot.slane %v3525, 1
    %v3619 = vsel %vm298, %v3616, %v3618
    %v3620 = vrot.slane %v3526, 1
    %v3621 = vsel %vm298, %v3618, %v3620
    %v3622 = vrot.slane %v3527, 1
    %v3623 = vsel %vm298, %v3620, %v3622
    %v3624 = vrot.slane %v3528, 1
    %v3625 = vsel %vm298, %v3622, %v3624
    %v3626 = vrot.slane %v3529, 1
    %v3627 = vsel %vm298, %v3624, %v3626
    %v3628 = vrot.slane %v3530, 1
    %v3629 = vsel %vm298, %v3626, %v3628
    %v3630 = vrot.slane %v3531, 1
    %v3631 = vsel %vm298, %v3628, %v3630
    %v3632 = vrot.slane %v3532, 1
    %v3633 = vsel %vm298, %v3630, %v3632
    %v3634 = vrot.slane %v3533, 1
    %v3635 = vsel %vm298, %v3632, %v3634
    %v3636 = vrot.slane %v3534, 1
    %v3637 = vsel %vm298, %v3634, %v3636
    %v3638 = vrot.slane %v3535, 1
    %v3639 = vsel %vm298, %v3636, %v3638
    %3663 = vmatpush.msra.mxu0 %v3568
    %3664 = vmatpush.msra.mxu0 %v3567
    %3665 = vmatpush.msra.mxu0 %v3566
    %3666 = vmatpush.msra.mxu0 %v3565
    %3667 = vmatpush.msra.mxu0 %v3564
    %3668 = vmatpush.msra.mxu0 %v3563
    %3669 = vmatpush.msra.mxu0 %v3562
    %3670 = vmatpush.msra.mxu0 %v3561
    %3671 = vmatpush.msra.mxu0 %v3560
    %3672 = vmatpush.msra.mxu0 %v3559
    %3673 = vmatpush.msra.mxu0 %v3558
    %3674 = vmatpush.msra.mxu0 %v3557
    %3675 = vmatpush.msra.mxu0 %v3556
    %3676 = vmatpush.msra.mxu0 %v3555
    %3677 = vmatpush.msra.mxu0 %v3554
    %3678 = vmatpush.msra.mxu0 %v3553
    %3679 = vmatmul.f32.gmra.mxu0 %v3595
    %v3680 = vpop.f32.mrf.mxu0
    %v3681 = vadd.f32 0.0, %v3680
    %3682 = vmatmul.f32.gmra.mxu0 %v3597
    %v3683 = vpop.f32.mrf.mxu0
    %v3684 = vadd.f32 0.0, %v3683
    %3685 = vmatmul.f32.gmra.mxu0 %v3599
    %v3686 = vpop.f32.mrf.mxu0
    %v3687 = vadd.f32 0.0, %v3686
    %3688 = vmatmul.f32.gmra.mxu0 %v3601
    %v3689 = vpop.f32.mrf.mxu0
    %v3690 = vadd.f32 0.0, %v3689
    %3691 = vmatmul.f32.gmra.mxu0 %v3603
    %v3692 = vpop.f32.mrf.mxu0
    %v3693 = vadd.f32 0.0, %v3692
    %3694 = vmatmul.f32.gmra.mxu0 %v3605
    %v3695 = vpop.f32.mrf.mxu0
    %v3696 = vadd.f32 0.0, %v3695
    %3697 = vmatmul.f32.gmra.mxu0 %v3607
    %v3698 = vpop.f32.mrf.mxu0
    %v3699 = vadd.f32 0.0, %v3698
    %3700 = vmatmul.f32.gmra.mxu0 %v3609
    %v3701 = vpop.f32.mrf.mxu0
    %v3702 = vadd.f32 0.0, %v3701
    %3703 = vmatmul.f32.gmra.mxu0 %v3611
    %v3704 = vpop.f32.mrf.mxu0
    %v3705 = vadd.f32 0.0, %v3704
    %3706 = vmatmul.f32.gmra.mxu0 %v3613
    %v3707 = vpop.f32.mrf.mxu0
    %v3708 = vadd.f32 0.0, %v3707
    %3709 = vmatmul.f32.gmra.mxu0 %v3615
    %v3710 = vpop.f32.mrf.mxu0
    %v3711 = vadd.f32 0.0, %v3710
    %3712 = vmatmul.f32.gmra.mxu0 %v3617
    %v3713 = vpop.f32.mrf.mxu0
    %v3714 = vadd.f32 0.0, %v3713
    %3715 = vmatmul.f32.gmra.mxu0 %v3619
    %v3716 = vpop.f32.mrf.mxu0
    %v3717 = vadd.f32 0.0, %v3716
    %3718 = vmatmul.f32.gmra.mxu0 %v3621
    %v3719 = vpop.f32.mrf.mxu0
    %v3720 = vadd.f32 0.0, %v3719
    %3721 = vmatmul.f32.gmra.mxu0 %v3623
    %v3722 = vpop.f32.mrf.mxu0
    %v3723 = vadd.f32 0.0, %v3722
    %3724 = vmatmul.f32.gmra.mxu0 %v3625
    %v3725 = vpop.f32.mrf.mxu0
    %v3726 = vadd.f32 0.0, %v3725
    %3727 = vmatmul.f32.gmra.mxu0 %v3627
    %v3728 = vpop.f32.mrf.mxu0
    %v3729 = vadd.f32 0.0, %v3728
    %3730 = vmatmul.f32.gmra.mxu0 %v3629
    %v3731 = vpop.f32.mrf.mxu0
    %v3732 = vadd.f32 0.0, %v3731
    %3733 = vmatmul.f32.gmra.mxu0 %v3631
    %v3734 = vpop.f32.mrf.mxu0
    %v3735 = vadd.f32 0.0, %v3734
    %3736 = vmatmul.f32.gmra.mxu0 %v3633
    %v3737 = vpop.f32.mrf.mxu0
    %v3738 = vadd.f32 0.0, %v3737
    %3739 = vmatmul.f32.gmra.mxu0 %v3635
    %v3740 = vpop.f32.mrf.mxu0
    %v3741 = vadd.f32 0.0, %v3740
    %3742 = vmatmul.f32.gmra.mxu0 %v3637
    %v3743 = vpop.f32.mrf.mxu0
    %v3744 = vadd.f32 0.0, %v3743
    %3745 = vmatmul.f32.gmra.mxu0 %v3639
    %v3746 = vpop.f32.mrf.mxu0
    %v3747 = vadd.f32 0.0, %v3746
    %3748 = vdwg.mxu0
    %3749 = vmatpush.msra.mxu0 %v3551
    %3750 = vmatpush.msra.mxu0 %v3550
    %3751 = vmatpush.msra.mxu0 %v3549
    %3752 = vmatpush.msra.mxu0 %v3548
    %3753 = vmatpush.msra.mxu0 %v3547
    %3754 = vmatpush.msra.mxu0 %v3546
    %3755 = vmatpush.msra.mxu0 %v3545
    %3756 = vmatpush.msra.mxu0 %v3544
    %3757 = vmatpush.msra.mxu0 %v3543
    %3758 = vmatpush.msra.mxu0 %v3542
    %3759 = vmatpush.msra.mxu0 %v3541
    %3760 = vmatpush.msra.mxu0 %v3540
    %3761 = vmatpush.msra.mxu0 %v3539
    %3762 = vmatpush.msra.mxu0 %v3538
    %3763 = vmatpush.msra.mxu0 %v3537
    %3764 = vmatpush.msra.mxu0 %v3536
    %3765 = vmatmul.f32.gmra.mxu0 %v3512
    %v3766 = vpop.f32.mrf.mxu0
    %v3767 = vadd.f32 %v3681, %v3766
    %3768 = vmatmul.f32.gmra.mxu0 %v3513
    %v3769 = vpop.f32.mrf.mxu0
    %v3770 = vadd.f32 %v3684, %v3769
    %3771 = vmatmul.f32.gmra.mxu0 %v3514
    %v3772 = vpop.f32.mrf.mxu0
    %v3773 = vadd.f32 %v3687, %v3772
    %3774 = vmatmul.f32.gmra.mxu0 %v3515
    %v3775 = vpop.f32.mrf.mxu0
    %v3776 = vadd.f32 %v3690, %v3775
    %3777 = vmatmul.f32.gmra.mxu0 %v3516
    %v3778 = vpop.f32.mrf.mxu0
    %v3779 = vadd.f32 %v3693, %v3778
    %3780 = vmatmul.f32.gmra.mxu0 %v3517
    %v3781 = vpop.f32.mrf.mxu0
    %v3782 = vadd.f32 %v3696, %v3781
    %3783 = vmatmul.f32.gmra.mxu0 %v3518
    %v3784 = vpop.f32.mrf.mxu0
    %v3785 = vadd.f32 %v3699, %v3784
    %3786 = vmatmul.f32.gmra.mxu0 %v3519
    %v3787 = vpop.f32.mrf.mxu0
    %v3788 = vadd.f32 %v3702, %v3787
    %3789 = vmatmul.f32.gmra.mxu0 %v3520
    %v3790 = vpop.f32.mrf.mxu0
    %v3791 = vadd.f32 %v3705, %v3790
    %3792 = vmatmul.f32.gmra.mxu0 %v3521
    %v3793 = vpop.f32.mrf.mxu0
    %v3794 = vadd.f32 %v3708, %v3793
    %3795 = vmatmul.f32.gmra.mxu0 %v3522
    %v3796 = vpop.f32.mrf.mxu0
    %v3797 = vadd.f32 %v3711, %v3796
    %3798 = vmatmul.f32.gmra.mxu0 %v3523
    %v3799 = vpop.f32.mrf.mxu0
    %v3800 = vadd.f32 %v3714, %v3799
    %3801 = vmatmul.f32.gmra.mxu0 %v3524
    %v3802 = vpop.f32.mrf.mxu0
    %v3803 = vadd.f32 %v3717, %v3802
    %3804 = vmatmul.f32.gmra.mxu0 %v3525
    %v3805 = vpop.f32.mrf.mxu0
    %v3806 = vadd.f32 %v3720, %v3805
    %3807 = vmatmul.f32.gmra.mxu0 %v3526
    %v3808 = vpop.f32.mrf.mxu0
    %v3809 = vadd.f32 %v3723, %v3808
    %3810 = vmatmul.f32.gmra.mxu0 %v3527
    %v3811 = vpop.f32.mrf.mxu0
    %v3812 = vadd.f32 %v3726, %v3811
    %3813 = vmatmul.f32.gmra.mxu0 %v3528
    %v3814 = vpop.f32.mrf.mxu0
    %v3815 = vadd.f32 %v3729, %v3814
    %3816 = vmatmul.f32.gmra.mxu0 %v3529
    %v3817 = vpop.f32.mrf.mxu0
    %v3818 = vadd.f32 %v3732, %v3817
    %3819 = vmatmul.f32.gmra.mxu0 %v3530
    %v3820 = vpop.f32.mrf.mxu0
    %v3821 = vadd.f32 %v3735, %v3820
    %3822 = vmatmul.f32.gmra.mxu0 %v3531
    %v3823 = vpop.f32.mrf.mxu0
    %v3824 = vadd.f32 %v3738, %v3823
    %3825 = vmatmul.f32.gmra.mxu0 %v3532
    %v3826 = vpop.f32.mrf.mxu0
    %v3827 = vadd.f32 %v3741, %v3826
    %3828 = vmatmul.f32.gmra.mxu0 %v3533
    %v3829 = vpop.f32.mrf.mxu0
    %v3830 = vadd.f32 %v3744, %v3829
    %3831 = vmatmul.f32.gmra.mxu0 %v3534
    %v3832 = vpop.f32.mrf.mxu0
    %v3833 = vadd.f32 %v3747, %v3832
    %3834 = vdwg.mxu0
    %s3835 = scalar_lea.vmem [#allocation10], 256
    %v3836 = vld [vmem:[%s3835] sm:$0xff]
    %v3837 = vld [vmem:[%s3835 + $0x8] sm:$0xff]
    %v3838 = vld [vmem:[%s3835 + $0x10] sm:$0xff]
    %v3839 = vld [vmem:[%s3835 + $0x18] sm:$0xff]
    %v3840 = vld [vmem:[%s3835 + $0x20] sm:$0xff]
    %v3841 = vld [vmem:[%s3835 + $0x28] sm:$0xff]
    %v3842 = vld [vmem:[%s3835 + $0x30] sm:$0xff]
    %v3843 = vld [vmem:[%s3835 + $0x38] sm:$0xff]
    %v3844 = vld [vmem:[%s3835 + $0x40] sm:$0xff]
    %v3845 = vld [vmem:[%s3835 + $0x48] sm:$0xff]
    %v3846 = vld [vmem:[%s3835 + $0x50] sm:$0xff]
    %v3847 = vld [vmem:[%s3835 + $0x58] sm:$0xff]
    %v3848 = vld [vmem:[%s3835 + $0x60] sm:$0xff]
    %v3849 = vld [vmem:[%s3835 + $0x68] sm:$0xff]
    %v3850 = vld [vmem:[%s3835 + $0x70] sm:$0xff]
    %v3851 = vld [vmem:[%s3835 + $0x78] sm:$0xff]
    %v3852 = vrot.slane %v3512, 2
    %v3853 = vrot.slane %v3513, 2
    %v3854 = vsel %vm702, %v3852, %v3853
    %v3855 = vrot.slane %v3514, 2
    %v3856 = vsel %vm702, %v3853, %v3855
    %v3857 = vrot.slane %v3515, 2
    %v3858 = vsel %vm702, %v3855, %v3857
    %v3859 = vrot.slane %v3516, 2
    %v3860 = vsel %vm702, %v3857, %v3859
    %v3861 = vrot.slane %v3517, 2
    %v3862 = vsel %vm702, %v3859, %v3861
    %v3863 = vrot.slane %v3518, 2
    %v3864 = vsel %vm702, %v3861, %v3863
    %v3865 = vrot.slane %v3519, 2
    %v3866 = vsel %vm702, %v3863, %v3865
    %v3867 = vrot.slane %v3520, 2
    %v3868 = vsel %vm702, %v3865, %v3867
    %v3869 = vrot.slane %v3521, 2
    %v3870 = vsel %vm702, %v3867, %v3869
    %v3871 = vrot.slane %v3522, 2
    %v3872 = vsel %vm702, %v3869, %v3871
    %v3873 = vrot.slane %v3523, 2
    %v3874 = vsel %vm702, %v3871, %v3873
    %v3875 = vrot.slane %v3524, 2
    %v3876 = vsel %vm702, %v3873, %v3875
    %v3877 = vrot.slane %v3525, 2
    %v3878 = vsel %vm702, %v3875, %v3877
    %v3879 = vrot.slane %v3526, 2
    %v3880 = vsel %vm702, %v3877, %v3879
    %v3881 = vrot.slane %v3527, 2
    %v3882 = vsel %vm702, %v3879, %v3881
    %v3883 = vrot.slane %v3528, 2
    %v3884 = vsel %vm702, %v3881, %v3883
    %v3885 = vrot.slane %v3529, 2
    %v3886 = vsel %vm702, %v3883, %v3885
    %v3887 = vrot.slane %v3530, 2
    %v3888 = vsel %vm702, %v3885, %v3887
    %v3889 = vrot.slane %v3531, 2
    %v3890 = vsel %vm702, %v3887, %v3889
    %v3891 = vrot.slane %v3532, 2
    %v3892 = vsel %vm702, %v3889, %v3891
    %v3893 = vrot.slane %v3533, 2
    %v3894 = vsel %vm702, %v3891, %v3893
    %v3895 = vrot.slane %v3534, 2
    %v3896 = vsel %vm702, %v3893, %v3895
    %v3897 = vrot.slane %v3535, 2
    %v3898 = vsel %vm702, %v3895, %v3897
    %3922 = vmatpush.msra.mxu0 %v3851
    %3923 = vmatpush.msra.mxu0 %v3850
    %3924 = vmatpush.msra.mxu0 %v3849
    %3925 = vmatpush.msra.mxu0 %v3848
    %3926 = vmatpush.msra.mxu0 %v3847
    %3927 = vmatpush.msra.mxu0 %v3846
    %3928 = vmatpush.msra.mxu0 %v3845
    %3929 = vmatpush.msra.mxu0 %v3844
    %3930 = vmatpush.msra.mxu0 %v3843
    %3931 = vmatpush.msra.mxu0 %v3842
    %3932 = vmatpush.msra.mxu0 %v3841
    %3933 = vmatpush.msra.mxu0 %v3840
    %3934 = vmatpush.msra.mxu0 %v3839
    %3935 = vmatpush.msra.mxu0 %v3838
    %3936 = vmatpush.msra.mxu0 %v3837
    %3937 = vmatpush.msra.mxu0 %v3836
    %3938 = vmatmul.f32.gmra.mxu0 %v3854
    %v3939 = vpop.f32.mrf.mxu0
    %v3940 = vadd.f32 0.0, %v3939
    %3941 = vmatmul.f32.gmra.mxu0 %v3856
    %v3942 = vpop.f32.mrf.mxu0
    %v3943 = vadd.f32 0.0, %v3942
    %3944 = vmatmul.f32.gmra.mxu0 %v3858
    %v3945 = vpop.f32.mrf.mxu0
    %v3946 = vadd.f32 0.0, %v3945
    %3947 = vmatmul.f32.gmra.mxu0 %v3860
    %v3948 = vpop.f32.mrf.mxu0
    %v3949 = vadd.f32 0.0, %v3948
    %3950 = vmatmul.f32.gmra.mxu0 %v3862
    %v3951 = vpop.f32.mrf.mxu0
    %v3952 = vadd.f32 0.0, %v3951
    %3953 = vmatmul.f32.gmra.mxu0 %v3864
    %v3954 = vpop.f32.mrf.mxu0
    %v3955 = vadd.f32 0.0, %v3954
    %3956 = vmatmul.f32.gmra.mxu0 %v3866
    %v3957 = vpop.f32.mrf.mxu0
    %v3958 = vadd.f32 0.0, %v3957
    %3959 = vmatmul.f32.gmra.mxu0 %v3868
    %v3960 = vpop.f32.mrf.mxu0
    %v3961 = vadd.f32 0.0, %v3960
    %3962 = vmatmul.f32.gmra.mxu0 %v3870
    %v3963 = vpop.f32.mrf.mxu0
    %v3964 = vadd.f32 0.0, %v3963
    %3965 = vmatmul.f32.gmra.mxu0 %v3872
    %v3966 = vpop.f32.mrf.mxu0
    %v3967 = vadd.f32 0.0, %v3966
    %3968 = vmatmul.f32.gmra.mxu0 %v3874
    %v3969 = vpop.f32.mrf.mxu0
    %v3970 = vadd.f32 0.0, %v3969
    %3971 = vmatmul.f32.gmra.mxu0 %v3876
    %v3972 = vpop.f32.mrf.mxu0
    %v3973 = vadd.f32 0.0, %v3972
    %3974 = vmatmul.f32.gmra.mxu0 %v3878
    %v3975 = vpop.f32.mrf.mxu0
    %v3976 = vadd.f32 0.0, %v3975
    %3977 = vmatmul.f32.gmra.mxu0 %v3880
    %v3978 = vpop.f32.mrf.mxu0
    %v3979 = vadd.f32 0.0, %v3978
    %3980 = vmatmul.f32.gmra.mxu0 %v3882
    %v3981 = vpop.f32.mrf.mxu0
    %v3982 = vadd.f32 0.0, %v3981
    %3983 = vmatmul.f32.gmra.mxu0 %v3884
    %v3984 = vpop.f32.mrf.mxu0
    %v3985 = vadd.f32 0.0, %v3984
    %3986 = vmatmul.f32.gmra.mxu0 %v3886
    %v3987 = vpop.f32.mrf.mxu0
    %v3988 = vadd.f32 0.0, %v3987
    %3989 = vmatmul.f32.gmra.mxu0 %v3888
    %v3990 = vpop.f32.mrf.mxu0
    %v3991 = vadd.f32 0.0, %v3990
    %3992 = vmatmul.f32.gmra.mxu0 %v3890
    %v3993 = vpop.f32.mrf.mxu0
    %v3994 = vadd.f32 0.0, %v3993
    %3995 = vmatmul.f32.gmra.mxu0 %v3892
    %v3996 = vpop.f32.mrf.mxu0
    %v3997 = vadd.f32 0.0, %v3996
    %3998 = vmatmul.f32.gmra.mxu0 %v3894
    %v3999 = vpop.f32.mrf.mxu0
    %v4000 = vadd.f32 0.0, %v3999
    %4001 = vmatmul.f32.gmra.mxu0 %v3896
    %v4002 = vpop.f32.mrf.mxu0
    %v4003 = vadd.f32 0.0, %v4002
    %4004 = vmatmul.f32.gmra.mxu0 %v3898
    %v4005 = vpop.f32.mrf.mxu0
    %v4006 = vadd.f32 0.0, %v4005
    %4007 = vdwg.mxu0
    %v4008 = vadd.f32 %v3767, %v3940
    %v4009 = vadd.f32 %v3770, %v3943
    %v4010 = vadd.f32 %v3773, %v3946
    %v4011 = vadd.f32 %v3776, %v3949
    %v4012 = vadd.f32 %v3779, %v3952
    %v4013 = vadd.f32 %v3782, %v3955
    %v4014 = vadd.f32 %v3785, %v3958
    %v4015 = vadd.f32 %v3788, %v3961
    %v4016 = vadd.f32 %v3791, %v3964
    %v4017 = vadd.f32 %v3794, %v3967
    %v4018 = vadd.f32 %v3797, %v3970
    %v4019 = vadd.f32 %v3800, %v3973
    %v4020 = vadd.f32 %v3803, %v3976
    %v4021 = vadd.f32 %v3806, %v3979
    %v4022 = vadd.f32 %v3809, %v3982
    %v4023 = vadd.f32 %v3812, %v3985
    %v4024 = vadd.f32 %v3815, %v3988
    %v4025 = vadd.f32 %v3818, %v3991
    %v4026 = vadd.f32 %v3821, %v3994
    %v4027 = vadd.f32 %v3824, %v3997
    %v4028 = vadd.f32 %v3827, %v4000
    %v4029 = vadd.f32 %v3830, %v4003
    %v4030 = vadd.f32 %v3833, %v4006
    %s4031 = scalar_lea.vmem [#allocation10], 384
    %v4032 = vld [vmem:[%s4031] sm:$0xff]
    %v4033 = vld [vmem:[%s4031 + $0x8] sm:$0xff]
    %v4034 = vld [vmem:[%s4031 + $0x10] sm:$0xff]
    %v4035 = vld [vmem:[%s4031 + $0x18] sm:$0xff]
    %v4036 = vld [vmem:[%s4031 + $0x20] sm:$0xff]
    %v4037 = vld [vmem:[%s4031 + $0x28] sm:$0xff]
    %v4038 = vld [vmem:[%s4031 + $0x30] sm:$0xff]
    %v4039 = vld [vmem:[%s4031 + $0x38] sm:$0xff]
    %v4040 = vld [vmem:[%s4031 + $0x40] sm:$0xff]
    %v4041 = vld [vmem:[%s4031 + $0x48] sm:$0xff]
    %v4042 = vld [vmem:[%s4031 + $0x50] sm:$0xff]
    %v4043 = vld [vmem:[%s4031 + $0x58] sm:$0xff]
    %v4044 = vld [vmem:[%s4031 + $0x60] sm:$0xff]
    %v4045 = vld [vmem:[%s4031 + $0x68] sm:$0xff]
    %v4046 = vld [vmem:[%s4031 + $0x70] sm:$0xff]
    %v4047 = vld [vmem:[%s4031 + $0x78] sm:$0xff]
    %v4048 = vrot.slane %v3512, 3
    %v4049 = vrot.slane %v3513, 3
    %v4050 = vsel %vm1011, %v4048, %v4049
    %v4051 = vrot.slane %v3514, 3
    %v4052 = vsel %vm1011, %v4049, %v4051
    %v4053 = vrot.slane %v3515, 3
    %v4054 = vsel %vm1011, %v4051, %v4053
    %v4055 = vrot.slane %v3516, 3
    %v4056 = vsel %vm1011, %v4053, %v4055
    %v4057 = vrot.slane %v3517, 3
    %v4058 = vsel %vm1011, %v4055, %v4057
    %v4059 = vrot.slane %v3518, 3
    %v4060 = vsel %vm1011, %v4057, %v4059
    %v4061 = vrot.slane %v3519, 3
    %v4062 = vsel %vm1011, %v4059, %v4061
    %v4063 = vrot.slane %v3520, 3
    %v4064 = vsel %vm1011, %v4061, %v4063
    %v4065 = vrot.slane %v3521, 3
    %v4066 = vsel %vm1011, %v4063, %v4065
    %v4067 = vrot.slane %v3522, 3
    %v4068 = vsel %vm1011, %v4065, %v4067
    %v4069 = vrot.slane %v3523, 3
    %v4070 = vsel %vm1011, %v4067, %v4069
    %v4071 = vrot.slane %v3524, 3
    %v4072 = vsel %vm1011, %v4069, %v4071
    %v4073 = vrot.slane %v3525, 3
    %v4074 = vsel %vm1011, %v4071, %v4073
    %v4075 = vrot.slane %v3526, 3
    %v4076 = vsel %vm1011, %v4073, %v4075
    %v4077 = vrot.slane %v3527, 3
    %v4078 = vsel %vm1011, %v4075, %v4077
    %v4079 = vrot.slane %v3528, 3
    %v4080 = vsel %vm1011, %v4077, %v4079
    %v4081 = vrot.slane %v3529, 3
    %v4082 = vsel %vm1011, %v4079, %v4081
    %v4083 = vrot.slane %v3530, 3
    %v4084 = vsel %vm1011, %v4081, %v4083
    %v4085 = vrot.slane %v3531, 3
    %v4086 = vsel %vm1011, %v4083, %v4085
    %v4087 = vrot.slane %v3532, 3
    %v4088 = vsel %vm1011, %v4085, %v4087
    %v4089 = vrot.slane %v3533, 3
    %v4090 = vsel %vm1011, %v4087, %v4089
    %v4091 = vrot.slane %v3534, 3
    %v4092 = vsel %vm1011, %v4089, %v4091
    %v4093 = vrot.slane %v3535, 3
    %v4094 = vsel %vm1011, %v4091, %v4093
    %4118 = vmatpush.msra.mxu0 %v4047
    %4119 = vmatpush.msra.mxu0 %v4046
    %4120 = vmatpush.msra.mxu0 %v4045
    %4121 = vmatpush.msra.mxu0 %v4044
    %4122 = vmatpush.msra.mxu0 %v4043
    %4123 = vmatpush.msra.mxu0 %v4042
    %4124 = vmatpush.msra.mxu0 %v4041
    %4125 = vmatpush.msra.mxu0 %v4040
    %4126 = vmatpush.msra.mxu0 %v4039
    %4127 = vmatpush.msra.mxu0 %v4038
    %4128 = vmatpush.msra.mxu0 %v4037
    %4129 = vmatpush.msra.mxu0 %v4036
    %4130 = vmatpush.msra.mxu0 %v4035
    %4131 = vmatpush.msra.mxu0 %v4034
    %4132 = vmatpush.msra.mxu0 %v4033
    %4133 = vmatpush.msra.mxu0 %v4032
    %4134 = vmatmul.f32.gmra.mxu0 %v4050
    %v4135 = vpop.f32.mrf.mxu0
    %v4136 = vadd.f32 0.0, %v4135
    %4137 = vmatmul.f32.gmra.mxu0 %v4052
    %v4138 = vpop.f32.mrf.mxu0
    %v4139 = vadd.f32 0.0, %v4138
    %4140 = vmatmul.f32.gmra.mxu0 %v4054
    %v4141 = vpop.f32.mrf.mxu0
    %v4142 = vadd.f32 0.0, %v4141
    %4143 = vmatmul.f32.gmra.mxu0 %v4056
    %v4144 = vpop.f32.mrf.mxu0
    %v4145 = vadd.f32 0.0, %v4144
    %4146 = vmatmul.f32.gmra.mxu0 %v4058
    %v4147 = vpop.f32.mrf.mxu0
    %v4148 = vadd.f32 0.0, %v4147
    %4149 = vmatmul.f32.gmra.mxu0 %v4060
    %v4150 = vpop.f32.mrf.mxu0
    %v4151 = vadd.f32 0.0, %v4150
    %4152 = vmatmul.f32.gmra.mxu0 %v4062
    %v4153 = vpop.f32.mrf.mxu0
    %v4154 = vadd.f32 0.0, %v4153
    %4155 = vmatmul.f32.gmra.mxu0 %v4064
    %v4156 = vpop.f32.mrf.mxu0
    %v4157 = vadd.f32 0.0, %v4156
    %4158 = vmatmul.f32.gmra.mxu0 %v4066
    %v4159 = vpop.f32.mrf.mxu0
    %v4160 = vadd.f32 0.0, %v4159
    %4161 = vmatmul.f32.gmra.mxu0 %v4068
    %v4162 = vpop.f32.mrf.mxu0
    %v4163 = vadd.f32 0.0, %v4162
    %4164 = vmatmul.f32.gmra.mxu0 %v4070
    %v4165 = vpop.f32.mrf.mxu0
    %v4166 = vadd.f32 0.0, %v4165
    %4167 = vmatmul.f32.gmra.mxu0 %v4072
    %v4168 = vpop.f32.mrf.mxu0
    %v4169 = vadd.f32 0.0, %v4168
    %4170 = vmatmul.f32.gmra.mxu0 %v4074
    %v4171 = vpop.f32.mrf.mxu0
    %v4172 = vadd.f32 0.0, %v4171
    %4173 = vmatmul.f32.gmra.mxu0 %v4076
    %v4174 = vpop.f32.mrf.mxu0
    %v4175 = vadd.f32 0.0, %v4174
    %4176 = vmatmul.f32.gmra.mxu0 %v4078
    %v4177 = vpop.f32.mrf.mxu0
    %v4178 = vadd.f32 0.0, %v4177
    %4179 = vmatmul.f32.gmra.mxu0 %v4080
    %v4180 = vpop.f32.mrf.mxu0
    %v4181 = vadd.f32 0.0, %v4180
    %4182 = vmatmul.f32.gmra.mxu0 %v4082
    %v4183 = vpop.f32.mrf.mxu0
    %v4184 = vadd.f32 0.0, %v4183
    %4185 = vmatmul.f32.gmra.mxu0 %v4084
    %v4186 = vpop.f32.mrf.mxu0
    %v4187 = vadd.f32 0.0, %v4186
    %4188 = vmatmul.f32.gmra.mxu0 %v4086
    %v4189 = vpop.f32.mrf.mxu0
    %v4190 = vadd.f32 0.0, %v4189
    %4191 = vmatmul.f32.gmra.mxu0 %v4088
    %v4192 = vpop.f32.mrf.mxu0
    %v4193 = vadd.f32 0.0, %v4192
    %4194 = vmatmul.f32.gmra.mxu0 %v4090
    %v4195 = vpop.f32.mrf.mxu0
    %v4196 = vadd.f32 0.0, %v4195
    %4197 = vmatmul.f32.gmra.mxu0 %v4092
    %v4198 = vpop.f32.mrf.mxu0
    %v4199 = vadd.f32 0.0, %v4198
    %4200 = vmatmul.f32.gmra.mxu0 %v4094
    %v4201 = vpop.f32.mrf.mxu0
    %v4202 = vadd.f32 0.0, %v4201
    %4203 = vdwg.mxu0
    %v4204 = vadd.f32 %v4008, %v4136
    %v4205 = vadd.f32 %v4009, %v4139
    %v4206 = vadd.f32 %v4010, %v4142
    %v4207 = vadd.f32 %v4011, %v4145
    %v4208 = vadd.f32 %v4012, %v4148
    %v4209 = vadd.f32 %v4013, %v4151
    %v4210 = vadd.f32 %v4014, %v4154
    %v4211 = vadd.f32 %v4015, %v4157
    %v4212 = vadd.f32 %v4016, %v4160
    %v4213 = vadd.f32 %v4017, %v4163
    %v4214 = vadd.f32 %v4018, %v4166
    %v4215 = vadd.f32 %v4019, %v4169
    %v4216 = vadd.f32 %v4020, %v4172
    %v4217 = vadd.f32 %v4021, %v4175
    %v4218 = vadd.f32 %v4022, %v4178
    %v4219 = vadd.f32 %v4023, %v4181
    %v4220 = vadd.f32 %v4024, %v4184
    %v4221 = vadd.f32 %v4025, %v4187
    %v4222 = vadd.f32 %v4026, %v4190
    %v4223 = vadd.f32 %v4027, %v4193
    %v4224 = vadd.f32 %v4028, %v4196
    %v4225 = vadd.f32 %v4029, %v4199
    %v4226 = vadd.f32 %v4030, %v4202
    %s4227 = scalar_lea.vmem [#allocation10], 512
    %v4228 = vld [vmem:[%s4227] sm:$0xff]
    %v4229 = vld [vmem:[%s4227 + $0x8] sm:$0xff]
    %v4230 = vld [vmem:[%s4227 + $0x10] sm:$0xff]
    %v4231 = vld [vmem:[%s4227 + $0x18] sm:$0xff]
    %v4232 = vld [vmem:[%s4227 + $0x20] sm:$0xff]
    %v4233 = vld [vmem:[%s4227 + $0x28] sm:$0xff]
    %v4234 = vld [vmem:[%s4227 + $0x30] sm:$0xff]
    %v4235 = vld [vmem:[%s4227 + $0x38] sm:$0xff]
    %v4236 = vld [vmem:[%s4227 + $0x40] sm:$0xff]
    %v4237 = vld [vmem:[%s4227 + $0x48] sm:$0xff]
    %v4238 = vld [vmem:[%s4227 + $0x50] sm:$0xff]
    %v4239 = vld [vmem:[%s4227 + $0x58] sm:$0xff]
    %v4240 = vld [vmem:[%s4227 + $0x60] sm:$0xff]
    %v4241 = vld [vmem:[%s4227 + $0x68] sm:$0xff]
    %v4242 = vld [vmem:[%s4227 + $0x70] sm:$0xff]
    %v4243 = vld [vmem:[%s4227 + $0x78] sm:$0xff]
    %v4244 = vrot.slane %v3512, 4
    %v4245 = vrot.slane %v3513, 4
    %v4246 = vsel %vm1320, %v4244, %v4245
    %v4247 = vrot.slane %v3514, 4
    %v4248 = vsel %vm1320, %v4245, %v4247
    %v4249 = vrot.slane %v3515, 4
    %v4250 = vsel %vm1320, %v4247, %v4249
    %v4251 = vrot.slane %v3516, 4
    %v4252 = vsel %vm1320, %v4249, %v4251
    %v4253 = vrot.slane %v3517, 4
    %v4254 = vsel %vm1320, %v4251, %v4253
    %v4255 = vrot.slane %v3518, 4
    %v4256 = vsel %vm1320, %v4253, %v4255
    %v4257 = vrot.slane %v3519, 4
    %v4258 = vsel %vm1320, %v4255, %v4257
    %v4259 = vrot.slane %v3520, 4
    %v4260 = vsel %vm1320, %v4257, %v4259
    %v4261 = vrot.slane %v3521, 4
    %v4262 = vsel %vm1320, %v4259, %v4261
    %v4263 = vrot.slane %v3522, 4
    %v4264 = vsel %vm1320, %v4261, %v4263
    %v4265 = vrot.slane %v3523, 4
    %v4266 = vsel %vm1320, %v4263, %v4265
    %v4267 = vrot.slane %v3524, 4
    %v4268 = vsel %vm1320, %v4265, %v4267
    %v4269 = vrot.slane %v3525, 4
    %v4270 = vsel %vm1320, %v4267, %v4269
    %v4271 = vrot.slane %v3526, 4
    %v4272 = vsel %vm1320, %v4269, %v4271
    %v4273 = vrot.slane %v3527, 4
    %v4274 = vsel %vm1320, %v4271, %v4273
    %v4275 = vrot.slane %v3528, 4
    %v4276 = vsel %vm1320, %v4273, %v4275
    %v4277 = vrot.slane %v3529, 4
    %v4278 = vsel %vm1320, %v4275, %v4277
    %v4279 = vrot.slane %v3530, 4
    %v4280 = vsel %vm1320, %v4277, %v4279
    %v4281 = vrot.slane %v3531, 4
    %v4282 = vsel %vm1320, %v4279, %v4281
    %v4283 = vrot.slane %v3532, 4
    %v4284 = vsel %vm1320, %v4281, %v4283
    %v4285 = vrot.slane %v3533, 4
    %v4286 = vsel %vm1320, %v4283, %v4285
    %v4287 = vrot.slane %v3534, 4
    %v4288 = vsel %vm1320, %v4285, %v4287
    %v4289 = vrot.slane %v3535, 4
    %v4290 = vsel %vm1320, %v4287, %v4289
    %4314 = vmatpush.msra.mxu0 %v4243
    %4315 = vmatpush.msra.mxu0 %v4242
    %4316 = vmatpush.msra.mxu0 %v4241
    %4317 = vmatpush.msra.mxu0 %v4240
    %4318 = vmatpush.msra.mxu0 %v4239
    %4319 = vmatpush.msra.mxu0 %v4238
    %4320 = vmatpush.msra.mxu0 %v4237
    %4321 = vmatpush.msra.mxu0 %v4236
    %4322 = vmatpush.msra.mxu0 %v4235
    %4323 = vmatpush.msra.mxu0 %v4234
    %4324 = vmatpush.msra.mxu0 %v4233
    %4325 = vmatpush.msra.mxu0 %v4232
    %4326 = vmatpush.msra.mxu0 %v4231
    %4327 = vmatpush.msra.mxu0 %v4230
    %4328 = vmatpush.msra.mxu0 %v4229
    %4329 = vmatpush.msra.mxu0 %v4228
    %4330 = vmatmul.f32.gmra.mxu0 %v4246
    %v4331 = vpop.f32.mrf.mxu0
    %v4332 = vadd.f32 0.0, %v4331
    %4333 = vmatmul.f32.gmra.mxu0 %v4248
    %v4334 = vpop.f32.mrf.mxu0
    %v4335 = vadd.f32 0.0, %v4334
    %4336 = vmatmul.f32.gmra.mxu0 %v4250
    %v4337 = vpop.f32.mrf.mxu0
    %v4338 = vadd.f32 0.0, %v4337
    %4339 = vmatmul.f32.gmra.mxu0 %v4252
    %v4340 = vpop.f32.mrf.mxu0
    %v4341 = vadd.f32 0.0, %v4340
    %4342 = vmatmul.f32.gmra.mxu0 %v4254
    %v4343 = vpop.f32.mrf.mxu0
    %v4344 = vadd.f32 0.0, %v4343
    %4345 = vmatmul.f32.gmra.mxu0 %v4256
    %v4346 = vpop.f32.mrf.mxu0
    %v4347 = vadd.f32 0.0, %v4346
    %4348 = vmatmul.f32.gmra.mxu0 %v4258
    %v4349 = vpop.f32.mrf.mxu0
    %v4350 = vadd.f32 0.0, %v4349
    %4351 = vmatmul.f32.gmra.mxu0 %v4260
    %v4352 = vpop.f32.mrf.mxu0
    %v4353 = vadd.f32 0.0, %v4352
    %4354 = vmatmul.f32.gmra.mxu0 %v4262
    %v4355 = vpop.f32.mrf.mxu0
    %v4356 = vadd.f32 0.0, %v4355
    %4357 = vmatmul.f32.gmra.mxu0 %v4264
    %v4358 = vpop.f32.mrf.mxu0
    %v4359 = vadd.f32 0.0, %v4358
    %4360 = vmatmul.f32.gmra.mxu0 %v4266
    %v4361 = vpop.f32.mrf.mxu0
    %v4362 = vadd.f32 0.0, %v4361
    %4363 = vmatmul.f32.gmra.mxu0 %v4268
    %v4364 = vpop.f32.mrf.mxu0
    %v4365 = vadd.f32 0.0, %v4364
    %4366 = vmatmul.f32.gmra.mxu0 %v4270
    %v4367 = vpop.f32.mrf.mxu0
    %v4368 = vadd.f32 0.0, %v4367
    %4369 = vmatmul.f32.gmra.mxu0 %v4272
    %v4370 = vpop.f32.mrf.mxu0
    %v4371 = vadd.f32 0.0, %v4370
    %4372 = vmatmul.f32.gmra.mxu0 %v4274
    %v4373 = vpop.f32.mrf.mxu0
    %v4374 = vadd.f32 0.0, %v4373
    %4375 = vmatmul.f32.gmra.mxu0 %v4276
    %v4376 = vpop.f32.mrf.mxu0
    %v4377 = vadd.f32 0.0, %v4376
    %4378 = vmatmul.f32.gmra.mxu0 %v4278
    %v4379 = vpop.f32.mrf.mxu0
    %v4380 = vadd.f32 0.0, %v4379
    %4381 = vmatmul.f32.gmra.mxu0 %v4280
    %v4382 = vpop.f32.mrf.mxu0
    %v4383 = vadd.f32 0.0, %v4382
    %4384 = vmatmul.f32.gmra.mxu0 %v4282
    %v4385 = vpop.f32.mrf.mxu0
    %v4386 = vadd.f32 0.0, %v4385
    %4387 = vmatmul.f32.gmra.mxu0 %v4284
    %v4388 = vpop.f32.mrf.mxu0
    %v4389 = vadd.f32 0.0, %v4388
    %4390 = vmatmul.f32.gmra.mxu0 %v4286
    %v4391 = vpop.f32.mrf.mxu0
    %v4392 = vadd.f32 0.0, %v4391
    %4393 = vmatmul.f32.gmra.mxu0 %v4288
    %v4394 = vpop.f32.mrf.mxu0
    %v4395 = vadd.f32 0.0, %v4394
    %4396 = vmatmul.f32.gmra.mxu0 %v4290
    %v4397 = vpop.f32.mrf.mxu0
    %v4398 = vadd.f32 0.0, %v4397
    %4399 = vdwg.mxu0
    %v4400 = vadd.f32 %v4204, %v4332
    %v4401 = vadd.f32 %v4205, %v4335
    %v4402 = vadd.f32 %v4206, %v4338
    %v4403 = vadd.f32 %v4207, %v4341
    %v4404 = vadd.f32 %v4208, %v4344
    %v4405 = vadd.f32 %v4209, %v4347
    %v4406 = vadd.f32 %v4210, %v4350
    %v4407 = vadd.f32 %v4211, %v4353
    %v4408 = vadd.f32 %v4212, %v4356
    %v4409 = vadd.f32 %v4213, %v4359
    %v4410 = vadd.f32 %v4214, %v4362
    %v4411 = vadd.f32 %v4215, %v4365
    %v4412 = vadd.f32 %v4216, %v4368
    %v4413 = vadd.f32 %v4217, %v4371
    %v4414 = vadd.f32 %v4218, %v4374
    %v4415 = vadd.f32 %v4219, %v4377
    %v4416 = vadd.f32 %v4220, %v4380
    %v4417 = vadd.f32 %v4221, %v4383
    %v4418 = vadd.f32 %v4222, %v4386
    %v4419 = vadd.f32 %v4223, %v4389
    %v4420 = vadd.f32 %v4224, %v4392
    %v4421 = vadd.f32 %v4225, %v4395
    %v4422 = vadd.f32 %v4226, %v4398
    %v4423 = vld [vmem:[%s5] sm:$0x1]
    %v4425 = vperm.slane %v4423, 0
    %v4427 = vadd.f32 %v4400, %v4425
    %v4428 = vadd.f32 %v4401, %v4425
    %v4429 = vadd.f32 %v4402, %v4425
    %v4430 = vadd.f32 %v4403, %v4425
    %v4431 = vadd.f32 %v4404, %v4425
    %v4432 = vadd.f32 %v4405, %v4425
    %v4433 = vadd.f32 %v4406, %v4425
    %v4434 = vadd.f32 %v4407, %v4425
    %v4435 = vadd.f32 %v4408, %v4425
    %v4436 = vadd.f32 %v4409, %v4425
    %v4437 = vadd.f32 %v4410, %v4425
    %v4438 = vadd.f32 %v4411, %v4425
    %v4439 = vadd.f32 %v4412, %v4425
    %v4440 = vadd.f32 %v4413, %v4425
    %v4441 = vadd.f32 %v4414, %v4425
    %v4442 = vadd.f32 %v4415, %v4425
    %v4443 = vadd.f32 %v4416, %v4425
    %v4444 = vadd.f32 %v4417, %v4425
    %v4445 = vadd.f32 %v4418, %v4425
    %v4446 = vadd.f32 %v4419, %v4425
    %v4447 = vadd.f32 %v4420, %v4425
    %v4448 = vadd.f32 %v4421, %v4425
    %v4449 = vadd.f32 %v4422, %v4425
    %v4450 = vmax.f32 %v4427, 0.0
    %v4451 = vmax.f32 %v4428, 0.0
    %v4452 = vmax.f32 %v4429, 0.0
    %v4453 = vmax.f32 %v4430, 0.0
    %v4454 = vmax.f32 %v4431, 0.0
    %v4455 = vmax.f32 %v4432, 0.0
    %v4456 = vmax.f32 %v4433, 0.0
    %v4457 = vmax.f32 %v4434, 0.0
    %v4458 = vmax.f32 %v4435, 0.0
    %v4459 = vmax.f32 %v4436, 0.0
    %v4460 = vmax.f32 %v4437, 0.0
    %v4461 = vmax.f32 %v4438, 0.0
    %v4462 = vmax.f32 %v4439, 0.0
    %v4463 = vmax.f32 %v4440, 0.0
    %v4464 = vmax.f32 %v4441, 0.0
    %v4465 = vmax.f32 %v4442, 0.0
    %v4466 = vmax.f32 %v4443, 0.0
    %v4467 = vmax.f32 %v4444, 0.0
    %v4468 = vmax.f32 %v4445, 0.0
    %v4469 = vmax.f32 %v4446, 0.0
    %v4470 = vmax.f32 %v4447, 0.0
    %v4471 = vmax.f32 %v4448, 0.0
    %v4472 = vmax.f32 %v4449, 0.0
    %s4473 = scalar_lea.vmem [#allocation10], 640
    %v4474 = vld [vmem:[%s4473] sm:$0xff]
    %v4475 = vld [vmem:[%s4473 + $0x8] sm:$0xff]
    %v4476 = vld [vmem:[%s4473 + $0x10] sm:$0xff]
    %v4477 = vld [vmem:[%s4473 + $0x18] sm:$0xff]
    %v4478 = vld [vmem:[%s4473 + $0x20] sm:$0xff]
    %v4479 = vld [vmem:[%s4473 + $0x28] sm:$0xff]
    %v4480 = vld [vmem:[%s4473 + $0x30] sm:$0xff]
    %v4481 = vld [vmem:[%s4473 + $0x38] sm:$0xff]
    %v4482 = vld [vmem:[%s4473 + $0x40] sm:$0xff]
    %v4483 = vld [vmem:[%s4473 + $0x48] sm:$0xff]
    %v4484 = vld [vmem:[%s4473 + $0x50] sm:$0xff]
    %v4485 = vld [vmem:[%s4473 + $0x58] sm:$0xff]
    %v4486 = vld [vmem:[%s4473 + $0x60] sm:$0xff]
    %v4487 = vld [vmem:[%s4473 + $0x68] sm:$0xff]
    %v4488 = vld [vmem:[%s4473 + $0x70] sm:$0xff]
    %v4489 = vld [vmem:[%s4473 + $0x78] sm:$0xff]
    %s4490 = scalar_lea.vmem [#allocation10], 768
    %v4491 = vld [vmem:[%s4490] sm:$0xff]
    %v4492 = vld [vmem:[%s4490 + $0x8] sm:$0xff]
    %v4493 = vld [vmem:[%s4490 + $0x10] sm:$0xff]
    %v4494 = vld [vmem:[%s4490 + $0x18] sm:$0xff]
    %v4495 = vld [vmem:[%s4490 + $0x20] sm:$0xff]
    %v4496 = vld [vmem:[%s4490 + $0x28] sm:$0xff]
    %v4497 = vld [vmem:[%s4490 + $0x30] sm:$0xff]
    %v4498 = vld [vmem:[%s4490 + $0x38] sm:$0xff]
    %v4499 = vld [vmem:[%s4490 + $0x40] sm:$0xff]
    %v4500 = vld [vmem:[%s4490 + $0x48] sm:$0xff]
    %v4501 = vld [vmem:[%s4490 + $0x50] sm:$0xff]
    %v4502 = vld [vmem:[%s4490 + $0x58] sm:$0xff]
    %v4503 = vld [vmem:[%s4490 + $0x60] sm:$0xff]
    %v4504 = vld [vmem:[%s4490 + $0x68] sm:$0xff]
    %v4505 = vld [vmem:[%s4490 + $0x70] sm:$0xff]
    %v4506 = vld [vmem:[%s4490 + $0x78] sm:$0xff]
    %4507 = vmatpush.msra.mxu0 %v4506
    %4508 = vmatpush.msra.mxu0 %v4505
    %4509 = vmatpush.msra.mxu0 %v4504
    %4510 = vmatpush.msra.mxu0 %v4503
    %4511 = vmatpush.msra.mxu0 %v4502
    %4512 = vmatpush.msra.mxu0 %v4501
    %4513 = vmatpush.msra.mxu0 %v4500
    %4514 = vmatpush.msra.mxu0 %v4499
    %4515 = vmatpush.msra.mxu0 %v4498
    %4516 = vmatpush.msra.mxu0 %v4497
    %4517 = vmatpush.msra.mxu0 %v4496
    %4518 = vmatpush.msra.mxu0 %v4495
    %4519 = vmatpush.msra.mxu0 %v4494
    %4520 = vmatpush.msra.mxu0 %v4493
    %4521 = vmatpush.msra.mxu0 %v4492
    %4522 = vmatpush.msra.mxu0 %v4491
    %4523 = vmatmul.f32.gmra.mxu0 %v3595
    %v4524 = vpop.f32.mrf.mxu0
    %v4525 = vadd.f32 0.0, %v4524
    %4526 = vmatmul.f32.gmra.mxu0 %v3597
    %v4527 = vpop.f32.mrf.mxu0
    %v4528 = vadd.f32 0.0, %v4527
    %4529 = vmatmul.f32.gmra.mxu0 %v3599
    %v4530 = vpop.f32.mrf.mxu0
    %v4531 = vadd.f32 0.0, %v4530
    %4532 = vmatmul.f32.gmra.mxu0 %v3601
    %v4533 = vpop.f32.mrf.mxu0
    %v4534 = vadd.f32 0.0, %v4533
    %4535 = vmatmul.f32.gmra.mxu0 %v3603
    %v4536 = vpop.f32.mrf.mxu0
    %v4537 = vadd.f32 0.0, %v4536
    %4538 = vmatmul.f32.gmra.mxu0 %v3605
    %v4539 = vpop.f32.mrf.mxu0
    %v4540 = vadd.f32 0.0, %v4539
    %4541 = vmatmul.f32.gmra.mxu0 %v3607
    %v4542 = vpop.f32.mrf.mxu0
    %v4543 = vadd.f32 0.0, %v4542
    %4544 = vmatmul.f32.gmra.mxu0 %v3609
    %v4545 = vpop.f32.mrf.mxu0
    %v4546 = vadd.f32 0.0, %v4545
    %4547 = vmatmul.f32.gmra.mxu0 %v3611
    %v4548 = vpop.f32.mrf.mxu0
    %v4549 = vadd.f32 0.0, %v4548
    %4550 = vmatmul.f32.gmra.mxu0 %v3613
    %v4551 = vpop.f32.mrf.mxu0
    %v4552 = vadd.f32 0.0, %v4551
    %4553 = vmatmul.f32.gmra.mxu0 %v3615
    %v4554 = vpop.f32.mrf.mxu0
    %v4555 = vadd.f32 0.0, %v4554
    %4556 = vmatmul.f32.gmra.mxu0 %v3617
    %v4557 = vpop.f32.mrf.mxu0
    %v4558 = vadd.f32 0.0, %v4557
    %4559 = vmatmul.f32.gmra.mxu0 %v3619
    %v4560 = vpop.f32.mrf.mxu0
    %v4561 = vadd.f32 0.0, %v4560
    %4562 = vmatmul.f32.gmra.mxu0 %v3621
    %v4563 = vpop.f32.mrf.mxu0
    %v4564 = vadd.f32 0.0, %v4563
    %4565 = vmatmul.f32.gmra.mxu0 %v3623
    %v4566 = vpop.f32.mrf.mxu0
    %v4567 = vadd.f32 0.0, %v4566
    %4568 = vmatmul.f32.gmra.mxu0 %v3625
    %v4569 = vpop.f32.mrf.mxu0
    %v4570 = vadd.f32 0.0, %v4569
    %4571 = vmatmul.f32.gmra.mxu0 %v3627
    %v4572 = vpop.f32.mrf.mxu0
    %v4573 = vadd.f32 0.0, %v4572
    %4574 = vmatmul.f32.gmra.mxu0 %v3629
    %v4575 = vpop.f32.mrf.mxu0
    %v4576 = vadd.f32 0.0, %v4575
    %4577 = vmatmul.f32.gmra.mxu0 %v3631
    %v4578 = vpop.f32.mrf.mxu0
    %v4579 = vadd.f32 0.0, %v4578
    %4580 = vmatmul.f32.gmra.mxu0 %v3633
    %v4581 = vpop.f32.mrf.mxu0
    %v4582 = vadd.f32 0.0, %v4581
    %4583 = vmatmul.f32.gmra.mxu0 %v3635
    %v4584 = vpop.f32.mrf.mxu0
    %v4585 = vadd.f32 0.0, %v4584
    %4586 = vmatmul.f32.gmra.mxu0 %v3637
    %v4587 = vpop.f32.mrf.mxu0
    %v4588 = vadd.f32 0.0, %v4587
    %4589 = vmatmul.f32.gmra.mxu0 %v3639
    %v4590 = vpop.f32.mrf.mxu0
    %v4591 = vadd.f32 0.0, %v4590
    %4592 = vdwg.mxu0
    %4593 = vmatpush.msra.mxu0 %v4489
    %4594 = vmatpush.msra.mxu0 %v4488
    %4595 = vmatpush.msra.mxu0 %v4487
    %4596 = vmatpush.msra.mxu0 %v4486
    %4597 = vmatpush.msra.mxu0 %v4485
    %4598 = vmatpush.msra.mxu0 %v4484
    %4599 = vmatpush.msra.mxu0 %v4483
    %4600 = vmatpush.msra.mxu0 %v4482
    %4601 = vmatpush.msra.mxu0 %v4481
    %4602 = vmatpush.msra.mxu0 %v4480
    %4603 = vmatpush.msra.mxu0 %v4479
    %4604 = vmatpush.msra.mxu0 %v4478
    %4605 = vmatpush.msra.mxu0 %v4477
    %4606 = vmatpush.msra.mxu0 %v4476
    %4607 = vmatpush.msra.mxu0 %v4475
    %4608 = vmatpush.msra.mxu0 %v4474
    %4609 = vmatmul.f32.gmra.mxu0 %v3512
    %v4610 = vpop.f32.mrf.mxu0
    %v4611 = vadd.f32 %v4525, %v4610
    %4612 = vmatmul.f32.gmra.mxu0 %v3513
    %v4613 = vpop.f32.mrf.mxu0
    %v4614 = vadd.f32 %v4528, %v4613
    %4615 = vmatmul.f32.gmra.mxu0 %v3514
    %v4616 = vpop.f32.mrf.mxu0
    %v4617 = vadd.f32 %v4531, %v4616
    %4618 = vmatmul.f32.gmra.mxu0 %v3515
    %v4619 = vpop.f32.mrf.mxu0
    %v4620 = vadd.f32 %v4534, %v4619
    %4621 = vmatmul.f32.gmra.mxu0 %v3516
    %v4622 = vpop.f32.mrf.mxu0
    %v4623 = vadd.f32 %v4537, %v4622
    %4624 = vmatmul.f32.gmra.mxu0 %v3517
    %v4625 = vpop.f32.mrf.mxu0
    %v4626 = vadd.f32 %v4540, %v4625
    %4627 = vmatmul.f32.gmra.mxu0 %v3518
    %v4628 = vpop.f32.mrf.mxu0
    %v4629 = vadd.f32 %v4543, %v4628
    %4630 = vmatmul.f32.gmra.mxu0 %v3519
    %v4631 = vpop.f32.mrf.mxu0
    %v4632 = vadd.f32 %v4546, %v4631
    %4633 = vmatmul.f32.gmra.mxu0 %v3520
    %v4634 = vpop.f32.mrf.mxu0
    %v4635 = vadd.f32 %v4549, %v4634
    %4636 = vmatmul.f32.gmra.mxu0 %v3521
    %v4637 = vpop.f32.mrf.mxu0
    %v4638 = vadd.f32 %v4552, %v4637
    %4639 = vmatmul.f32.gmra.mxu0 %v3522
    %v4640 = vpop.f32.mrf.mxu0
    %v4641 = vadd.f32 %v4555, %v4640
    %4642 = vmatmul.f32.gmra.mxu0 %v3523
    %v4643 = vpop.f32.mrf.mxu0
    %v4644 = vadd.f32 %v4558, %v4643
    %4645 = vmatmul.f32.gmra.mxu0 %v3524
    %v4646 = vpop.f32.mrf.mxu0
    %v4647 = vadd.f32 %v4561, %v4646
    %4648 = vmatmul.f32.gmra.mxu0 %v3525
    %v4649 = vpop.f32.mrf.mxu0
    %v4650 = vadd.f32 %v4564, %v4649
    %4651 = vmatmul.f32.gmra.mxu0 %v3526
    %v4652 = vpop.f32.mrf.mxu0
    %v4653 = vadd.f32 %v4567, %v4652
    %4654 = vmatmul.f32.gmra.mxu0 %v3527
    %v4655 = vpop.f32.mrf.mxu0
    %v4656 = vadd.f32 %v4570, %v4655
    %4657 = vmatmul.f32.gmra.mxu0 %v3528
    %v4658 = vpop.f32.mrf.mxu0
    %v4659 = vadd.f32 %v4573, %v4658
    %4660 = vmatmul.f32.gmra.mxu0 %v3529
    %v4661 = vpop.f32.mrf.mxu0
    %v4662 = vadd.f32 %v4576, %v4661
    %4663 = vmatmul.f32.gmra.mxu0 %v3530
    %v4664 = vpop.f32.mrf.mxu0
    %v4665 = vadd.f32 %v4579, %v4664
    %4666 = vmatmul.f32.gmra.mxu0 %v3531
    %v4667 = vpop.f32.mrf.mxu0
    %v4668 = vadd.f32 %v4582, %v4667
    %4669 = vmatmul.f32.gmra.mxu0 %v3532
    %v4670 = vpop.f32.mrf.mxu0
    %v4671 = vadd.f32 %v4585, %v4670
    %4672 = vmatmul.f32.gmra.mxu0 %v3533
    %v4673 = vpop.f32.mrf.mxu0
    %v4674 = vadd.f32 %v4588, %v4673
    %4675 = vmatmul.f32.gmra.mxu0 %v3534
    %v4676 = vpop.f32.mrf.mxu0
    %v4677 = vadd.f32 %v4591, %v4676
    %4678 = vdwg.mxu0
    %s4679 = scalar_lea.vmem [#allocation10], 896
    %v4680 = vld [vmem:[%s4679] sm:$0xff]
    %v4681 = vld [vmem:[%s4679 + $0x8] sm:$0xff]
    %v4682 = vld [vmem:[%s4679 + $0x10] sm:$0xff]
    %v4683 = vld [vmem:[%s4679 + $0x18] sm:$0xff]
    %v4684 = vld [vmem:[%s4679 + $0x20] sm:$0xff]
    %v4685 = vld [vmem:[%s4679 + $0x28] sm:$0xff]
    %v4686 = vld [vmem:[%s4679 + $0x30] sm:$0xff]
    %v4687 = vld [vmem:[%s4679 + $0x38] sm:$0xff]
    %v4688 = vld [vmem:[%s4679 + $0x40] sm:$0xff]
    %v4689 = vld [vmem:[%s4679 + $0x48] sm:$0xff]
    %v4690 = vld [vmem:[%s4679 + $0x50] sm:$0xff]
    %v4691 = vld [vmem:[%s4679 + $0x58] sm:$0xff]
    %v4692 = vld [vmem:[%s4679 + $0x60] sm:$0xff]
    %v4693 = vld [vmem:[%s4679 + $0x68] sm:$0xff]
    %v4694 = vld [vmem:[%s4679 + $0x70] sm:$0xff]
    %v4695 = vld [vmem:[%s4679 + $0x78] sm:$0xff]
    %4696 = vmatpush.msra.mxu0 %v4695
    %4697 = vmatpush.msra.mxu0 %v4694
    %4698 = vmatpush.msra.mxu0 %v4693
    %4699 = vmatpush.msra.mxu0 %v4692
    %4700 = vmatpush.msra.mxu0 %v4691
    %4701 = vmatpush.msra.mxu0 %v4690
    %4702 = vmatpush.msra.mxu0 %v4689
    %4703 = vmatpush.msra.mxu0 %v4688
    %4704 = vmatpush.msra.mxu0 %v4687
    %4705 = vmatpush.msra.mxu0 %v4686
    %4706 = vmatpush.msra.mxu0 %v4685
    %4707 = vmatpush.msra.mxu0 %v4684
    %4708 = vmatpush.msra.mxu0 %v4683
    %4709 = vmatpush.msra.mxu0 %v4682
    %4710 = vmatpush.msra.mxu0 %v4681
    %4711 = vmatpush.msra.mxu0 %v4680
    %4712 = vmatmul.f32.gmra.mxu0 %v3854
    %v4713 = vpop.f32.mrf.mxu0
    %v4714 = vadd.f32 0.0, %v4713
    %4715 = vmatmul.f32.gmra.mxu0 %v3856
    %v4716 = vpop.f32.mrf.mxu0
    %v4717 = vadd.f32 0.0, %v4716
    %4718 = vmatmul.f32.gmra.mxu0 %v3858
    %v4719 = vpop.f32.mrf.mxu0
    %v4720 = vadd.f32 0.0, %v4719
    %4721 = vmatmul.f32.gmra.mxu0 %v3860
    %v4722 = vpop.f32.mrf.mxu0
    %v4723 = vadd.f32 0.0, %v4722
    %4724 = vmatmul.f32.gmra.mxu0 %v3862
    %v4725 = vpop.f32.mrf.mxu0
    %v4726 = vadd.f32 0.0, %v4725
    %4727 = vmatmul.f32.gmra.mxu0 %v3864
    %v4728 = vpop.f32.mrf.mxu0
    %v4729 = vadd.f32 0.0, %v4728
    %4730 = vmatmul.f32.gmra.mxu0 %v3866
    %v4731 = vpop.f32.mrf.mxu0
    %v4732 = vadd.f32 0.0, %v4731
    %4733 = vmatmul.f32.gmra.mxu0 %v3868
    %v4734 = vpop.f32.mrf.mxu0
    %v4735 = vadd.f32 0.0, %v4734
    %4736 = vmatmul.f32.gmra.mxu0 %v3870
    %v4737 = vpop.f32.mrf.mxu0
    %v4738 = vadd.f32 0.0, %v4737
    %4739 = vmatmul.f32.gmra.mxu0 %v3872
    %v4740 = vpop.f32.mrf.mxu0
    %v4741 = vadd.f32 0.0, %v4740
    %4742 = vmatmul.f32.gmra.mxu0 %v3874
    %v4743 = vpop.f32.mrf.mxu0
    %v4744 = vadd.f32 0.0, %v4743
    %4745 = vmatmul.f32.gmra.mxu0 %v3876
    %v4746 = vpop.f32.mrf.mxu0
    %v4747 = vadd.f32 0.0, %v4746
    %4748 = vmatmul.f32.gmra.mxu0 %v3878
    %v4749 = vpop.f32.mrf.mxu0
    %v4750 = vadd.f32 0.0, %v4749
    %4751 = vmatmul.f32.gmra.mxu0 %v3880
    %v4752 = vpop.f32.mrf.mxu0
    %v4753 = vadd.f32 0.0, %v4752
    %4754 = vmatmul.f32.gmra.mxu0 %v3882
    %v4755 = vpop.f32.mrf.mxu0
    %v4756 = vadd.f32 0.0, %v4755
    %4757 = vmatmul.f32.gmra.mxu0 %v3884
    %v4758 = vpop.f32.mrf.mxu0
    %v4759 = vadd.f32 0.0, %v4758
    %4760 = vmatmul.f32.gmra.mxu0 %v3886
    %v4761 = vpop.f32.mrf.mxu0
    %v4762 = vadd.f32 0.0, %v4761
    %4763 = vmatmul.f32.gmra.mxu0 %v3888
    %v4764 = vpop.f32.mrf.mxu0
    %v4765 = vadd.f32 0.0, %v4764
    %4766 = vmatmul.f32.gmra.mxu0 %v3890
    %v4767 = vpop.f32.mrf.mxu0
    %v4768 = vadd.f32 0.0, %v4767
    %4769 = vmatmul.f32.gmra.mxu0 %v3892
    %v4770 = vpop.f32.mrf.mxu0
    %v4771 = vadd.f32 0.0, %v4770
    %4772 = vmatmul.f32.gmra.mxu0 %v3894
    %v4773 = vpop.f32.mrf.mxu0
    %v4774 = vadd.f32 0.0, %v4773
    %4775 = vmatmul.f32.gmra.mxu0 %v3896
    %v4776 = vpop.f32.mrf.mxu0
    %v4777 = vadd.f32 0.0, %v4776
    %4778 = vmatmul.f32.gmra.mxu0 %v3898
    %v4779 = vpop.f32.mrf.mxu0
    %v4780 = vadd.f32 0.0, %v4779
    %4781 = vdwg.mxu0
    %v4782 = vadd.f32 %v4611, %v4714
    %v4783 = vadd.f32 %v4614, %v4717
    %v4784 = vadd.f32 %v4617, %v4720
    %v4785 = vadd.f32 %v4620, %v4723
    %v4786 = vadd.f32 %v4623, %v4726
    %v4787 = vadd.f32 %v4626, %v4729
    %v4788 = vadd.f32 %v4629, %v4732
    %v4789 = vadd.f32 %v4632, %v4735
    %v4790 = vadd.f32 %v4635, %v4738
    %v4791 = vadd.f32 %v4638, %v4741
    %v4792 = vadd.f32 %v4641, %v4744
    %v4793 = vadd.f32 %v4644, %v4747
    %v4794 = vadd.f32 %v4647, %v4750
    %v4795 = vadd.f32 %v4650, %v4753
    %v4796 = vadd.f32 %v4653, %v4756
    %v4797 = vadd.f32 %v4656, %v4759
    %v4798 = vadd.f32 %v4659, %v4762
    %v4799 = vadd.f32 %v4662, %v4765
    %v4800 = vadd.f32 %v4665, %v4768
    %v4801 = vadd.f32 %v4668, %v4771
    %v4802 = vadd.f32 %v4671, %v4774
    %v4803 = vadd.f32 %v4674, %v4777
    %v4804 = vadd.f32 %v4677, %v4780
    %s4805 = scalar_lea.vmem [#allocation10], 1024
    %v4806 = vld [vmem:[%s4805] sm:$0xff]
    %v4807 = vld [vmem:[%s4805 + $0x8] sm:$0xff]
    %v4808 = vld [vmem:[%s4805 + $0x10] sm:$0xff]
    %v4809 = vld [vmem:[%s4805 + $0x18] sm:$0xff]
    %v4810 = vld [vmem:[%s4805 + $0x20] sm:$0xff]
    %v4811 = vld [vmem:[%s4805 + $0x28] sm:$0xff]
    %v4812 = vld [vmem:[%s4805 + $0x30] sm:$0xff]
    %v4813 = vld [vmem:[%s4805 + $0x38] sm:$0xff]
    %v4814 = vld [vmem:[%s4805 + $0x40] sm:$0xff]
    %v4815 = vld [vmem:[%s4805 + $0x48] sm:$0xff]
    %v4816 = vld [vmem:[%s4805 + $0x50] sm:$0xff]
    %v4817 = vld [vmem:[%s4805 + $0x58] sm:$0xff]
    %v4818 = vld [vmem:[%s4805 + $0x60] sm:$0xff]
    %v4819 = vld [vmem:[%s4805 + $0x68] sm:$0xff]
    %v4820 = vld [vmem:[%s4805 + $0x70] sm:$0xff]
    %v4821 = vld [vmem:[%s4805 + $0x78] sm:$0xff]
    %4822 = vmatpush.msra.mxu0 %v4821
    %4823 = vmatpush.msra.mxu0 %v4820
    %4824 = vmatpush.msra.mxu0 %v4819
    %4825 = vmatpush.msra.mxu0 %v4818
    %4826 = vmatpush.msra.mxu0 %v4817
    %4827 = vmatpush.msra.mxu0 %v4816
    %4828 = vmatpush.msra.mxu0 %v4815
    %4829 = vmatpush.msra.mxu0 %v4814
    %4830 = vmatpush.msra.mxu0 %v4813
    %4831 = vmatpush.msra.mxu0 %v4812
    %4832 = vmatpush.msra.mxu0 %v4811
    %4833 = vmatpush.msra.mxu0 %v4810
    %4834 = vmatpush.msra.mxu0 %v4809
    %4835 = vmatpush.msra.mxu0 %v4808
    %4836 = vmatpush.msra.mxu0 %v4807
    %4837 = vmatpush.msra.mxu0 %v4806
    %4838 = vmatmul.f32.gmra.mxu0 %v4050
    %v4839 = vpop.f32.mrf.mxu0
    %v4840 = vadd.f32 0.0, %v4839
    %4841 = vmatmul.f32.gmra.mxu0 %v4052
    %v4842 = vpop.f32.mrf.mxu0
    %v4843 = vadd.f32 0.0, %v4842
    %4844 = vmatmul.f32.gmra.mxu0 %v4054
    %v4845 = vpop.f32.mrf.mxu0
    %v4846 = vadd.f32 0.0, %v4845
    %4847 = vmatmul.f32.gmra.mxu0 %v4056
    %v4848 = vpop.f32.mrf.mxu0
    %v4849 = vadd.f32 0.0, %v4848
    %4850 = vmatmul.f32.gmra.mxu0 %v4058
    %v4851 = vpop.f32.mrf.mxu0
    %v4852 = vadd.f32 0.0, %v4851
    %4853 = vmatmul.f32.gmra.mxu0 %v4060
    %v4854 = vpop.f32.mrf.mxu0
    %v4855 = vadd.f32 0.0, %v4854
    %4856 = vmatmul.f32.gmra.mxu0 %v4062
    %v4857 = vpop.f32.mrf.mxu0
    %v4858 = vadd.f32 0.0, %v4857
    %4859 = vmatmul.f32.gmra.mxu0 %v4064
    %v4860 = vpop.f32.mrf.mxu0
    %v4861 = vadd.f32 0.0, %v4860
    %4862 = vmatmul.f32.gmra.mxu0 %v4066
    %v4863 = vpop.f32.mrf.mxu0
    %v4864 = vadd.f32 0.0, %v4863
    %4865 = vmatmul.f32.gmra.mxu0 %v4068
    %v4866 = vpop.f32.mrf.mxu0
    %v4867 = vadd.f32 0.0, %v4866
    %4868 = vmatmul.f32.gmra.mxu0 %v4070
    %v4869 = vpop.f32.mrf.mxu0
    %v4870 = vadd.f32 0.0, %v4869
    %4871 = vmatmul.f32.gmra.mxu0 %v4072
    %v4872 = vpop.f32.mrf.mxu0
    %v4873 = vadd.f32 0.0, %v4872
    %4874 = vmatmul.f32.gmra.mxu0 %v4074
    %v4875 = vpop.f32.mrf.mxu0
    %v4876 = vadd.f32 0.0, %v4875
    %4877 = vmatmul.f32.gmra.mxu0 %v4076
    %v4878 = vpop.f32.mrf.mxu0
    %v4879 = vadd.f32 0.0, %v4878
    %4880 = vmatmul.f32.gmra.mxu0 %v4078
    %v4881 = vpop.f32.mrf.mxu0
    %v4882 = vadd.f32 0.0, %v4881
    %4883 = vmatmul.f32.gmra.mxu0 %v4080
    %v4884 = vpop.f32.mrf.mxu0
    %v4885 = vadd.f32 0.0, %v4884
    %4886 = vmatmul.f32.gmra.mxu0 %v4082
    %v4887 = vpop.f32.mrf.mxu0
    %v4888 = vadd.f32 0.0, %v4887
    %4889 = vmatmul.f32.gmra.mxu0 %v4084
    %v4890 = vpop.f32.mrf.mxu0
    %v4891 = vadd.f32 0.0, %v4890
    %4892 = vmatmul.f32.gmra.mxu0 %v4086
    %v4893 = vpop.f32.mrf.mxu0
    %v4894 = vadd.f32 0.0, %v4893
    %4895 = vmatmul.f32.gmra.mxu0 %v4088
    %v4896 = vpop.f32.mrf.mxu0
    %v4897 = vadd.f32 0.0, %v4896
    %4898 = vmatmul.f32.gmra.mxu0 %v4090
    %v4899 = vpop.f32.mrf.mxu0
    %v4900 = vadd.f32 0.0, %v4899
    %4901 = vmatmul.f32.gmra.mxu0 %v4092
    %v4902 = vpop.f32.mrf.mxu0
    %v4903 = vadd.f32 0.0, %v4902
    %4904 = vmatmul.f32.gmra.mxu0 %v4094
    %v4905 = vpop.f32.mrf.mxu0
    %v4906 = vadd.f32 0.0, %v4905
    %4907 = vdwg.mxu0
    %v4908 = vadd.f32 %v4782, %v4840
    %v4909 = vadd.f32 %v4783, %v4843
    %v4910 = vadd.f32 %v4784, %v4846
    %v4911 = vadd.f32 %v4785, %v4849
    %v4912 = vadd.f32 %v4786, %v4852
    %v4913 = vadd.f32 %v4787, %v4855
    %v4914 = vadd.f32 %v4788, %v4858
    %v4915 = vadd.f32 %v4789, %v4861
    %v4916 = vadd.f32 %v4790, %v4864
    %v4917 = vadd.f32 %v4791, %v4867
    %v4918 = vadd.f32 %v4792, %v4870
    %v4919 = vadd.f32 %v4793, %v4873
    %v4920 = vadd.f32 %v4794, %v4876
    %v4921 = vadd.f32 %v4795, %v4879
    %v4922 = vadd.f32 %v4796, %v4882
    %v4923 = vadd.f32 %v4797, %v4885
    %v4924 = vadd.f32 %v4798, %v4888
    %v4925 = vadd.f32 %v4799, %v4891
    %v4926 = vadd.f32 %v4800, %v4894
    %v4927 = vadd.f32 %v4801, %v4897
    %v4928 = vadd.f32 %v4802, %v4900
    %v4929 = vadd.f32 %v4803, %v4903
    %v4930 = vadd.f32 %v4804, %v4906
    %s4931 = scalar_lea.vmem [#allocation10], 1152
    %v4932 = vld [vmem:[%s4931] sm:$0xff]
    %v4933 = vld [vmem:[%s4931 + $0x8] sm:$0xff]
    %v4934 = vld [vmem:[%s4931 + $0x10] sm:$0xff]
    %v4935 = vld [vmem:[%s4931 + $0x18] sm:$0xff]
    %v4936 = vld [vmem:[%s4931 + $0x20] sm:$0xff]
    %v4937 = vld [vmem:[%s4931 + $0x28] sm:$0xff]
    %v4938 = vld [vmem:[%s4931 + $0x30] sm:$0xff]
    %v4939 = vld [vmem:[%s4931 + $0x38] sm:$0xff]
    %v4940 = vld [vmem:[%s4931 + $0x40] sm:$0xff]
    %v4941 = vld [vmem:[%s4931 + $0x48] sm:$0xff]
    %v4942 = vld [vmem:[%s4931 + $0x50] sm:$0xff]
    %v4943 = vld [vmem:[%s4931 + $0x58] sm:$0xff]
    %v4944 = vld [vmem:[%s4931 + $0x60] sm:$0xff]
    %v4945 = vld [vmem:[%s4931 + $0x68] sm:$0xff]
    %v4946 = vld [vmem:[%s4931 + $0x70] sm:$0xff]
    %v4947 = vld [vmem:[%s4931 + $0x78] sm:$0xff]
    %4948 = vmatpush.msra.mxu0 %v4947
    %4949 = vmatpush.msra.mxu0 %v4946
    %4950 = vmatpush.msra.mxu0 %v4945
    %4951 = vmatpush.msra.mxu0 %v4944
    %4952 = vmatpush.msra.mxu0 %v4943
    %4953 = vmatpush.msra.mxu0 %v4942
    %4954 = vmatpush.msra.mxu0 %v4941
    %4955 = vmatpush.msra.mxu0 %v4940
    %4956 = vmatpush.msra.mxu0 %v4939
    %4957 = vmatpush.msra.mxu0 %v4938
    %4958 = vmatpush.msra.mxu0 %v4937
    %4959 = vmatpush.msra.mxu0 %v4936
    %4960 = vmatpush.msra.mxu0 %v4935
    %4961 = vmatpush.msra.mxu0 %v4934
    %4962 = vmatpush.msra.mxu0 %v4933
    %4963 = vmatpush.msra.mxu0 %v4932
    %4964 = vmatmul.f32.gmra.mxu0 %v4246
    %v4965 = vpop.f32.mrf.mxu0
    %v4966 = vadd.f32 0.0, %v4965
    %4967 = vmatmul.f32.gmra.mxu0 %v4248
    %v4968 = vpop.f32.mrf.mxu0
    %v4969 = vadd.f32 0.0, %v4968
    %4970 = vmatmul.f32.gmra.mxu0 %v4250
    %v4971 = vpop.f32.mrf.mxu0
    %v4972 = vadd.f32 0.0, %v4971
    %4973 = vmatmul.f32.gmra.mxu0 %v4252
    %v4974 = vpop.f32.mrf.mxu0
    %v4975 = vadd.f32 0.0, %v4974
    %4976 = vmatmul.f32.gmra.mxu0 %v4254
    %v4977 = vpop.f32.mrf.mxu0
    %v4978 = vadd.f32 0.0, %v4977
    %4979 = vmatmul.f32.gmra.mxu0 %v4256
    %v4980 = vpop.f32.mrf.mxu0
    %v4981 = vadd.f32 0.0, %v4980
    %4982 = vmatmul.f32.gmra.mxu0 %v4258
    %v4983 = vpop.f32.mrf.mxu0
    %v4984 = vadd.f32 0.0, %v4983
    %4985 = vmatmul.f32.gmra.mxu0 %v4260
    %v4986 = vpop.f32.mrf.mxu0
    %v4987 = vadd.f32 0.0, %v4986
    %4988 = vmatmul.f32.gmra.mxu0 %v4262
    %v4989 = vpop.f32.mrf.mxu0
    %v4990 = vadd.f32 0.0, %v4989
    %4991 = vmatmul.f32.gmra.mxu0 %v4264
    %v4992 = vpop.f32.mrf.mxu0
    %v4993 = vadd.f32 0.0, %v4992
    %4994 = vmatmul.f32.gmra.mxu0 %v4266
    %v4995 = vpop.f32.mrf.mxu0
    %v4996 = vadd.f32 0.0, %v4995
    %4997 = vmatmul.f32.gmra.mxu0 %v4268
    %v4998 = vpop.f32.mrf.mxu0
    %v4999 = vadd.f32 0.0, %v4998
    %5000 = vmatmul.f32.gmra.mxu0 %v4270
    %v5001 = vpop.f32.mrf.mxu0
    %v5002 = vadd.f32 0.0, %v5001
    %5003 = vmatmul.f32.gmra.mxu0 %v4272
    %v5004 = vpop.f32.mrf.mxu0
    %v5005 = vadd.f32 0.0, %v5004
    %5006 = vmatmul.f32.gmra.mxu0 %v4274
    %v5007 = vpop.f32.mrf.mxu0
    %v5008 = vadd.f32 0.0, %v5007
    %5009 = vmatmul.f32.gmra.mxu0 %v4276
    %v5010 = vpop.f32.mrf.mxu0
    %v5011 = vadd.f32 0.0, %v5010
    %5012 = vmatmul.f32.gmra.mxu0 %v4278
    %v5013 = vpop.f32.mrf.mxu0
    %v5014 = vadd.f32 0.0, %v5013
    %5015 = vmatmul.f32.gmra.mxu0 %v4280
    %v5016 = vpop.f32.mrf.mxu0
    %v5017 = vadd.f32 0.0, %v5016
    %5018 = vmatmul.f32.gmra.mxu0 %v4282
    %v5019 = vpop.f32.mrf.mxu0
    %v5020 = vadd.f32 0.0, %v5019
    %5021 = vmatmul.f32.gmra.mxu0 %v4284
    %v5022 = vpop.f32.mrf.mxu0
    %v5023 = vadd.f32 0.0, %v5022
    %5024 = vmatmul.f32.gmra.mxu0 %v4286
    %v5025 = vpop.f32.mrf.mxu0
    %v5026 = vadd.f32 0.0, %v5025
    %5027 = vmatmul.f32.gmra.mxu0 %v4288
    %v5028 = vpop.f32.mrf.mxu0
    %v5029 = vadd.f32 0.0, %v5028
    %5030 = vmatmul.f32.gmra.mxu0 %v4290
    %v5031 = vpop.f32.mrf.mxu0
    %v5032 = vadd.f32 0.0, %v5031
    %5033 = vdwg.mxu0
    %v5034 = vadd.f32 %v4908, %v4966
    %v5035 = vadd.f32 %v4909, %v4969
    %v5036 = vadd.f32 %v4910, %v4972
    %v5037 = vadd.f32 %v4911, %v4975
    %v5038 = vadd.f32 %v4912, %v4978
    %v5039 = vadd.f32 %v4913, %v4981
    %v5040 = vadd.f32 %v4914, %v4984
    %v5041 = vadd.f32 %v4915, %v4987
    %v5042 = vadd.f32 %v4916, %v4990
    %v5043 = vadd.f32 %v4917, %v4993
    %v5044 = vadd.f32 %v4918, %v4996
    %v5045 = vadd.f32 %v4919, %v4999
    %v5046 = vadd.f32 %v4920, %v5002
    %v5047 = vadd.f32 %v4921, %v5005
    %v5048 = vadd.f32 %v4922, %v5008
    %v5049 = vadd.f32 %v4923, %v5011
    %v5050 = vadd.f32 %v4924, %v5014
    %v5051 = vadd.f32 %v4925, %v5017
    %v5052 = vadd.f32 %v4926, %v5020
    %v5053 = vadd.f32 %v4927, %v5023
    %v5054 = vadd.f32 %v4928, %v5026
    %v5055 = vadd.f32 %v4929, %v5029
    %v5056 = vadd.f32 %v4930, %v5032
    %s5057 = scalar_lea.vmem %s5, 1
    %v5058 = vld [vmem:[%s5057] sm:$0x1]
    %v5060 = vperm.slane %v5058, 0
    %v5062 = vadd.f32 %v5034, %v5060
    %v5063 = vadd.f32 %v5035, %v5060
    %v5064 = vadd.f32 %v5036, %v5060
    %v5065 = vadd.f32 %v5037, %v5060
    %v5066 = vadd.f32 %v5038, %v5060
    %v5067 = vadd.f32 %v5039, %v5060
    %v5068 = vadd.f32 %v5040, %v5060
    %v5069 = vadd.f32 %v5041, %v5060
    %v5070 = vadd.f32 %v5042, %v5060
    %v5071 = vadd.f32 %v5043, %v5060
    %v5072 = vadd.f32 %v5044, %v5060
    %v5073 = vadd.f32 %v5045, %v5060
    %v5074 = vadd.f32 %v5046, %v5060
    %v5075 = vadd.f32 %v5047, %v5060
    %v5076 = vadd.f32 %v5048, %v5060
    %v5077 = vadd.f32 %v5049, %v5060
    %v5078 = vadd.f32 %v5050, %v5060
    %v5079 = vadd.f32 %v5051, %v5060
    %v5080 = vadd.f32 %v5052, %v5060
    %v5081 = vadd.f32 %v5053, %v5060
    %v5082 = vadd.f32 %v5054, %v5060
    %v5083 = vadd.f32 %v5055, %v5060
    %v5084 = vadd.f32 %v5056, %v5060
    %v5085 = vmax.f32 %v5062, 0.0
    %v5086 = vmax.f32 %v5063, 0.0
    %v5087 = vmax.f32 %v5064, 0.0
    %v5088 = vmax.f32 %v5065, 0.0
    %v5089 = vmax.f32 %v5066, 0.0
    %v5090 = vmax.f32 %v5067, 0.0
    %v5091 = vmax.f32 %v5068, 0.0
    %v5092 = vmax.f32 %v5069, 0.0
    %v5093 = vmax.f32 %v5070, 0.0
    %v5094 = vmax.f32 %v5071, 0.0
    %v5095 = vmax.f32 %v5072, 0.0
    %v5096 = vmax.f32 %v5073, 0.0
    %v5097 = vmax.f32 %v5074, 0.0
    %v5098 = vmax.f32 %v5075, 0.0
    %v5099 = vmax.f32 %v5076, 0.0
    %v5100 = vmax.f32 %v5077, 0.0
    %v5101 = vmax.f32 %v5078, 0.0
    %v5102 = vmax.f32 %v5079, 0.0
    %v5103 = vmax.f32 %v5080, 0.0
    %v5104 = vmax.f32 %v5081, 0.0
    %v5105 = vmax.f32 %v5082, 0.0
    %v5106 = vmax.f32 %v5083, 0.0
    %v5107 = vmax.f32 %v5084, 0.0
    %v5108 = vmax.f32 %v4450, %v5085
    %v5109 = vmax.f32 %v4451, %v5086
    %v5110 = vmax.f32 %v4452, %v5087
    %v5111 = vmax.f32 %v4453, %v5088
    %v5112 = vmax.f32 %v4454, %v5089
    %v5113 = vmax.f32 %v4455, %v5090
    %v5114 = vmax.f32 %v4456, %v5091
    %v5115 = vmax.f32 %v4457, %v5092
    %v5116 = vmax.f32 %v4458, %v5093
    %v5117 = vmax.f32 %v4459, %v5094
    %v5118 = vmax.f32 %v4460, %v5095
    %v5119 = vmax.f32 %v4461, %v5096
    %v5120 = vmax.f32 %v4462, %v5097
    %v5121 = vmax.f32 %v4463, %v5098
    %v5122 = vmax.f32 %v4464, %v5099
    %v5123 = vmax.f32 %v4465, %v5100
    %v5124 = vmax.f32 %v4466, %v5101
    %v5125 = vmax.f32 %v4467, %v5102
    %v5126 = vmax.f32 %v4468, %v5103
    %v5127 = vmax.f32 %v4469, %v5104
    %v5128 = vmax.f32 %v4470, %v5105
    %v5129 = vmax.f32 %v4471, %v5106
    %v5130 = vmax.f32 %v4472, %v5107
    %v5131 = vld [vmem:[#allocation11] sm:$0xff]
    %v5132 = vld [vmem:[#allocation11 + $0x8] sm:$0xff]
    %v5134 = vsel %vm2760, %v5132, 0
    %5136 = vmatpush.msra.mxu0 %v5123
    %5137 = vmatpush.msra.mxu0 %v5122
    %5138 = vmatpush.msra.mxu0 %v5121
    %5139 = vmatpush.msra.mxu0 %v5120
    %5140 = vmatpush.msra.mxu0 %v5119
    %5141 = vmatpush.msra.mxu0 %v5118
    %5142 = vmatpush.msra.mxu0 %v5117
    %5143 = vmatpush.msra.mxu0 %v5116
    %5144 = vmatpush.msra.mxu0 %v5115
    %5145 = vmatpush.msra.mxu0 %v5114
    %5146 = vmatpush.msra.mxu0 %v5113
    %5147 = vmatpush.msra.mxu0 %v5112
    %5148 = vmatpush.msra.mxu0 %v5111
    %5149 = vmatpush.msra.mxu0 %v5110
    %5150 = vmatpush.msra.mxu0 %v5109
    %5151 = vmatpush.msra.mxu0 %v5108
    %5152 = vmatmul.f32.gmra.mxu0 %v5131
    %v5153 = vpop.f32.mrf.mxu0
    %v5154 = vadd.f32 0.0, %v5153
    %5155 = vdwg.mxu0
    %5156 = vmatpush.msra.mxu0 0.0
    %5157 = vmatpush.msra.mxu0 0.0
    %5158 = vmatpush.msra.mxu0 0.0
    %5159 = vmatpush.msra.mxu0 0.0
    %5160 = vmatpush.msra.mxu0 0.0
    %5161 = vmatpush.msra.mxu0 0.0
    %5162 = vmatpush.msra.mxu0 0.0
    %5163 = vmatpush.msra.mxu0 0.0
    %5164 = vmatpush.msra.mxu0 0.0
    %5165 = vmatpush.msra.mxu0 %v5130
    %5166 = vmatpush.msra.mxu0 %v5129
    %5167 = vmatpush.msra.mxu0 %v5128
    %5168 = vmatpush.msra.mxu0 %v5127
    %5169 = vmatpush.msra.mxu0 %v5126
    %5170 = vmatpush.msra.mxu0 %v5125
    %5171 = vmatpush.msra.mxu0 %v5124
    %5172 = vmatmul.f32.gmra.mxu0 %v5134
    %v5173 = vpop.f32.mrf.mxu0
    %v5174 = vadd.f32 %v5154, %v5173
    %5175 = vdwg.mxu0
    %s5176 = scalar_lea.vmem [#allocation11], 64
    %v5177 = vld [vmem:[%s5176] sm:$0xff]
    %v5178 = vld [vmem:[%s5176 + $0x8] sm:$0xff]
    %v5180 = vsel %vm2760, %v5178, 0
    %5182 = vmatpush.msra.mxu0 %v5123
    %5183 = vmatpush.msra.mxu0 %v5122
    %5184 = vmatpush.msra.mxu0 %v5121
    %5185 = vmatpush.msra.mxu0 %v5120
    %5186 = vmatpush.msra.mxu0 %v5119
    %5187 = vmatpush.msra.mxu0 %v5118
    %5188 = vmatpush.msra.mxu0 %v5117
    %5189 = vmatpush.msra.mxu0 %v5116
    %5190 = vmatpush.msra.mxu0 %v5115
    %5191 = vmatpush.msra.mxu0 %v5114
    %5192 = vmatpush.msra.mxu0 %v5113
    %5193 = vmatpush.msra.mxu0 %v5112
    %5194 = vmatpush.msra.mxu0 %v5111
    %5195 = vmatpush.msra.mxu0 %v5110
    %5196 = vmatpush.msra.mxu0 %v5109
    %5197 = vmatpush.msra.mxu0 %v5108
    %5198 = vmatmul.f32.gmra.mxu0 %v5177
    %v5199 = vpop.f32.mrf.mxu0
    %v5200 = vadd.f32 0.0, %v5199
    %5201 = vdwg.mxu0
    %5202 = vmatpush.msra.mxu0 0.0
    %5203 = vmatpush.msra.mxu0 0.0
    %5204 = vmatpush.msra.mxu0 0.0
    %5205 = vmatpush.msra.mxu0 0.0
    %5206 = vmatpush.msra.mxu0 0.0
    %5207 = vmatpush.msra.mxu0 0.0
    %5208 = vmatpush.msra.mxu0 0.0
    %5209 = vmatpush.msra.mxu0 0.0
    %5210 = vmatpush.msra.mxu0 0.0
    %5211 = vmatpush.msra.mxu0 %v5130
    %5212 = vmatpush.msra.mxu0 %v5129
    %5213 = vmatpush.msra.mxu0 %v5128
    %5214 = vmatpush.msra.mxu0 %v5127
    %5215 = vmatpush.msra.mxu0 %v5126
    %5216 = vmatpush.msra.mxu0 %v5125
    %5217 = vmatpush.msra.mxu0 %v5124
    %5218 = vmatmul.f32.gmra.mxu0 %v5180
    %v5219 = vpop.f32.mrf.mxu0
    %v5220 = vadd.f32 %v5200, %v5219
    %5221 = vdwg.mxu0
    %v5222 = vmax.f32 %v5174, %v5220
    %v5223 = vld [vmem:[#allocation13] sm:$0xff]
    %v5224 = vld [vmem:[#allocation13 + $0x8] sm:$0xff]
    %v5225 = vld [vmem:[#allocation13 + $0x10] sm:$0xff]
    %v5226 = vld [vmem:[#allocation13 + $0x18] sm:$0xff]
    %v5227 = vld [vmem:[#allocation13 + $0x20] sm:$0xff]
    %v5228 = vld [vmem:[#allocation13 + $0x28] sm:$0xff]
    %v5229 = vld [vmem:[#allocation13 + $0x30] sm:$0xff]
    %v5230 = vld [vmem:[#allocation13 + $0x38] sm:$0xff]
    %v5231 = vld [vmem:[#allocation13 + $0x40] sm:$0xff]
    %v5232 = vld [vmem:[#allocation13 + $0x48] sm:$0xff]
    %v5233 = vld [vmem:[#allocation13 + $0x50] sm:$0xff]
    %v5234 = vld [vmem:[#allocation13 + $0x58] sm:$0xff]
    %v5235 = vld [vmem:[#allocation13 + $0x60] sm:$0xff]
    %v5236 = vld [vmem:[#allocation13 + $0x68] sm:$0xff]
    %v5237 = vld [vmem:[#allocation13 + $0x70] sm:$0xff]
    %v5238 = vld [vmem:[#allocation13 + $0x78] sm:$0xff]
    %s5239 = scalar_lea.vmem [#allocation11], 16
    %v5240 = vld [vmem:[%s5239] sm:$0xff]
    %v5241 = vld [vmem:[%s5239 + $0x8] sm:$0xff]
    %v5243 = vsel %vm2760, %v5241, 0
    %5245 = vmatpush.msra.mxu0 %v5123
    %5246 = vmatpush.msra.mxu0 %v5122
    %5247 = vmatpush.msra.mxu0 %v5121
    %5248 = vmatpush.msra.mxu0 %v5120
    %5249 = vmatpush.msra.mxu0 %v5119
    %5250 = vmatpush.msra.mxu0 %v5118
    %5251 = vmatpush.msra.mxu0 %v5117
    %5252 = vmatpush.msra.mxu0 %v5116
    %5253 = vmatpush.msra.mxu0 %v5115
    %5254 = vmatpush.msra.mxu0 %v5114
    %5255 = vmatpush.msra.mxu0 %v5113
    %5256 = vmatpush.msra.mxu0 %v5112
    %5257 = vmatpush.msra.mxu0 %v5111
    %5258 = vmatpush.msra.mxu0 %v5110
    %5259 = vmatpush.msra.mxu0 %v5109
    %5260 = vmatpush.msra.mxu0 %v5108
    %5261 = vmatmul.f32.gmra.mxu0 %v5240
    %v5262 = vpop.f32.mrf.mxu0
    %v5263 = vadd.f32 0.0, %v5262
    %5264 = vdwg.mxu0
    %5265 = vmatpush.msra.mxu0 0.0
    %5266 = vmatpush.msra.mxu0 0.0
    %5267 = vmatpush.msra.mxu0 0.0
    %5268 = vmatpush.msra.mxu0 0.0
    %5269 = vmatpush.msra.mxu0 0.0
    %5270 = vmatpush.msra.mxu0 0.0
    %5271 = vmatpush.msra.mxu0 0.0
    %5272 = vmatpush.msra.mxu0 0.0
    %5273 = vmatpush.msra.mxu0 0.0
    %5274 = vmatpush.msra.mxu0 %v5130
    %5275 = vmatpush.msra.mxu0 %v5129
    %5276 = vmatpush.msra.mxu0 %v5128
    %5277 = vmatpush.msra.mxu0 %v5127
    %5278 = vmatpush.msra.mxu0 %v5126
    %5279 = vmatpush.msra.mxu0 %v5125
    %5280 = vmatpush.msra.mxu0 %v5124
    %5281 = vmatmul.f32.gmra.mxu0 %v5243
    %v5282 = vpop.f32.mrf.mxu0
    %v5283 = vadd.f32 %v5263, %v5282
    %5284 = vdwg.mxu0
    %s5285 = scalar_lea.vmem [#allocation11], 80
    %v5286 = vld [vmem:[%s5285] sm:$0xff]
    %v5287 = vld [vmem:[%s5285 + $0x8] sm:$0xff]
    %v5289 = vsel %vm2760, %v5287, 0
    %5291 = vmatpush.msra.mxu0 %v5123
    %5292 = vmatpush.msra.mxu0 %v5122
    %5293 = vmatpush.msra.mxu0 %v5121
    %5294 = vmatpush.msra.mxu0 %v5120
    %5295 = vmatpush.msra.mxu0 %v5119
    %5296 = vmatpush.msra.mxu0 %v5118
    %5297 = vmatpush.msra.mxu0 %v5117
    %5298 = vmatpush.msra.mxu0 %v5116
    %5299 = vmatpush.msra.mxu0 %v5115
    %5300 = vmatpush.msra.mxu0 %v5114
    %5301 = vmatpush.msra.mxu0 %v5113
    %5302 = vmatpush.msra.mxu0 %v5112
    %5303 = vmatpush.msra.mxu0 %v5111
    %5304 = vmatpush.msra.mxu0 %v5110
    %5305 = vmatpush.msra.mxu0 %v5109
    %5306 = vmatpush.msra.mxu0 %v5108
    %5307 = vmatmul.f32.gmra.mxu0 %v5286
    %v5308 = vpop.f32.mrf.mxu0
    %v5309 = vadd.f32 0.0, %v5308
    %5310 = vdwg.mxu0
    %5311 = vmatpush.msra.mxu0 0.0
    %5312 = vmatpush.msra.mxu0 0.0
    %5313 = vmatpush.msra.mxu0 0.0
    %5314 = vmatpush.msra.mxu0 0.0
    %5315 = vmatpush.msra.mxu0 0.0
    %5316 = vmatpush.msra.mxu0 0.0
    %5317 = vmatpush.msra.mxu0 0.0
    %5318 = vmatpush.msra.mxu0 0.0
    %5319 = vmatpush.msra.mxu0 0.0
    %5320 = vmatpush.msra.mxu0 %v5130
    %5321 = vmatpush.msra.mxu0 %v5129
    %5322 = vmatpush.msra.mxu0 %v5128
    %5323 = vmatpush.msra.mxu0 %v5127
    %5324 = vmatpush.msra.mxu0 %v5126
    %5325 = vmatpush.msra.mxu0 %v5125
    %5326 = vmatpush.msra.mxu0 %v5124
    %5327 = vmatmul.f32.gmra.mxu0 %v5289
    %v5328 = vpop.f32.mrf.mxu0
    %v5329 = vadd.f32 %v5309, %v5328
    %5330 = vdwg.mxu0
    %v5331 = vmax.f32 %v5283, %v5329
    %s5332 = scalar_lea.vmem [#allocation13], 128
    %v5333 = vld [vmem:[%s5332] sm:$0xff]
    %v5334 = vld [vmem:[%s5332 + $0x8] sm:$0xff]
    %v5335 = vld [vmem:[%s5332 + $0x10] sm:$0xff]
    %v5336 = vld [vmem:[%s5332 + $0x18] sm:$0xff]
    %v5337 = vld [vmem:[%s5332 + $0x20] sm:$0xff]
    %v5338 = vld [vmem:[%s5332 + $0x28] sm:$0xff]
    %v5339 = vld [vmem:[%s5332 + $0x30] sm:$0xff]
    %v5340 = vld [vmem:[%s5332 + $0x38] sm:$0xff]
    %v5341 = vld [vmem:[%s5332 + $0x40] sm:$0xff]
    %v5342 = vld [vmem:[%s5332 + $0x48] sm:$0xff]
    %v5343 = vld [vmem:[%s5332 + $0x50] sm:$0xff]
    %v5344 = vld [vmem:[%s5332 + $0x58] sm:$0xff]
    %v5345 = vld [vmem:[%s5332 + $0x60] sm:$0xff]
    %v5346 = vld [vmem:[%s5332 + $0x68] sm:$0xff]
    %v5347 = vld [vmem:[%s5332 + $0x70] sm:$0xff]
    %v5348 = vld [vmem:[%s5332 + $0x78] sm:$0xff]
    %5349 = vmatpush.msra.mxu0 %v5348
    %5350 = vmatpush.msra.mxu0 %v5347
    %5351 = vmatpush.msra.mxu0 %v5346
    %5352 = vmatpush.msra.mxu0 %v5345
    %5353 = vmatpush.msra.mxu0 %v5344
    %5354 = vmatpush.msra.mxu0 %v5343
    %5355 = vmatpush.msra.mxu0 %v5342
    %5356 = vmatpush.msra.mxu0 %v5341
    %5357 = vmatpush.msra.mxu0 %v5340
    %5358 = vmatpush.msra.mxu0 %v5339
    %5359 = vmatpush.msra.mxu0 %v5338
    %5360 = vmatpush.msra.mxu0 %v5337
    %5361 = vmatpush.msra.mxu0 %v5336
    %5362 = vmatpush.msra.mxu0 %v5335
    %5363 = vmatpush.msra.mxu0 %v5334
    %5364 = vmatpush.msra.mxu0 %v5333
    %5365 = vmatmul.f32.gmra.mxu0 %v5331
    %v5366 = vpop.f32.mrf.mxu0
    %v5367 = vadd.f32 0.0, %v5366
    %5368 = vdwg.mxu0
    %5369 = vmatpush.msra.mxu0 %v5238
    %5370 = vmatpush.msra.mxu0 %v5237
    %5371 = vmatpush.msra.mxu0 %v5236
    %5372 = vmatpush.msra.mxu0 %v5235
    %5373 = vmatpush.msra.mxu0 %v5234
    %5374 = vmatpush.msra.mxu0 %v5233
    %5375 = vmatpush.msra.mxu0 %v5232
    %5376 = vmatpush.msra.mxu0 %v5231
    %5377 = vmatpush.msra.mxu0 %v5230
    %5378 = vmatpush.msra.mxu0 %v5229
    %5379 = vmatpush.msra.mxu0 %v5228
    %5380 = vmatpush.msra.mxu0 %v5227
    %5381 = vmatpush.msra.mxu0 %v5226
    %5382 = vmatpush.msra.mxu0 %v5225
    %5383 = vmatpush.msra.mxu0 %v5224
    %5384 = vmatpush.msra.mxu0 %v5223
    %5385 = vmatmul.f32.gmra.mxu0 %v5222
    %v5386 = vpop.f32.mrf.mxu0
    %v5387 = vadd.f32 %v5367, %v5386
    %5388 = vdwg.mxu0
    %s5389 = scalar_lea.vmem [#allocation11], 32
    %v5390 = vld [vmem:[%s5389] sm:$0xff]
    %v5391 = vld [vmem:[%s5389 + $0x8] sm:$0xff]
    %v5393 = vsel %vm2760, %v5391, 0
    %5395 = vmatpush.msra.mxu0 %v5123
    %5396 = vmatpush.msra.mxu0 %v5122
    %5397 = vmatpush.msra.mxu0 %v5121
    %5398 = vmatpush.msra.mxu0 %v5120
    %5399 = vmatpush.msra.mxu0 %v5119
    %5400 = vmatpush.msra.mxu0 %v5118
    %5401 = vmatpush.msra.mxu0 %v5117
    %5402 = vmatpush.msra.mxu0 %v5116
    %5403 = vmatpush.msra.mxu0 %v5115
    %5404 = vmatpush.msra.mxu0 %v5114
    %5405 = vmatpush.msra.mxu0 %v5113
    %5406 = vmatpush.msra.mxu0 %v5112
    %5407 = vmatpush.msra.mxu0 %v5111
    %5408 = vmatpush.msra.mxu0 %v5110
    %5409 = vmatpush.msra.mxu0 %v5109
    %5410 = vmatpush.msra.mxu0 %v5108
    %5411 = vmatmul.f32.gmra.mxu0 %v5390
    %v5412 = vpop.f32.mrf.mxu0
    %v5413 = vadd.f32 0.0, %v5412
    %5414 = vdwg.mxu0
    %5415 = vmatpush.msra.mxu0 0.0
    %5416 = vmatpush.msra.mxu0 0.0
    %5417 = vmatpush.msra.mxu0 0.0
    %5418 = vmatpush.msra.mxu0 0.0
    %5419 = vmatpush.msra.mxu0 0.0
    %5420 = vmatpush.msra.mxu0 0.0
    %5421 = vmatpush.msra.mxu0 0.0
    %5422 = vmatpush.msra.mxu0 0.0
    %5423 = vmatpush.msra.mxu0 0.0
    %5424 = vmatpush.msra.mxu0 %v5130
    %5425 = vmatpush.msra.mxu0 %v5129
    %5426 = vmatpush.msra.mxu0 %v5128
    %5427 = vmatpush.msra.mxu0 %v5127
    %5428 = vmatpush.msra.mxu0 %v5126
    %5429 = vmatpush.msra.mxu0 %v5125
    %5430 = vmatpush.msra.mxu0 %v5124
    %5431 = vmatmul.f32.gmra.mxu0 %v5393
    %v5432 = vpop.f32.mrf.mxu0
    %v5433 = vadd.f32 %v5413, %v5432
    %5434 = vdwg.mxu0
    %s5435 = scalar_lea.vmem [#allocation11], 96
    %v5436 = vld [vmem:[%s5435] sm:$0xff]
    %v5437 = vld [vmem:[%s5435 + $0x8] sm:$0xff]
    %v5439 = vsel %vm2760, %v5437, 0
    %5441 = vmatpush.msra.mxu0 %v5123
    %5442 = vmatpush.msra.mxu0 %v5122
    %5443 = vmatpush.msra.mxu0 %v5121
    %5444 = vmatpush.msra.mxu0 %v5120
    %5445 = vmatpush.msra.mxu0 %v5119
    %5446 = vmatpush.msra.mxu0 %v5118
    %5447 = vmatpush.msra.mxu0 %v5117
    %5448 = vmatpush.msra.mxu0 %v5116
    %5449 = vmatpush.msra.mxu0 %v5115
    %5450 = vmatpush.msra.mxu0 %v5114
    %5451 = vmatpush.msra.mxu0 %v5113
    %5452 = vmatpush.msra.mxu0 %v5112
    %5453 = vmatpush.msra.mxu0 %v5111
    %5454 = vmatpush.msra.mxu0 %v5110
    %5455 = vmatpush.msra.mxu0 %v5109
    %5456 = vmatpush.msra.mxu0 %v5108
    %5457 = vmatmul.f32.gmra.mxu0 %v5436
    %v5458 = vpop.f32.mrf.mxu0
    %v5459 = vadd.f32 0.0, %v5458
    %5460 = vdwg.mxu0
    %5461 = vmatpush.msra.mxu0 0.0
    %5462 = vmatpush.msra.mxu0 0.0
    %5463 = vmatpush.msra.mxu0 0.0
    %5464 = vmatpush.msra.mxu0 0.0
    %5465 = vmatpush.msra.mxu0 0.0
    %5466 = vmatpush.msra.mxu0 0.0
    %5467 = vmatpush.msra.mxu0 0.0
    %5468 = vmatpush.msra.mxu0 0.0
    %5469 = vmatpush.msra.mxu0 0.0
    %5470 = vmatpush.msra.mxu0 %v5130
    %5471 = vmatpush.msra.mxu0 %v5129
    %5472 = vmatpush.msra.mxu0 %v5128
    %5473 = vmatpush.msra.mxu0 %v5127
    %5474 = vmatpush.msra.mxu0 %v5126
    %5475 = vmatpush.msra.mxu0 %v5125
    %5476 = vmatpush.msra.mxu0 %v5124
    %5477 = vmatmul.f32.gmra.mxu0 %v5439
    %v5478 = vpop.f32.mrf.mxu0
    %v5479 = vadd.f32 %v5459, %v5478
    %5480 = vdwg.mxu0
    %v5481 = vmax.f32 %v5433, %v5479
    %s5482 = scalar_lea.vmem [#allocation13], 256
    %v5483 = vld [vmem:[%s5482] sm:$0xff]
    %v5484 = vld [vmem:[%s5482 + $0x8] sm:$0xff]
    %v5485 = vld [vmem:[%s5482 + $0x10] sm:$0xff]
    %v5486 = vld [vmem:[%s5482 + $0x18] sm:$0xff]
    %v5487 = vld [vmem:[%s5482 + $0x20] sm:$0xff]
    %v5488 = vld [vmem:[%s5482 + $0x28] sm:$0xff]
    %v5489 = vld [vmem:[%s5482 + $0x30] sm:$0xff]
    %v5490 = vld [vmem:[%s5482 + $0x38] sm:$0xff]
    %v5491 = vld [vmem:[%s5482 + $0x40] sm:$0xff]
    %v5492 = vld [vmem:[%s5482 + $0x48] sm:$0xff]
    %v5493 = vld [vmem:[%s5482 + $0x50] sm:$0xff]
    %v5494 = vld [vmem:[%s5482 + $0x58] sm:$0xff]
    %v5495 = vld [vmem:[%s5482 + $0x60] sm:$0xff]
    %v5496 = vld [vmem:[%s5482 + $0x68] sm:$0xff]
    %v5497 = vld [vmem:[%s5482 + $0x70] sm:$0xff]
    %v5498 = vld [vmem:[%s5482 + $0x78] sm:$0xff]
    %5499 = vmatpush.msra.mxu0 %v5498
    %5500 = vmatpush.msra.mxu0 %v5497
    %5501 = vmatpush.msra.mxu0 %v5496
    %5502 = vmatpush.msra.mxu0 %v5495
    %5503 = vmatpush.msra.mxu0 %v5494
    %5504 = vmatpush.msra.mxu0 %v5493
    %5505 = vmatpush.msra.mxu0 %v5492
    %5506 = vmatpush.msra.mxu0 %v5491
    %5507 = vmatpush.msra.mxu0 %v5490
    %5508 = vmatpush.msra.mxu0 %v5489
    %5509 = vmatpush.msra.mxu0 %v5488
    %5510 = vmatpush.msra.mxu0 %v5487
    %5511 = vmatpush.msra.mxu0 %v5486
    %5512 = vmatpush.msra.mxu0 %v5485
    %5513 = vmatpush.msra.mxu0 %v5484
    %5514 = vmatpush.msra.mxu0 %v5483
    %5515 = vmatmul.f32.gmra.mxu0 %v5481
    %v5516 = vpop.f32.mrf.mxu0
    %v5517 = vadd.f32 0.0, %v5516
    %5518 = vdwg.mxu0
    %v5519 = vadd.f32 %v5387, %v5517
    %s5520 = scalar_lea.vmem [#allocation11], 48
    %v5521 = vld [vmem:[%s5520] sm:$0xff]
    %v5522 = vld [vmem:[%s5520 + $0x8] sm:$0xff]
    %v5524 = vsel %vm2760, %v5522, 0
    %5526 = vmatpush.msra.mxu0 %v5123
    %5527 = vmatpush.msra.mxu0 %v5122
    %5528 = vmatpush.msra.mxu0 %v5121
    %5529 = vmatpush.msra.mxu0 %v5120
    %5530 = vmatpush.msra.mxu0 %v5119
    %5531 = vmatpush.msra.mxu0 %v5118
    %5532 = vmatpush.msra.mxu0 %v5117
    %5533 = vmatpush.msra.mxu0 %v5116
    %5534 = vmatpush.msra.mxu0 %v5115
    %5535 = vmatpush.msra.mxu0 %v5114
    %5536 = vmatpush.msra.mxu0 %v5113
    %5537 = vmatpush.msra.mxu0 %v5112
    %5538 = vmatpush.msra.mxu0 %v5111
    %5539 = vmatpush.msra.mxu0 %v5110
    %5540 = vmatpush.msra.mxu0 %v5109
    %5541 = vmatpush.msra.mxu0 %v5108
    %5542 = vmatmul.f32.gmra.mxu0 %v5521
    %v5543 = vpop.f32.mrf.mxu0
    %v5544 = vadd.f32 0.0, %v5543
    %5545 = vdwg.mxu0
    %5546 = vmatpush.msra.mxu0 0.0
    %5547 = vmatpush.msra.mxu0 0.0
    %5548 = vmatpush.msra.mxu0 0.0
    %5549 = vmatpush.msra.mxu0 0.0
    %5550 = vmatpush.msra.mxu0 0.0
    %5551 = vmatpush.msra.mxu0 0.0
    %5552 = vmatpush.msra.mxu0 0.0
    %5553 = vmatpush.msra.mxu0 0.0
    %5554 = vmatpush.msra.mxu0 0.0
    %5555 = vmatpush.msra.mxu0 %v5130
    %5556 = vmatpush.msra.mxu0 %v5129
    %5557 = vmatpush.msra.mxu0 %v5128
    %5558 = vmatpush.msra.mxu0 %v5127
    %5559 = vmatpush.msra.mxu0 %v5126
    %5560 = vmatpush.msra.mxu0 %v5125
    %5561 = vmatpush.msra.mxu0 %v5124
    %5562 = vmatmul.f32.gmra.mxu0 %v5524
    %v5563 = vpop.f32.mrf.mxu0
    %v5564 = vadd.f32 %v5544, %v5563
    %5565 = vdwg.mxu0
    %s5566 = scalar_lea.vmem [#allocation11], 112
    %v5567 = vld [vmem:[%s5566] sm:$0xff]
    %v5568 = vld [vmem:[%s5566 + $0x8] sm:$0xff]
    %v5570 = vsel %vm2760, %v5568, 0
    %5572 = vmatpush.msra.mxu0 %v5123
    %5573 = vmatpush.msra.mxu0 %v5122
    %5574 = vmatpush.msra.mxu0 %v5121
    %5575 = vmatpush.msra.mxu0 %v5120
    %5576 = vmatpush.msra.mxu0 %v5119
    %5577 = vmatpush.msra.mxu0 %v5118
    %5578 = vmatpush.msra.mxu0 %v5117
    %5579 = vmatpush.msra.mxu0 %v5116
    %5580 = vmatpush.msra.mxu0 %v5115
    %5581 = vmatpush.msra.mxu0 %v5114
    %5582 = vmatpush.msra.mxu0 %v5113
    %5583 = vmatpush.msra.mxu0 %v5112
    %5584 = vmatpush.msra.mxu0 %v5111
    %5585 = vmatpush.msra.mxu0 %v5110
    %5586 = vmatpush.msra.mxu0 %v5109
    %5587 = vmatpush.msra.mxu0 %v5108
    %5588 = vmatmul.f32.gmra.mxu0 %v5567
    %v5589 = vpop.f32.mrf.mxu0
    %v5590 = vadd.f32 0.0, %v5589
    %5591 = vdwg.mxu0
    %5592 = vmatpush.msra.mxu0 0.0
    %5593 = vmatpush.msra.mxu0 0.0
    %5594 = vmatpush.msra.mxu0 0.0
    %5595 = vmatpush.msra.mxu0 0.0
    %5596 = vmatpush.msra.mxu0 0.0
    %5597 = vmatpush.msra.mxu0 0.0
    %5598 = vmatpush.msra.mxu0 0.0
    %5599 = vmatpush.msra.mxu0 0.0
    %5600 = vmatpush.msra.mxu0 0.0
    %5601 = vmatpush.msra.mxu0 %v5130
    %5602 = vmatpush.msra.mxu0 %v5129
    %5603 = vmatpush.msra.mxu0 %v5128
    %5604 = vmatpush.msra.mxu0 %v5127
    %5605 = vmatpush.msra.mxu0 %v5126
    %5606 = vmatpush.msra.mxu0 %v5125
    %5607 = vmatpush.msra.mxu0 %v5124
    %5608 = vmatmul.f32.gmra.mxu0 %v5570
    %v5609 = vpop.f32.mrf.mxu0
    %v5610 = vadd.f32 %v5590, %v5609
    %5611 = vdwg.mxu0
    %v5612 = vmax.f32 %v5564, %v5610
    %s5613 = scalar_lea.vmem [#allocation13], 384
    %v5614 = vld [vmem:[%s5613] sm:$0xff]
    %v5615 = vld [vmem:[%s5613 + $0x8] sm:$0xff]
    %v5616 = vld [vmem:[%s5613 + $0x10] sm:$0xff]
    %v5617 = vld [vmem:[%s5613 + $0x18] sm:$0xff]
    %v5618 = vld [vmem:[%s5613 + $0x20] sm:$0xff]
    %v5619 = vld [vmem:[%s5613 + $0x28] sm:$0xff]
    %v5620 = vld [vmem:[%s5613 + $0x30] sm:$0xff]
    %v5621 = vld [vmem:[%s5613 + $0x38] sm:$0xff]
    %v5622 = vld [vmem:[%s5613 + $0x40] sm:$0xff]
    %v5623 = vld [vmem:[%s5613 + $0x48] sm:$0xff]
    %v5624 = vld [vmem:[%s5613 + $0x50] sm:$0xff]
    %v5625 = vld [vmem:[%s5613 + $0x58] sm:$0xff]
    %v5626 = vld [vmem:[%s5613 + $0x60] sm:$0xff]
    %v5627 = vld [vmem:[%s5613 + $0x68] sm:$0xff]
    %v5628 = vld [vmem:[%s5613 + $0x70] sm:$0xff]
    %v5629 = vld [vmem:[%s5613 + $0x78] sm:$0xff]
    %5630 = vmatpush.msra.mxu0 %v5629
    %5631 = vmatpush.msra.mxu0 %v5628
    %5632 = vmatpush.msra.mxu0 %v5627
    %5633 = vmatpush.msra.mxu0 %v5626
    %5634 = vmatpush.msra.mxu0 %v5625
    %5635 = vmatpush.msra.mxu0 %v5624
    %5636 = vmatpush.msra.mxu0 %v5623
    %5637 = vmatpush.msra.mxu0 %v5622
    %5638 = vmatpush.msra.mxu0 %v5621
    %5639 = vmatpush.msra.mxu0 %v5620
    %5640 = vmatpush.msra.mxu0 %v5619
    %5641 = vmatpush.msra.mxu0 %v5618
    %5642 = vmatpush.msra.mxu0 %v5617
    %5643 = vmatpush.msra.mxu0 %v5616
    %5644 = vmatpush.msra.mxu0 %v5615
    %5645 = vmatpush.msra.mxu0 %v5614
    %5646 = vmatmul.f32.gmra.mxu0 %v5612
    %v5647 = vpop.f32.mrf.mxu0
    %v5648 = vadd.f32 0.0, %v5647
    %5649 = vdwg.mxu0
    %v5650 = vadd.f32 %v5519, %v5648
    %v5651 = vld [vmem:[%s8] sm:$0x1]
    %v5653 = vperm.slane %v5651, 0
    %v5655 = vadd.f32 %v5650, %v5653
    %v5656 = vmax.f32 %v5655, 0.0
    %v5657 = vld [vmem:[#allocation14] sm:$0xff]
    %v5658 = vld [vmem:[#allocation14 + $0x8] sm:$0xff]
    %v5659 = vld [vmem:[#allocation14 + $0x10] sm:$0xff]
    %v5660 = vld [vmem:[#allocation14 + $0x18] sm:$0xff]
    %v5661 = vld [vmem:[#allocation14 + $0x20] sm:$0xff]
    %v5662 = vld [vmem:[#allocation14 + $0x28] sm:$0xff]
    %v5663 = vld [vmem:[#allocation14 + $0x30] sm:$0xff]
    %v5664 = vld [vmem:[#allocation14 + $0x38] sm:$0xff]
    %v5665 = vld [vmem:[#allocation14 + $0x40] sm:$0xff]
    %v5666 = vld [vmem:[#allocation14 + $0x48] sm:$0xff]
    %v5667 = vld [vmem:[#allocation14 + $0x50] sm:$0xff]
    %v5668 = vld [vmem:[#allocation14 + $0x58] sm:$0xff]
    %v5669 = vld [vmem:[#allocation14 + $0x60] sm:$0xff]
    %v5670 = vld [vmem:[#allocation14 + $0x68] sm:$0xff]
    %v5671 = vld [vmem:[#allocation14 + $0x70] sm:$0xff]
    %v5672 = vld [vmem:[#allocation14 + $0x78] sm:$0xff]
    %v5673 = vld [vmem:[%s10] sm:$0x1]
    %v5675 = vperm.slane %v5673, 0
    %5677 = vmatpush.msra.mxu0 %v5672
    %5678 = vmatpush.msra.mxu0 %v5671
    %5679 = vmatpush.msra.mxu0 %v5670
    %5680 = vmatpush.msra.mxu0 %v5669
    %5681 = vmatpush.msra.mxu0 %v5668
    %5682 = vmatpush.msra.mxu0 %v5667
    %5683 = vmatpush.msra.mxu0 %v5666
    %5684 = vmatpush.msra.mxu0 %v5665
    %5685 = vmatpush.msra.mxu0 %v5664
    %5686 = vmatpush.msra.mxu0 %v5663
    %5687 = vmatpush.msra.mxu0 %v5662
    %5688 = vmatpush.msra.mxu0 %v5661
    %5689 = vmatpush.msra.mxu0 %v5660
    %5690 = vmatpush.msra.mxu0 %v5659
    %5691 = vmatpush.msra.mxu0 %v5658
    %5692 = vmatpush.msra.mxu0 %v5657
    %5693 = vmatmul.f32.gmra.mxu0 %v5656
    %v5694 = vpop.f32.mrf.mxu0
    %v5695 = vadd.f32 %v5675, %v5694
    %5696 = vdwg.mxu0
    %v5697 = vmax.f32 %v5695, 0.0
    %v5698 = vld [vmem:[#allocation16] sm:$0xff]
    %v5699 = vld [vmem:[#allocation16 + $0x8] sm:$0xff]
    %v5700 = vld [vmem:[#allocation16 + $0x10] sm:$0xff]
    %v5701 = vld [vmem:[#allocation16 + $0x18] sm:$0xff]
    %v5702 = vld [vmem:[#allocation16 + $0x20] sm:$0xff]
    %v5703 = vld [vmem:[#allocation16 + $0x28] sm:$0xff]
    %v5704 = vld [vmem:[#allocation16 + $0x30] sm:$0xff]
    %v5705 = vld [vmem:[#allocation16 + $0x38] sm:$0xff]
    %v5706 = vld [vmem:[#allocation16 + $0x40] sm:$0xff]
    %v5707 = vld [vmem:[#allocation16 + $0x48] sm:$0xff]
    %v5708 = vld [vmem:[#allocation16 + $0x50] sm:$0xff]
    %v5709 = vld [vmem:[#allocation16 + $0x58] sm:$0xff]
    %v5710 = vld [vmem:[#allocation16 + $0x60] sm:$0xff]
    %v5711 = vld [vmem:[#allocation16 + $0x68] sm:$0xff]
    %v5712 = vld [vmem:[#allocation16 + $0x70] sm:$0xff]
    %v5713 = vld [vmem:[#allocation16 + $0x78] sm:$0xff]
    %v5714 = vld [vmem:[%s12] sm:$0x1]
    %v5716 = vperm.slane %v5714, 0
    %5718 = vmatpush.msra.mxu0 %v5713
    %5719 = vmatpush.msra.mxu0 %v5712
    %5720 = vmatpush.msra.mxu0 %v5711
    %5721 = vmatpush.msra.mxu0 %v5710
    %5722 = vmatpush.msra.mxu0 %v5709
    %5723 = vmatpush.msra.mxu0 %v5708
    %5724 = vmatpush.msra.mxu0 %v5707
    %5725 = vmatpush.msra.mxu0 %v5706
    %5726 = vmatpush.msra.mxu0 %v5705
    %5727 = vmatpush.msra.mxu0 %v5704
    %5728 = vmatpush.msra.mxu0 %v5703
    %5729 = vmatpush.msra.mxu0 %v5702
    %5730 = vmatpush.msra.mxu0 %v5701
    %5731 = vmatpush.msra.mxu0 %v5700
    %5732 = vmatpush.msra.mxu0 %v5699
    %5733 = vmatpush.msra.mxu0 %v5698
    %5734 = vmatmul.f32.gmra.mxu0 %v5697
    %v5735 = vpop.f32.mrf.mxu0
    %v5736 = vadd.f32 %v5716, %v5735
    %5737 = vdwg.mxu0
    %5738 = vst [vmem:[#allocation17] sm:$0xff] %v5736
    // Predicated region
    $region90: #{tpu_custom_call.1} parent=1 // pred_check
      _
    $region91: #{tpu_custom_call.1} parent=1 // pred_check_branch
      %5740 = sbr.rel (0) target = $region93
    $region92: #{tpu_custom_call.1} parent=1 // pred_region
      %5742 = vsyncadd [#allocation4], 0
      %s5744 = sshll.u32 [#allocation17], 4
      %s5745 = int_to_ptr.vmem [resolvable:$true] %s5744
      %s5746 = sshll.u32 %s13, 4
      %s5747 = int_to_ptr.hbm [resolvable:$true] %s5746
      %5749 = dma.vmem_to_hbm [thread:$0]  %s5745, 128, %s5747, [#allocation4]
    $region93: #{tpu_custom_call.1} parent=1 // pred_fallthru
      _
    // Predicated region
    $region94: #{tpu_custom_call.1} parent=1 // pred_check
      _
    $region95: #{tpu_custom_call.1} parent=1 // pred_check_branch
      %5751 = sbr.rel (0) target = $region97
    $region96: #{tpu_custom_call.1} parent=1 // pred_region
      %5753 = dma.done [#allocation4], 128
    $region97: #{tpu_custom_call.1} parent=1 // pred_fallthru
      _
    %5754 = vsyncpa [#allocation3], 1
    %5755 = vsyncpa [#allocation6], 1
    %5756 = vsyncpa [#allocation9], 1
    %5757 = vsyncpa [#allocation12], 1
    %5758 = vsyncpa [#allocation15], 1
    %5759 = vsyncpa [#allocation4], 1

</llo_original>
